<compile_context>
chip_gen: v7x
topology: tpu7x:2x2x1
jax: 0.10.0
libtpu: 0.0.40
codegen_flags: <defaults>
</compile_context>

<pallas_src>
import functools

import jax
import jax.numpy as jnp
from jax.experimental import pallas as pl
from jax.experimental.pallas import tpu as pltpu


def linear_kernel(x_ref, w_ref, b_ref, o_ref):
    """One (M, tn) output tile: y = x @ w + b  (w already in [K, N] bf16 layout).

    x_ref: (M, K)   f32 activations (resident across the whole grid)
    w_ref: (K, tn)  bf16 weight tile, canonical [K, N] layout (MXU-native)
    b_ref: (1, tn)  f32 bias tile
    o_ref: (M, tn)  f32 output tile
    """
    x = x_ref[...].astype(w_ref.dtype)  # f32 -> bf16 on the VPU; hidden under DMA/MXU
    y = jnp.dot(x, w_ref[...], preferred_element_type=jnp.float32)
    o_ref[...] = (y + b_ref[...]).astype(o_ref.dtype)


def prepare_linear_params(weight, bias):
    """One-time (setup-time) transform of the PyTorch-layout parameters.

    weight: [N, K] f32  ->  [K, N] bf16   (MXU-native layout, half HBM traffic)
    bias:   [N]    f32  ->  [1, N] f32
    """
    w_kn = jnp.asarray(weight).T.astype(jnp.bfloat16)
    b2d = jnp.asarray(bias, jnp.float32).reshape(1, -1)
    return w_kn, b2d


@functools.partial(jax.jit, static_argnames=("tn",))
def linear_pallas(x, w_kn, b2d, *, tn=1024):
    """x: [B, S, K] f32, w_kn: [K, N] bf16, b2d: [1, N] f32 -> [B, S, N] f32."""
    B, S, K = x.shape
    N = w_kn.shape[1]
    M = B * S
    x2d = x.reshape(M, K)

    # (8, 128) tiling constraints for the chosen blocks.
    assert M % 8 == 0 and K % 128 == 0 and N % tn == 0 and tn % 128 == 0

    grid = (N // tn,)  # 3072 // 1024 = 3 steps over the output features

    cost = pl.CostEstimate(
        flops=2 * M * K * N,
        transcendentals=0,
        bytes_accessed=(
            M * K * 4          # x (f32), read once (resident block)
            + K * N * 2        # weight (bf16), read once
            + N * 4            # bias (f32)
            + M * N * 4        # output (f32) writeback
        ),
    )

    out = pl.pallas_call(
        linear_kernel,
        out_shape=jax.ShapeDtypeStruct((M, N), x.dtype),
        grid_spec=pltpu.PrefetchScalarGridSpec(
            num_scalar_prefetch=0,
            grid=grid,
            in_specs=[
                pl.BlockSpec((M, K), lambda j: (0, 0)),    # full x, resident across grid
                pl.BlockSpec((K, tn), lambda j: (0, j)),   # [K, N] bf16 weight tile
                pl.BlockSpec((1, tn), lambda j: (0, j)),   # bias tile
            ],
            out_specs=pl.BlockSpec((M, tn), lambda j: (0, j)),
        ),
        compiler_params=pltpu.CompilerParams(
            dimension_semantics=("parallel",),        # v7x: tiles split across both TCs
            vmem_limit_bytes=32 * 1024 * 1024,        # ~10 MB footprint; explicit headroom
        ),
        cost_estimate=cost,
    )(x2d, w_kn, b2d)

    return out.reshape(B, S, N)


if __name__ == "__main__":
    B, S, K, N = 1, 384, 768, 3072

    key = jax.random.PRNGKey(0)
    kx, kw, kb = jax.random.split(key, 3)

    # Deterministic synthetic parameters (PyTorch default init: U(-1/sqrt(K), 1/sqrt(K)))
    bound = 1.0 / jnp.sqrt(jnp.float32(K))
    x = jax.random.normal(kx, (B, S, K), dtype=jnp.float32)
    weight = jax.random.uniform(kw, (N, K), minval=-bound, maxval=bound, dtype=jnp.float32)
    bias = jax.random.uniform(kb, (N,), minval=-bound, maxval=bound, dtype=jnp.float32)

    # One-time parameter setup (outside the hot path), as a real model would do.
    w_kn, b2d = prepare_linear_params(weight, bias)

    y = linear_pallas(x, w_kn, b2d)
    y = jax.block_until_ready(y)

    assert y.shape == (B, S, N)

    # Reference check against plain-JAX f32 Linear. Tolerance loosened because the
    # weight is stored in bf16 (f32 accumulation); observed error is ~3e-3.
    y_ref = x @ weight.T + bias
    max_err = float(jnp.max(jnp.abs(y - y_ref)))
    assert max_err < 2e-2, f"max abs error too large: {max_err}"

    print("KERNEL_OK")
</pallas_src>

<mosaic_0001>
module attributes {stable_mosaic.version = 11 : i64} {
  func.func @linear_kernel(%arg0: i32, %arg1: memref<384x768xf32, #tpu.memory_space<vmem>>, %arg2: memref<768x1024xbf16, #tpu.memory_space<vmem>>, %arg3: memref<1x1024xf32, #tpu.memory_space<vmem>>, %arg4: memref<384x1024xf32, #tpu.memory_space<vmem>>) attributes {dimension_semantics = [#tpu.dimension_semantics<parallel>], iteration_bounds = array<i64: 3>, scalar_prefetch = 0 : i64, scratch_operands = 0 : i64, tpu.core_type = #tpu.core_type<tc>, window_params = [{pipeline_mode = #tpu.pipeline_mode<synchronous>, transform_indices = @transform_0, window_bounds = array<i64: 384, 768>}, {transform_indices = @transform_1, window_bounds = array<i64: 768, 1024>}, {transform_indices = @transform_2, window_bounds = array<i64: 1, 1024>}, {transform_indices = @transform_3, window_bounds = array<i64: 384, 1024>}]} {
    %c0 = arith.constant 0 : index
    %c0_0 = arith.constant 0 : index
    %0 = vector.load %arg1[%c0, %c0_0] : memref<384x768xf32, #tpu.memory_space<vmem>>, vector<384x768xf32>
    %1 = arith.truncf %0 : vector<384x768xf32> to vector<384x768xbf16>
    %c0_1 = arith.constant 0 : index
    %c0_2 = arith.constant 0 : index
    %2 = vector.load %arg2[%c0_1, %c0_2] : memref<768x1024xbf16, #tpu.memory_space<vmem>>, vector<768x1024xbf16>
    %cst = arith.constant dense<0.000000e+00> : vector<384x1024xf32>
    %3 = tpu.matmul %1, %2, %cst {dimension_numbers = #tpu.dot_dimension_numbers<[1], [0], [0], [1], [0, 0, 1, 1], [], []>} : vector<384x768xbf16>, vector<768x1024xbf16>, vector<384x1024xf32> -> vector<384x1024xf32>
    %c0_3 = arith.constant 0 : index
    %c0_4 = arith.constant 0 : index
    %4 = vector.load %arg3[%c0_3, %c0_4] : memref<1x1024xf32, #tpu.memory_space<vmem>>, vector<1x1024xf32>
    %5 = vector.broadcast %4 : vector<1x1024xf32> to vector<384x1024xf32>
    %6 = arith.addf %3, %5 : vector<384x1024xf32>
    %c0_5 = arith.constant 0 : index
    %c0_6 = arith.constant 0 : index
    %7 = vector.load %arg4[%c0_5, %c0_6] : memref<384x1024xf32, #tpu.memory_space<vmem>>, vector<384x1024xf32>
    tpu.vector_store %arg4[%c0_5, %c0_6], %6 {strides = array<i32>} : memref<384x1024xf32, #tpu.memory_space<vmem>>, vector<384x1024xf32>,
    return
  }
  func.func @transform_0(%arg0: i32) -> (i32, i32) {
    %c0_i32 = arith.constant 0 : i32
    %c0_i32_0 = arith.constant 0 : i32
    %c0_i32_1 = arith.constant 0 : i32
    return %c0_i32, %c0_i32_0 : i32, i32
  }
  func.func @transform_1(%arg0: i32) -> (i32, i32) {
    %c0_i32 = arith.constant 0 : i32
    %c0_i32_0 = arith.constant 0 : i32
    return %c0_i32, %arg0 : i32, i32
  }
  func.func @transform_2(%arg0: i32) -> (i32, i32) {
    %c0_i32 = arith.constant 0 : i32
    %c0_i32_0 = arith.constant 0 : i32
    return %c0_i32, %arg0 : i32, i32
  }
  func.func @transform_3(%arg0: i32) -> (i32, i32) {
    %c0_i32 = arith.constant 0 : i32
    %c0_i32_0 = arith.constant 0 : i32
    return %c0_i32, %arg0 : i32, i32
  }
}

</mosaic_0001>

<llo_original>
// kernel: linear_pallas.1
$region0: #{linear_pallas.1}
  #allocation0 [shape = 'u32[]', space=smem, size = 0x4, offset = 0x4, fixed_abs, tag = 'smem constant byte address 0x4 - core index']
  #allocation1 [shape = 'u32[144,128]{1,0:T(1,128)}', space=vmem, size = 0x12000, scoped, tag = 'internal scratch']
  %s0 = inlined_call_operand.hbm [shape: f32[384,768], index: 0, kind: input, shape index: {}]
  %s1 = inlined_call_operand.hbm [shape: bf16[768,3072], index: 1, kind: input, shape index: {}]
  %s2 = inlined_call_operand.hbm [shape: f32[1,3072], index: 2, kind: input, shape index: {}]
  %s3 = inlined_call_operand.hbm [shape: f32[384,3072], index: 3, kind: output, shape index: {}]
  %s4 = sld [smem:[#allocation0]]
  $region57: #{linear_pallas.1} parent=0
    _
  %s6 = ssub.s32 1, %s4
  %s7 = scalar_select 0, %s6, %s4
  $region1: #{linear_pallas.1} parent=0
    #allocation2 [shape = 'u8[1179648]{0}', space=vmem, size = 0x120000, scoped, tag = 'input window, operand 0, single buffered']
    #allocation3 [shape = 's32[2]{0}', space=sflag, size = 0x8, scoped, tag = 'scoped memory for linear_pallas.1']
    #allocation4 [shape = 's32[2]{0}', space=sflag, size = 0x8, scoped, tag = 'scoped memory for linear_pallas.1']
    #allocation5 [shape = 'u8[3145728]{0}', space=vmem, size = 0x300000, scoped, tag = 'input window, operand 1']
    #allocation6 [shape = 's32[2]{0}', space=sflag, size = 0x8, scoped, tag = 'scoped memory for linear_pallas.1']
    #allocation7 [shape = 'u8[8192]{0}', space=vmem, size = 0x2000, scoped, tag = 'input window, operand 2']
    #allocation8 [shape = 'u8[3145728]{0}', space=vmem, size = 0x300000, scoped, tag = 'output window, operand 0']
    %8 = vsyncpa [#allocation3], 0
    %9 = vsyncpa [#allocation6], 0
    %s10 = scalar_lea.sflag [#allocation6], 1
    %11 = vsyncpa %s10, 0
    %12 = vsyncpa [#allocation4], 0
    %s13 = scalar_lea.sflag [#allocation4], 1
    %14 = vsyncpa %s13, 0
    loop: start=0, step=1, limit=5
    $region2: #{linear_pallas.1} parent=1 // loop_pre_header
      _
    $region3: #{linear_pallas.1} parent=1 // loop_header
      %s16 = sphi 0, %s20
      %p17 = scmp.ge.s32.totalorder %s16, 5
      %s24 = sphi 0, %s24
      %s26 = sphi 0, %s24
      %s27 = sphi 0, %s26
      %s41 = sphi 0, %s27
      %s47 = sphi 0, %s49
      %s50 = sphi 0, %s47
      %s51 = sphi 0, %s50
      %s67 = sphi 0, %s51
      %s73 = sphi 0, %s75
      %s76 = sphi 0, %s73
      %s77 = sphi 0, %s76
      %s93 = sphi 0, %s77
      %s99 = sphi 0, %s101
      %s102 = sphi 0, %s99
      %s103 = sphi 0, %s102
      %s119 = sphi 0, %s103
    $region4: #{linear_pallas.1} parent=1 // loop_header_branch
      %19 = sbr.rel (%p17) target = $region8
    $region5: #{linear_pallas.1} parent=1 // loop_body
      %s21 = ssub.s32 %s16, 1
      %s22 = ssub.s32 %s16, 2
      %s23 = sadd.s32 %s16, 1
      %s25 = sadd.s32 %s24, 1
      %p28 = scmp.eq.s32.totalorder %s16, 2
      %p29 = scmp.ne.s32.totalorder %s24, %s26
      %p30 = scmp.eq.s32.totalorder %s16, 0
      %p31 = por %p29, %p30
      %p32 = scmp.ne.s32.totalorder %s24, %s26
      %p33 = scmp.eq.s32.totalorder %s21, 2
      %p34 = por %p32, %p33
      %p35 = scmp.ne.s32.totalorder %s26, %s27
      %p36 = scmp.eq.s32.totalorder %s21, 0
      %p37 = por %p35, %p36
      %p38 = scmp.ne.s32.totalorder %s26, %s27
      %p39 = scmp.eq.s32.totalorder %s22, 2
      %p40 = por %p38, %p39
      %p42 = scmp.ne.s32.totalorder %s27, %s41
      %p43 = scmp.eq.s32.totalorder %s22, 0
      %p44 = por %p42, %p43
      %s45 = ssub.s32 %s16, %s23
      %p46 = scmp.eq.s32.totalorder %s45, 0
      %s48 = sadd.s32 %s47, 1
      %s49 = scalar_select %p46, %s47, %s48
      %p52 = pneg %p46
      %p53 = scmp.eq.s32.totalorder %s16, 2
      %p54 = por %p52, %p53
      %p55 = scmp.ne.s32.totalorder %s47, %s50
      %p56 = scmp.eq.s32.totalorder %s16, 0
      %p57 = por %p55, %p56
      %p58 = scmp.ne.s32.totalorder %s47, %s50
      %p59 = scmp.eq.s32.totalorder %s21, 2
      %p60 = por %p58, %p59
      %p61 = scmp.ne.s32.totalorder %s50, %s51
      %p62 = scmp.eq.s32.totalorder %s21, 0
      %p63 = por %p61, %p62
      %p64 = scmp.ne.s32.totalorder %s50, %s51
      %p65 = scmp.eq.s32.totalorder %s22, 2
      %p66 = por %p64, %p65
      %p68 = scmp.ne.s32.totalorder %s51, %s67
      %p69 = scmp.eq.s32.totalorder %s22, 0
      %p70 = por %p68, %p69
      %s71 = ssub.s32 %s16, %s23
      %p72 = scmp.eq.s32.totalorder %s71, 0
      %s74 = sadd.s32 %s73, 1
      %s75 = scalar_select %p72, %s73, %s74
      %p78 = pneg %p72
      %p79 = scmp.eq.s32.totalorder %s16, 2
      %p80 = por %p78, %p79
      %p81 = scmp.ne.s32.totalorder %s73, %s76
      %p82 = scmp.eq.s32.totalorder %s16, 0
      %p83 = por %p81, %p82
      %p84 = scmp.ne.s32.totalorder %s73, %s76
      %p85 = scmp.eq.s32.totalorder %s21, 2
      %p86 = por %p84, %p85
      %p87 = scmp.ne.s32.totalorder %s76, %s77
      %p88 = scmp.eq.s32.totalorder %s21, 0
      %p89 = por %p87, %p88
      %p90 = scmp.ne.s32.totalorder %s76, %s77
      %p91 = scmp.eq.s32.totalorder %s22, 2
      %p92 = por %p90, %p91
      %p94 = scmp.ne.s32.totalorder %s77, %s93
      %p95 = scmp.eq.s32.totalorder %s22, 0
      %p96 = por %p94, %p95
      %s97 = ssub.s32 %s16, %s23
      %p98 = scmp.eq.s32.totalorder %s97, 0
      %s100 = sadd.s32 %s99, 1
      %s101 = scalar_select %p98, %s99, %s100
      %p104 = pneg %p98
      %p105 = scmp.eq.s32.totalorder %s16, 2
      %p106 = por %p104, %p105
      %p107 = scmp.ne.s32.totalorder %s99, %s102
      %p108 = scmp.eq.s32.totalorder %s16, 0
      %p109 = por %p107, %p108
      %p110 = scmp.ne.s32.totalorder %s99, %s102
      %p111 = scmp.eq.s32.totalorder %s21, 2
      %p112 = por %p110, %p111
      %p113 = scmp.ne.s32.totalorder %s102, %s103
      %p114 = scmp.eq.s32.totalorder %s21, 0
      %p115 = por %p113, %p114
      %p116 = scmp.ne.s32.totalorder %s102, %s103
      %p117 = scmp.eq.s32.totalorder %s22, 2
      %p118 = por %p116, %p117
      %p120 = scmp.ne.s32.totalorder %s103, %s119
      %p121 = scmp.eq.s32.totalorder %s22, 0
      %p122 = por %p120, %p121
      %p123 = scmp.le.s32.totalorder 1, %s16
      %p124 = scmp.lt.s32.totalorder %s16, 4
      %p125 = pnand %p123, %p124
      %p126 = pneg %p125
      // Predicated region
      $region9: #{linear_pallas.1} parent=5 // pred_check
        _
      $region10: #{linear_pallas.1} parent=5 // pred_check_branch
        %128 = sbr.rel (%p125) target = $region12
      $region11: #{linear_pallas.1} parent=5 // pred_region
        %s129 = ssub.s32 %s16, 1
        // Predicated region
        $region13: #{linear_pallas.1} parent=11 // pred_check
          %p130 = pneg %p37
        $region14: #{linear_pallas.1} parent=11 // pred_check_branch
          %132 = sbr.rel (%p130) target = $region16
        $region15: #{linear_pallas.1} parent=11 // pred_region
          %s134 = ssub.s32 36864, 36864
          %135 = vsyncadd [#allocation3], %s134
          %s136 = sshll.u32 [#allocation2], 4
          %s137 = int_to_ptr.vmem [resolvable:$true] %s136
          %142 = dma.hbm_to_vmem [thread:$0]  %s0, 36864, %s137, [#allocation3], 768, 768, 48
        $region16: #{linear_pallas.1} parent=11 // pred_fallthru
          _
      $region12: #{linear_pallas.1} parent=5 // pred_fallthru
        _
      %p143 = scmp.lt.s32.totalorder %s16, 3
      // Predicated region
      $region17: #{linear_pallas.1} parent=5 // pred_check
        %p144 = pneg %p143
      $region18: #{linear_pallas.1} parent=5 // pred_check_branch
        %146 = sbr.rel (%p144) target = $region20
      $region19: #{linear_pallas.1} parent=5 // pred_region
        // Predicated region
        $region21: #{linear_pallas.1} parent=19 // pred_check
          %p147 = pneg %p57
        $region22: #{linear_pallas.1} parent=19 // pred_check_branch
          %149 = sbr.rel (%p147) target = $region24
        $region23: #{linear_pallas.1} parent=19 // pred_region
          %s150 = sand.u32 %s16, 1
          %s151 = scalar_lea.sflag [#allocation6], %s150
          %s152 = sand.u32 %s47, 1
          %s153 = smul.addr %s152, 3072
          %s154 = scalar_lea.vmem [#allocation5], %s153
          %s155 = smul.u32 8, %s16
          %s157 = ssub.s32 49152, 49152
          %158 = vsyncadd %s151, %s157
          %s159 = smul.addr %s155, 64
          %s160 = scalar_lea.hbm %s1, %s159
          %s161 = sshll.u32 %s154, 4
          %s162 = int_to_ptr.vmem [resolvable:$true] %s161
          %167 = dma.hbm_to_vmem [thread:$0]  %s160, 49152, %s162, %s151, 1536, 512, 32
        $region24: #{linear_pallas.1} parent=19 // pred_fallthru
          _
        // Predicated region
        $region25: #{linear_pallas.1} parent=19 // pred_check
          %p168 = pneg %p83
        $region26: #{linear_pallas.1} parent=19 // pred_check_branch
          %170 = sbr.rel (%p168) target = $region28
        $region27: #{linear_pallas.1} parent=19 // pred_region
          %s171 = sand.u32 %s16, 1
          %s172 = scalar_lea.sflag [#allocation6], %s171
          %s173 = sand.u32 %s73, 1
          %s174 = smul.addr %s173, 8
          %s175 = scalar_lea.vmem [#allocation7], %s174
          %s176 = smul.u32 8, %s16
          %s178 = ssub.s32 128, 128
          %179 = vsyncadd %s172, %s178
          %s180 = smul.addr %s176, 16
          %s181 = scalar_lea.hbm %s2, %s180
          %s183 = sshll.u32 %s175, 4
          %s184 = int_to_ptr.vmem [resolvable:$true] %s183
          %186 = dma.hbm_to_vmem [thread:$0]  %s181, 128, %s184, %s172
        $region28: #{linear_pallas.1} parent=19 // pred_fallthru
          _
      $region20: #{linear_pallas.1} parent=5 // pred_fallthru
        _
      %p187 = scmp.le.s32.totalorder 1, %s16
      %p188 = scmp.lt.s32.totalorder %s16, 4
      %p189 = pnand %p187, %p188
      %p190 = pneg %p189
      // Predicated region
      $region29: #{linear_pallas.1} parent=5 // pred_check
        _
      $region30: #{linear_pallas.1} parent=5 // pred_check_branch
        %192 = sbr.rel (%p189) target = $region32
      $region31: #{linear_pallas.1} parent=5 // pred_region
        %s193 = ssub.s32 %s16, 1
        // Predicated region
        $region33: #{linear_pallas.1} parent=31 // pred_check
          %p194 = pneg %p37
        $region34: #{linear_pallas.1} parent=31 // pred_check_branch
          %196 = sbr.rel (%p194) target = $region36
        $region35: #{linear_pallas.1} parent=31 // pred_region
          %197 = dma.done [#allocation3], 36864
        $region36: #{linear_pallas.1} parent=31 // pred_fallthru
          _
        %s198 = sand.u32 %s21, 1
        %s199 = scalar_lea.sflag [#allocation6], %s198
        %s200 = sand.u32 %s50, 1
        %s201 = smul.addr %s200, 3072
        %s202 = scalar_lea.vmem [#allocation5], %s201
        // Predicated region
        $region37: #{linear_pallas.1} parent=31 // pred_check
          %p203 = pneg %p63
        $region38: #{linear_pallas.1} parent=31 // pred_check_branch
          %205 = sbr.rel (%p203) target = $region40
        $region39: #{linear_pallas.1} parent=31 // pred_region
          %206 = dma.done %s199, 49152
        $region40: #{linear_pallas.1} parent=31 // pred_fallthru
          _
        %s207 = sand.u32 %s21, 1
        %s208 = scalar_lea.sflag [#allocation6], %s207
        %s209 = sand.u32 %s76, 1
        %s210 = smul.addr %s209, 8
        %s211 = scalar_lea.vmem [#allocation7], %s210
        // Predicated region
        $region41: #{linear_pallas.1} parent=31 // pred_check
          %p212 = pneg %p89
        $region42: #{linear_pallas.1} parent=31 // pred_check_branch
          %214 = sbr.rel (%p212) target = $region44
        $region43: #{linear_pallas.1} parent=31 // pred_region
          %215 = dma.done %s208, 128
        $region44: #{linear_pallas.1} parent=31 // pred_fallthru
          _
        %p216 = pneg %p37
        %p217 = pneg %p34
        %s218 = sand.u32 %s21, 1
        %s219 = scalar_lea.sflag [#allocation6], %s218
        %s220 = sand.u32 %s50, 1
        %s221 = smul.addr %s220, 3072
        %s222 = scalar_lea.vmem [#allocation5], %s221
        %p223 = pneg %p63
        %p224 = pneg %p60
        %s225 = sand.u32 %s21, 1
        %s226 = scalar_lea.sflag [#allocation6], %s225
        %s227 = sand.u32 %s76, 1
        %s228 = smul.addr %s227, 8
        %s229 = scalar_lea.vmem [#allocation7], %s228
        %p230 = pneg %p89
        %p231 = pneg %p86
        %p232 = pneg %p115
        %p233 = pneg %p112
        %s234 = sand.u32 %s102, 1
        %s235 = scalar_lea.sflag [#allocation4], %s234
        %s236 = sand.u32 %s102, 1
        %s237 = smul.addr %s236, 3072
        %s238 = scalar_lea.vmem [#allocation8], %s237
        %s239 = smul.u32 8, %s21
        %s240 = smul.u32 8, %s21
        %s241 = smul.u32 8, %s21
        %v242 = vld [vmem:[#allocation2] sm:$0xff]
        %v243 = vld [vmem:[#allocation2 + $0x8] sm:$0xff]
        %v244 = vld [vmem:[#allocation2 + $0x10] sm:$0xff]
        %v245 = vld [vmem:[#allocation2 + $0x18] sm:$0xff]
        %v246 = vld [vmem:[#allocation2 + $0x20] sm:$0xff]
        %v247 = vld [vmem:[#allocation2 + $0x28] sm:$0xff]
        %v248 = vld [vmem:[#allocation2 + $0x30] sm:$0xff]
        %v249 = vld [vmem:[#allocation2 + $0x38] sm:$0xff]
        %v250 = vld [vmem:[#allocation2 + $0x40] sm:$0xff]
        %v251 = vld [vmem:[#allocation2 + $0x48] sm:$0xff]
        %v252 = vld [vmem:[#allocation2 + $0x50] sm:$0xff]
        %v253 = vld [vmem:[#allocation2 + $0x58] sm:$0xff]
        %v254 = vld [vmem:[#allocation2 + $0x60] sm:$0xff]
        %v255 = vld [vmem:[#allocation2 + $0x68] sm:$0xff]
        %v256 = vld [vmem:[#allocation2 + $0x70] sm:$0xff]
        %v257 = vld [vmem:[#allocation2 + $0x78] sm:$0xff]
        %v258 = vld [vmem:[#allocation2 + $0x80] sm:$0xff]
        %v259 = vld [vmem:[#allocation2 + $0x88] sm:$0xff]
        %v260 = vld [vmem:[#allocation2 + $0x90] sm:$0xff]
        %v261 = vld [vmem:[#allocation2 + $0x98] sm:$0xff]
        %v262 = vld [vmem:[#allocation2 + $0xa0] sm:$0xff]
        %v263 = vld [vmem:[#allocation2 + $0xa8] sm:$0xff]
        %v264 = vld [vmem:[#allocation2 + $0xb0] sm:$0xff]
        %v265 = vld [vmem:[#allocation2 + $0xb8] sm:$0xff]
        %v266 = vld [vmem:[#allocation2 + $0xc0] sm:$0xff]
        %v267 = vld [vmem:[#allocation2 + $0xc8] sm:$0xff]
        %v268 = vld [vmem:[#allocation2 + $0xd0] sm:$0xff]
        %v269 = vld [vmem:[#allocation2 + $0xd8] sm:$0xff]
        %v270 = vld [vmem:[#allocation2 + $0xe0] sm:$0xff]
        %v271 = vld [vmem:[#allocation2 + $0xe8] sm:$0xff]
        %v272 = vld [vmem:[#allocation2 + $0xf0] sm:$0xff]
        %v273 = vld [vmem:[#allocation2 + $0xf8] sm:$0xff]
        %v274 = vld [vmem:[#allocation2 + $0x100] sm:$0xff]
        %v275 = vld [vmem:[#allocation2 + $0x108] sm:$0xff]
        %v276 = vld [vmem:[#allocation2 + $0x110] sm:$0xff]
        %v277 = vld [vmem:[#allocation2 + $0x118] sm:$0xff]
        %v278 = vld [vmem:[#allocation2 + $0x120] sm:$0xff]
        %v279 = vld [vmem:[#allocation2 + $0x128] sm:$0xff]
        %v280 = vld [vmem:[#allocation2 + $0x130] sm:$0xff]
        %v281 = vld [vmem:[#allocation2 + $0x138] sm:$0xff]
        %v282 = vld [vmem:[#allocation2 + $0x140] sm:$0xff]
        %v283 = vld [vmem:[#allocation2 + $0x148] sm:$0xff]
        %v284 = vld [vmem:[#allocation2 + $0x150] sm:$0xff]
        %v285 = vld [vmem:[#allocation2 + $0x158] sm:$0xff]
        %v286 = vld [vmem:[#allocation2 + $0x160] sm:$0xff]
        %v287 = vld [vmem:[#allocation2 + $0x168] sm:$0xff]
        %v288 = vld [vmem:[#allocation2 + $0x170] sm:$0xff]
        %v289 = vld [vmem:[#allocation2 + $0x178] sm:$0xff]
        %v290 = vld [vmem:[#allocation2 + $0x180] sm:$0xff]
        %v291 = vld [vmem:[#allocation2 + $0x188] sm:$0xff]
        %v292 = vld [vmem:[#allocation2 + $0x190] sm:$0xff]
        %v293 = vld [vmem:[#allocation2 + $0x198] sm:$0xff]
        %v294 = vld [vmem:[#allocation2 + $0x1a0] sm:$0xff]
        %v295 = vld [vmem:[#allocation2 + $0x1a8] sm:$0xff]
        %v296 = vld [vmem:[#allocation2 + $0x1b0] sm:$0xff]
        %v297 = vld [vmem:[#allocation2 + $0x1b8] sm:$0xff]
        %v298 = vld [vmem:[#allocation2 + $0x1c0] sm:$0xff]
        %v299 = vld [vmem:[#allocation2 + $0x1c8] sm:$0xff]
        %v300 = vld [vmem:[#allocation2 + $0x1d0] sm:$0xff]
        %v301 = vld [vmem:[#allocation2 + $0x1d8] sm:$0xff]
        %v302 = vld [vmem:[#allocation2 + $0x1e0] sm:$0xff]
        %v303 = vld [vmem:[#allocation2 + $0x1e8] sm:$0xff]
        %v304 = vld [vmem:[#allocation2 + $0x1f0] sm:$0xff]
        %v305 = vld [vmem:[#allocation2 + $0x1f8] sm:$0xff]
        %v306 = vld [vmem:[#allocation2 + $0x200] sm:$0xff]
        %v307 = vld [vmem:[#allocation2 + $0x208] sm:$0xff]
        %v308 = vld [vmem:[#allocation2 + $0x210] sm:$0xff]
        %v309 = vld [vmem:[#allocation2 + $0x218] sm:$0xff]
        %v310 = vld [vmem:[#allocation2 + $0x220] sm:$0xff]
        %v311 = vld [vmem:[#allocation2 + $0x228] sm:$0xff]
        %v312 = vld [vmem:[#allocation2 + $0x230] sm:$0xff]
        %v313 = vld [vmem:[#allocation2 + $0x238] sm:$0xff]
        %v314 = vld [vmem:[#allocation2 + $0x240] sm:$0xff]
        %v315 = vld [vmem:[#allocation2 + $0x248] sm:$0xff]
        %v316 = vld [vmem:[#allocation2 + $0x250] sm:$0xff]
        %v317 = vld [vmem:[#allocation2 + $0x258] sm:$0xff]
        %v318 = vld [vmem:[#allocation2 + $0x260] sm:$0xff]
        %v319 = vld [vmem:[#allocation2 + $0x268] sm:$0xff]
        %v320 = vld [vmem:[#allocation2 + $0x270] sm:$0xff]
        %v321 = vld [vmem:[#allocation2 + $0x278] sm:$0xff]
        %v322 = vld [vmem:[#allocation2 + $0x280] sm:$0xff]
        %v323 = vld [vmem:[#allocation2 + $0x288] sm:$0xff]
        %v324 = vld [vmem:[#allocation2 + $0x290] sm:$0xff]
        %v325 = vld [vmem:[#allocation2 + $0x298] sm:$0xff]
        %v326 = vld [vmem:[#allocation2 + $0x2a0] sm:$0xff]
        %v327 = vld [vmem:[#allocation2 + $0x2a8] sm:$0xff]
        %v328 = vld [vmem:[#allocation2 + $0x2b0] sm:$0xff]
        %v329 = vld [vmem:[#allocation2 + $0x2b8] sm:$0xff]
        %v330 = vld [vmem:[#allocation2 + $0x2c0] sm:$0xff]
        %v331 = vld [vmem:[#allocation2 + $0x2c8] sm:$0xff]
        %v332 = vld [vmem:[#allocation2 + $0x2d0] sm:$0xff]
        %v333 = vld [vmem:[#allocation2 + $0x2d8] sm:$0xff]
        %v334 = vld [vmem:[#allocation2 + $0x2e0] sm:$0xff]
        %v335 = vld [vmem:[#allocation2 + $0x2e8] sm:$0xff]
        %v336 = vld [vmem:[#allocation2 + $0x2f0] sm:$0xff]
        %v337 = vld [vmem:[#allocation2 + $0x2f8] sm:$0xff]
        %v338 = vld [vmem:[#allocation2 + $0x300] sm:$0xff]
        %v339 = vld [vmem:[#allocation2 + $0x308] sm:$0xff]
        %v340 = vld [vmem:[#allocation2 + $0x310] sm:$0xff]
        %v341 = vld [vmem:[#allocation2 + $0x318] sm:$0xff]
        %v342 = vld [vmem:[#allocation2 + $0x320] sm:$0xff]
        %v343 = vld [vmem:[#allocation2 + $0x328] sm:$0xff]
        %v344 = vld [vmem:[#allocation2 + $0x330] sm:$0xff]
        %v345 = vld [vmem:[#allocation2 + $0x338] sm:$0xff]
        %v346 = vld [vmem:[#allocation2 + $0x340] sm:$0xff]
        %v347 = vld [vmem:[#allocation2 + $0x348] sm:$0xff]
        %v348 = vld [vmem:[#allocation2 + $0x350] sm:$0xff]
        %v349 = vld [vmem:[#allocation2 + $0x358] sm:$0xff]
        %v350 = vld [vmem:[#allocation2 + $0x360] sm:$0xff]
        %v351 = vld [vmem:[#allocation2 + $0x368] sm:$0xff]
        %v352 = vld [vmem:[#allocation2 + $0x370] sm:$0xff]
        %v353 = vld [vmem:[#allocation2 + $0x378] sm:$0xff]
        %v354 = vld [vmem:[#allocation2 + $0x380] sm:$0xff]
        %v355 = vld [vmem:[#allocation2 + $0x388] sm:$0xff]
        %v356 = vld [vmem:[#allocation2 + $0x390] sm:$0xff]
        %v357 = vld [vmem:[#allocation2 + $0x398] sm:$0xff]
        %v358 = vld [vmem:[#allocation2 + $0x3a0] sm:$0xff]
        %v359 = vld [vmem:[#allocation2 + $0x3a8] sm:$0xff]
        %v360 = vld [vmem:[#allocation2 + $0x3b0] sm:$0xff]
        %v361 = vld [vmem:[#allocation2 + $0x3b8] sm:$0xff]
        %v362 = vld [vmem:[#allocation2 + $0x3c0] sm:$0xff]
        %v363 = vld [vmem:[#allocation2 + $0x3c8] sm:$0xff]
        %v364 = vld [vmem:[#allocation2 + $0x3d0] sm:$0xff]
        %v365 = vld [vmem:[#allocation2 + $0x3d8] sm:$0xff]
        %v366 = vld [vmem:[#allocation2 + $0x3e0] sm:$0xff]
        %v367 = vld [vmem:[#allocation2 + $0x3e8] sm:$0xff]
        %v368 = vld [vmem:[#allocation2 + $0x3f0] sm:$0xff]
        %v369 = vld [vmem:[#allocation2 + $0x3f8] sm:$0xff]
        %v370 = vld [vmem:[#allocation2 + $0x400] sm:$0xff]
        %v371 = vld [vmem:[#allocation2 + $0x408] sm:$0xff]
        %v372 = vld [vmem:[#allocation2 + $0x410] sm:$0xff]
        %v373 = vld [vmem:[#allocation2 + $0x418] sm:$0xff]
        %v374 = vld [vmem:[#allocation2 + $0x420] sm:$0xff]
        %v375 = vld [vmem:[#allocation2 + $0x428] sm:$0xff]
        %v376 = vld [vmem:[#allocation2 + $0x430] sm:$0xff]
        %v377 = vld [vmem:[#allocation2 + $0x438] sm:$0xff]
        %v378 = vld [vmem:[#allocation2 + $0x440] sm:$0xff]
        %v379 = vld [vmem:[#allocation2 + $0x448] sm:$0xff]
        %v380 = vld [vmem:[#allocation2 + $0x450] sm:$0xff]
        %v381 = vld [vmem:[#allocation2 + $0x458] sm:$0xff]
        %v382 = vld [vmem:[#allocation2 + $0x460] sm:$0xff]
        %v383 = vld [vmem:[#allocation2 + $0x468] sm:$0xff]
        %v384 = vld [vmem:[#allocation2 + $0x470] sm:$0xff]
        %v385 = vld [vmem:[#allocation2 + $0x478] sm:$0xff]
        %v386 = vld [vmem:[#allocation2 + $0x480] sm:$0xff]
        %v387 = vld [vmem:[#allocation2 + $0x488] sm:$0xff]
        %v388 = vld [vmem:[#allocation2 + $0x490] sm:$0xff]
        %v389 = vld [vmem:[#allocation2 + $0x498] sm:$0xff]
        %v390 = vld [vmem:[#allocation2 + $0x4a0] sm:$0xff]
        %v391 = vld [vmem:[#allocation2 + $0x4a8] sm:$0xff]
        %v392 = vld [vmem:[#allocation2 + $0x4b0] sm:$0xff]
        %v393 = vld [vmem:[#allocation2 + $0x4b8] sm:$0xff]
        %v394 = vld [vmem:[#allocation2 + $0x4c0] sm:$0xff]
        %v395 = vld [vmem:[#allocation2 + $0x4c8] sm:$0xff]
        %v396 = vld [vmem:[#allocation2 + $0x4d0] sm:$0xff]
        %v397 = vld [vmem:[#allocation2 + $0x4d8] sm:$0xff]
        %v398 = vld [vmem:[#allocation2 + $0x4e0] sm:$0xff]
        %v399 = vld [vmem:[#allocation2 + $0x4e8] sm:$0xff]
        %v400 = vld [vmem:[#allocation2 + $0x4f0] sm:$0xff]
        %v401 = vld [vmem:[#allocation2 + $0x4f8] sm:$0xff]
        %v402 = vld [vmem:[#allocation2 + $0x500] sm:$0xff]
        %v403 = vld [vmem:[#allocation2 + $0x508] sm:$0xff]
        %v404 = vld [vmem:[#allocation2 + $0x510] sm:$0xff]
        %v405 = vld [vmem:[#allocation2 + $0x518] sm:$0xff]
        %v406 = vld [vmem:[#allocation2 + $0x520] sm:$0xff]
        %v407 = vld [vmem:[#allocation2 + $0x528] sm:$0xff]
        %v408 = vld [vmem:[#allocation2 + $0x530] sm:$0xff]
        %v409 = vld [vmem:[#allocation2 + $0x538] sm:$0xff]
        %v410 = vld [vmem:[#allocation2 + $0x540] sm:$0xff]
        %v411 = vld [vmem:[#allocation2 + $0x548] sm:$0xff]
        %v412 = vld [vmem:[#allocation2 + $0x550] sm:$0xff]
        %v413 = vld [vmem:[#allocation2 + $0x558] sm:$0xff]
        %v414 = vld [vmem:[#allocation2 + $0x560] sm:$0xff]
        %v415 = vld [vmem:[#allocation2 + $0x568] sm:$0xff]
        %v416 = vld [vmem:[#allocation2 + $0x570] sm:$0xff]
        %v417 = vld [vmem:[#allocation2 + $0x578] sm:$0xff]
        %v418 = vld [vmem:[#allocation2 + $0x580] sm:$0xff]
        %v419 = vld [vmem:[#allocation2 + $0x588] sm:$0xff]
        %v420 = vld [vmem:[#allocation2 + $0x590] sm:$0xff]
        %v421 = vld [vmem:[#allocation2 + $0x598] sm:$0xff]
        %v422 = vld [vmem:[#allocation2 + $0x5a0] sm:$0xff]
        %v423 = vld [vmem:[#allocation2 + $0x5a8] sm:$0xff]
        %v424 = vld [vmem:[#allocation2 + $0x5b0] sm:$0xff]
        %v425 = vld [vmem:[#allocation2 + $0x5b8] sm:$0xff]
        %v426 = vld [vmem:[#allocation2 + $0x5c0] sm:$0xff]
        %v427 = vld [vmem:[#allocation2 + $0x5c8] sm:$0xff]
        %v428 = vld [vmem:[#allocation2 + $0x5d0] sm:$0xff]
        %v429 = vld [vmem:[#allocation2 + $0x5d8] sm:$0xff]
        %v430 = vld [vmem:[#allocation2 + $0x5e0] sm:$0xff]
        %v431 = vld [vmem:[#allocation2 + $0x5e8] sm:$0xff]
        %v432 = vld [vmem:[#allocation2 + $0x5f0] sm:$0xff]
        %v433 = vld [vmem:[#allocation2 + $0x5f8] sm:$0xff]
        %v434 = vld [vmem:[#allocation2 + $0x600] sm:$0xff]
        %v435 = vld [vmem:[#allocation2 + $0x608] sm:$0xff]
        %v436 = vld [vmem:[#allocation2 + $0x610] sm:$0xff]
        %v437 = vld [vmem:[#allocation2 + $0x618] sm:$0xff]
        %v438 = vld [vmem:[#allocation2 + $0x620] sm:$0xff]
        %v439 = vld [vmem:[#allocation2 + $0x628] sm:$0xff]
        %v440 = vld [vmem:[#allocation2 + $0x630] sm:$0xff]
        %v441 = vld [vmem:[#allocation2 + $0x638] sm:$0xff]
        %v442 = vld [vmem:[#allocation2 + $0x640] sm:$0xff]
        %v443 = vld [vmem:[#allocation2 + $0x648] sm:$0xff]
        %v444 = vld [vmem:[#allocation2 + $0x650] sm:$0xff]
        %v445 = vld [vmem:[#allocation2 + $0x658] sm:$0xff]
        %v446 = vld [vmem:[#allocation2 + $0x660] sm:$0xff]
        %v447 = vld [vmem:[#allocation2 + $0x668] sm:$0xff]
        %v448 = vld [vmem:[#allocation2 + $0x670] sm:$0xff]
        %v449 = vld [vmem:[#allocation2 + $0x678] sm:$0xff]
        %v450 = vld [vmem:[#allocation2 + $0x680] sm:$0xff]
        %v451 = vld [vmem:[#allocation2 + $0x688] sm:$0xff]
        %v452 = vld [vmem:[#allocation2 + $0x690] sm:$0xff]
        %v453 = vld [vmem:[#allocation2 + $0x698] sm:$0xff]
        %v454 = vld [vmem:[#allocation2 + $0x6a0] sm:$0xff]
        %v455 = vld [vmem:[#allocation2 + $0x6a8] sm:$0xff]
        %v456 = vld [vmem:[#allocation2 + $0x6b0] sm:$0xff]
        %v457 = vld [vmem:[#allocation2 + $0x6b8] sm:$0xff]
        %v458 = vld [vmem:[#allocation2 + $0x6c0] sm:$0xff]
        %v459 = vld [vmem:[#allocation2 + $0x6c8] sm:$0xff]
        %v460 = vld [vmem:[#allocation2 + $0x6d0] sm:$0xff]
        %v461 = vld [vmem:[#allocation2 + $0x6d8] sm:$0xff]
        %v462 = vld [vmem:[#allocation2 + $0x6e0] sm:$0xff]
        %v463 = vld [vmem:[#allocation2 + $0x6e8] sm:$0xff]
        %v464 = vld [vmem:[#allocation2 + $0x6f0] sm:$0xff]
        %v465 = vld [vmem:[#allocation2 + $0x6f8] sm:$0xff]
        %v466 = vld [vmem:[#allocation2 + $0x700] sm:$0xff]
        %v467 = vld [vmem:[#allocation2 + $0x708] sm:$0xff]
        %v468 = vld [vmem:[#allocation2 + $0x710] sm:$0xff]
        %v469 = vld [vmem:[#allocation2 + $0x718] sm:$0xff]
        %v470 = vld [vmem:[#allocation2 + $0x720] sm:$0xff]
        %v471 = vld [vmem:[#allocation2 + $0x728] sm:$0xff]
        %v472 = vld [vmem:[#allocation2 + $0x730] sm:$0xff]
        %v473 = vld [vmem:[#allocation2 + $0x738] sm:$0xff]
        %v474 = vld [vmem:[#allocation2 + $0x740] sm:$0xff]
        %v475 = vld [vmem:[#allocation2 + $0x748] sm:$0xff]
        %v476 = vld [vmem:[#allocation2 + $0x750] sm:$0xff]
        %v477 = vld [vmem:[#allocation2 + $0x758] sm:$0xff]
        %v478 = vld [vmem:[#allocation2 + $0x760] sm:$0xff]
        %v479 = vld [vmem:[#allocation2 + $0x768] sm:$0xff]
        %v480 = vld [vmem:[#allocation2 + $0x770] sm:$0xff]
        %v481 = vld [vmem:[#allocation2 + $0x778] sm:$0xff]
        %v482 = vld [vmem:[#allocation2 + $0x780] sm:$0xff]
        %v483 = vld [vmem:[#allocation2 + $0x788] sm:$0xff]
        %v484 = vld [vmem:[#allocation2 + $0x790] sm:$0xff]
        %v485 = vld [vmem:[#allocation2 + $0x798] sm:$0xff]
        %v486 = vld [vmem:[#allocation2 + $0x7a0] sm:$0xff]
        %v487 = vld [vmem:[#allocation2 + $0x7a8] sm:$0xff]
        %v488 = vld [vmem:[#allocation2 + $0x7b0] sm:$0xff]
        %v489 = vld [vmem:[#allocation2 + $0x7b8] sm:$0xff]
        %v490 = vld [vmem:[#allocation2 + $0x7c0] sm:$0xff]
        %v491 = vld [vmem:[#allocation2 + $0x7c8] sm:$0xff]
        %v492 = vld [vmem:[#allocation2 + $0x7d0] sm:$0xff]
        %v493 = vld [vmem:[#allocation2 + $0x7d8] sm:$0xff]
        %v494 = vld [vmem:[#allocation2 + $0x7e0] sm:$0xff]
        %v495 = vld [vmem:[#allocation2 + $0x7e8] sm:$0xff]
        %v496 = vld [vmem:[#allocation2 + $0x7f0] sm:$0xff]
        %v497 = vld [vmem:[#allocation2 + $0x7f8] sm:$0xff]
        %v498 = vld [vmem:[#allocation2 + $0x800] sm:$0xff]
        %v499 = vld [vmem:[#allocation2 + $0x808] sm:$0xff]
        %v500 = vld [vmem:[#allocation2 + $0x810] sm:$0xff]
        %v501 = vld [vmem:[#allocation2 + $0x818] sm:$0xff]
        %v502 = vld [vmem:[#allocation2 + $0x820] sm:$0xff]
        %v503 = vld [vmem:[#allocation2 + $0x828] sm:$0xff]
        %v504 = vld [vmem:[#allocation2 + $0x830] sm:$0xff]
        %v505 = vld [vmem:[#allocation2 + $0x838] sm:$0xff]
        %v506 = vld [vmem:[#allocation2 + $0x840] sm:$0xff]
        %v507 = vld [vmem:[#allocation2 + $0x848] sm:$0xff]
        %v508 = vld [vmem:[#allocation2 + $0x850] sm:$0xff]
        %v509 = vld [vmem:[#allocation2 + $0x858] sm:$0xff]
        %v510 = vld [vmem:[#allocation2 + $0x860] sm:$0xff]
        %v511 = vld [vmem:[#allocation2 + $0x868] sm:$0xff]
        %v512 = vld [vmem:[#allocation2 + $0x870] sm:$0xff]
        %v513 = vld [vmem:[#allocation2 + $0x878] sm:$0xff]
        %v514 = vld [vmem:[#allocation2 + $0x880] sm:$0xff]
        %v515 = vld [vmem:[#allocation2 + $0x888] sm:$0xff]
        %v516 = vld [vmem:[#allocation2 + $0x890] sm:$0xff]
        %v517 = vld [vmem:[#allocation2 + $0x898] sm:$0xff]
        %v518 = vld [vmem:[#allocation2 + $0x8a0] sm:$0xff]
        %v519 = vld [vmem:[#allocation2 + $0x8a8] sm:$0xff]
        %v520 = vld [vmem:[#allocation2 + $0x8b0] sm:$0xff]
        %v521 = vld [vmem:[#allocation2 + $0x8b8] sm:$0xff]
        %v522 = vld [vmem:[#allocation2 + $0x8c0] sm:$0xff]
        %v523 = vld [vmem:[#allocation2 + $0x8c8] sm:$0xff]
        %v524 = vld [vmem:[#allocation2 + $0x8d0] sm:$0xff]
        %v525 = vld [vmem:[#allocation2 + $0x8d8] sm:$0xff]
        %v526 = vld [vmem:[#allocation2 + $0x8e0] sm:$0xff]
        %v527 = vld [vmem:[#allocation2 + $0x8e8] sm:$0xff]
        %v528 = vld [vmem:[#allocation2 + $0x8f0] sm:$0xff]
        %v529 = vld [vmem:[#allocation2 + $0x8f8] sm:$0xff]
        %v530 = vpack.c.bf16 %v248, %v242
        %v531 = vpack.c.bf16 %v249, %v243
        %v532 = vpack.c.bf16 %v250, %v244
        %v533 = vpack.c.bf16 %v251, %v245
        %v534 = vpack.c.bf16 %v252, %v246
        %v535 = vpack.c.bf16 %v253, %v247
        %v536 = vpack.c.bf16 %v260, %v254
        %v537 = vpack.c.bf16 %v261, %v255
        %v538 = vpack.c.bf16 %v262, %v256
        %v539 = vpack.c.bf16 %v263, %v257
        %v540 = vpack.c.bf16 %v264, %v258
        %v541 = vpack.c.bf16 %v265, %v259
        %v542 = vpack.c.bf16 %v272, %v266
        %v543 = vpack.c.bf16 %v273, %v267
        %v544 = vpack.c.bf16 %v274, %v268
        %v545 = vpack.c.bf16 %v275, %v269
        %v546 = vpack.c.bf16 %v276, %v270
        %v547 = vpack.c.bf16 %v277, %v271
        %v548 = vpack.c.bf16 %v284, %v278
        %v549 = vpack.c.bf16 %v285, %v279
        %v550 = vpack.c.bf16 %v286, %v280
        %v551 = vpack.c.bf16 %v287, %v281
        %v552 = vpack.c.bf16 %v288, %v282
        %v553 = vpack.c.bf16 %v289, %v283
        %v554 = vpack.c.bf16 %v296, %v290
        %v555 = vpack.c.bf16 %v297, %v291
        %v556 = vpack.c.bf16 %v298, %v292
        %v557 = vpack.c.bf16 %v299, %v293
        %v558 = vpack.c.bf16 %v300, %v294
        %v559 = vpack.c.bf16 %v301, %v295
        %v560 = vpack.c.bf16 %v308, %v302
        %v561 = vpack.c.bf16 %v309, %v303
        %v562 = vpack.c.bf16 %v310, %v304
        %v563 = vpack.c.bf16 %v311, %v305
        %v564 = vpack.c.bf16 %v312, %v306
        %v565 = vpack.c.bf16 %v313, %v307
        %v566 = vpack.c.bf16 %v320, %v314
        %v567 = vpack.c.bf16 %v321, %v315
        %v568 = vpack.c.bf16 %v322, %v316
        %v569 = vpack.c.bf16 %v323, %v317
        %v570 = vpack.c.bf16 %v324, %v318
        %v571 = vpack.c.bf16 %v325, %v319
        %v572 = vpack.c.bf16 %v332, %v326
        %v573 = vpack.c.bf16 %v333, %v327
        %v574 = vpack.c.bf16 %v334, %v328
        %v575 = vpack.c.bf16 %v335, %v329
        %v576 = vpack.c.bf16 %v336, %v330
        %v577 = vpack.c.bf16 %v337, %v331
        %v578 = vpack.c.bf16 %v344, %v338
        %v579 = vpack.c.bf16 %v345, %v339
        %v580 = vpack.c.bf16 %v346, %v340
        %v581 = vpack.c.bf16 %v347, %v341
        %v582 = vpack.c.bf16 %v348, %v342
        %v583 = vpack.c.bf16 %v349, %v343
        %v584 = vpack.c.bf16 %v356, %v350
        %v585 = vpack.c.bf16 %v357, %v351
        %v586 = vpack.c.bf16 %v358, %v352
        %v587 = vpack.c.bf16 %v359, %v353
        %v588 = vpack.c.bf16 %v360, %v354
        %v589 = vpack.c.bf16 %v361, %v355
        %v590 = vpack.c.bf16 %v368, %v362
        %v591 = vpack.c.bf16 %v369, %v363
        %v592 = vpack.c.bf16 %v370, %v364
        %v593 = vpack.c.bf16 %v371, %v365
        %v594 = vpack.c.bf16 %v372, %v366
        %v595 = vpack.c.bf16 %v373, %v367
        %v596 = vpack.c.bf16 %v380, %v374
        %v597 = vpack.c.bf16 %v381, %v375
        %v598 = vpack.c.bf16 %v382, %v376
        %v599 = vpack.c.bf16 %v383, %v377
        %v600 = vpack.c.bf16 %v384, %v378
        %v601 = vpack.c.bf16 %v385, %v379
        %v602 = vpack.c.bf16 %v392, %v386
        %v603 = vpack.c.bf16 %v393, %v387
        %v604 = vpack.c.bf16 %v394, %v388
        %v605 = vpack.c.bf16 %v395, %v389
        %v606 = vpack.c.bf16 %v396, %v390
        %v607 = vpack.c.bf16 %v397, %v391
        %v608 = vpack.c.bf16 %v404, %v398
        %v609 = vpack.c.bf16 %v405, %v399
        %v610 = vpack.c.bf16 %v406, %v400
        %v611 = vpack.c.bf16 %v407, %v401
        %v612 = vpack.c.bf16 %v408, %v402
        %v613 = vpack.c.bf16 %v409, %v403
        %v614 = vpack.c.bf16 %v416, %v410
        %v615 = vpack.c.bf16 %v417, %v411
        %v616 = vpack.c.bf16 %v418, %v412
        %v617 = vpack.c.bf16 %v419, %v413
        %v618 = vpack.c.bf16 %v420, %v414
        %v619 = vpack.c.bf16 %v421, %v415
        %v620 = vpack.c.bf16 %v428, %v422
        %v621 = vpack.c.bf16 %v429, %v423
        %v622 = vpack.c.bf16 %v430, %v424
        %v623 = vpack.c.bf16 %v431, %v425
        %v624 = vpack.c.bf16 %v432, %v426
        %v625 = vpack.c.bf16 %v433, %v427
        %v626 = vpack.c.bf16 %v440, %v434
        %v627 = vpack.c.bf16 %v441, %v435
        %v628 = vpack.c.bf16 %v442, %v436
        %v629 = vpack.c.bf16 %v443, %v437
        %v630 = vpack.c.bf16 %v444, %v438
        %v631 = vpack.c.bf16 %v445, %v439
        %v632 = vpack.c.bf16 %v452, %v446
        %v633 = vpack.c.bf16 %v453, %v447
        %v634 = vpack.c.bf16 %v454, %v448
        %v635 = vpack.c.bf16 %v455, %v449
        %v636 = vpack.c.bf16 %v456, %v450
        %v637 = vpack.c.bf16 %v457, %v451
        %v638 = vpack.c.bf16 %v464, %v458
        %v639 = vpack.c.bf16 %v465, %v459
        %v640 = vpack.c.bf16 %v466, %v460
        %v641 = vpack.c.bf16 %v467, %v461
        %v642 = vpack.c.bf16 %v468, %v462
        %v643 = vpack.c.bf16 %v469, %v463
        %v644 = vpack.c.bf16 %v476, %v470
        %v645 = vpack.c.bf16 %v477, %v471
        %v646 = vpack.c.bf16 %v478, %v472
        %v647 = vpack.c.bf16 %v479, %v473
        %v648 = vpack.c.bf16 %v480, %v474
        %v649 = vpack.c.bf16 %v481, %v475
        %v650 = vpack.c.bf16 %v488, %v482
        %v651 = vpack.c.bf16 %v489, %v483
        %v652 = vpack.c.bf16 %v490, %v484
        %v653 = vpack.c.bf16 %v491, %v485
        %v654 = vpack.c.bf16 %v492, %v486
        %v655 = vpack.c.bf16 %v493, %v487
        %v656 = vpack.c.bf16 %v500, %v494
        %v657 = vpack.c.bf16 %v501, %v495
        %v658 = vpack.c.bf16 %v502, %v496
        %v659 = vpack.c.bf16 %v503, %v497
        %v660 = vpack.c.bf16 %v504, %v498
        %v661 = vpack.c.bf16 %v505, %v499
        %v662 = vpack.c.bf16 %v512, %v506
        %v663 = vpack.c.bf16 %v513, %v507
        %v664 = vpack.c.bf16 %v514, %v508
        %v665 = vpack.c.bf16 %v515, %v509
        %v666 = vpack.c.bf16 %v516, %v510
        %v667 = vpack.c.bf16 %v517, %v511
        %v668 = vpack.c.bf16 %v524, %v518
        %v669 = vpack.c.bf16 %v525, %v519
        %v670 = vpack.c.bf16 %v526, %v520
        %v671 = vpack.c.bf16 %v527, %v521
        %v672 = vpack.c.bf16 %v528, %v522
        %v673 = vpack.c.bf16 %v529, %v523
        %v674 = vld [vmem:[%s202] sm:$0xff]
        %v675 = vld [vmem:[%s202 + $0x8] sm:$0xff]
        %v676 = vld [vmem:[%s202 + $0x10] sm:$0xff]
        %v677 = vld [vmem:[%s202 + $0x18] sm:$0xff]
        %v678 = vld [vmem:[%s202 + $0x20] sm:$0xff]
        %v679 = vld [vmem:[%s202 + $0x28] sm:$0xff]
        %v680 = vld [vmem:[%s202 + $0x30] sm:$0xff]
        %v681 = vld [vmem:[%s202 + $0x38] sm:$0xff]
        %v682 = vld [vmem:[%s202 + $0x40] sm:$0xff]
        %v683 = vld [vmem:[%s202 + $0x48] sm:$0xff]
        %v684 = vld [vmem:[%s202 + $0x50] sm:$0xff]
        %v685 = vld [vmem:[%s202 + $0x58] sm:$0xff]
        %v686 = vld [vmem:[%s202 + $0x60] sm:$0xff]
        %v687 = vld [vmem:[%s202 + $0x68] sm:$0xff]
        %v688 = vld [vmem:[%s202 + $0x70] sm:$0xff]
        %v689 = vld [vmem:[%s202 + $0x78] sm:$0xff]
        %v690 = vld [vmem:[%s202 + $0x80] sm:$0xff]
        %v691 = vld [vmem:[%s202 + $0x88] sm:$0xff]
        %v692 = vld [vmem:[%s202 + $0x90] sm:$0xff]
        %v693 = vld [vmem:[%s202 + $0x98] sm:$0xff]
        %v694 = vld [vmem:[%s202 + $0xa0] sm:$0xff]
        %v695 = vld [vmem:[%s202 + $0xa8] sm:$0xff]
        %v696 = vld [vmem:[%s202 + $0xb0] sm:$0xff]
        %v697 = vld [vmem:[%s202 + $0xb8] sm:$0xff]
        %v698 = vld [vmem:[%s202 + $0xc0] sm:$0xff]
        %v699 = vld [vmem:[%s202 + $0xc8] sm:$0xff]
        %v700 = vld [vmem:[%s202 + $0xd0] sm:$0xff]
        %v701 = vld [vmem:[%s202 + $0xd8] sm:$0xff]
        %v702 = vld [vmem:[%s202 + $0xe0] sm:$0xff]
        %v703 = vld [vmem:[%s202 + $0xe8] sm:$0xff]
        %v704 = vld [vmem:[%s202 + $0xf0] sm:$0xff]
        %v705 = vld [vmem:[%s202 + $0xf8] sm:$0xff]
        %v706 = vld [vmem:[%s202 + $0x100] sm:$0xff]
        %v707 = vld [vmem:[%s202 + $0x108] sm:$0xff]
        %v708 = vld [vmem:[%s202 + $0x110] sm:$0xff]
        %v709 = vld [vmem:[%s202 + $0x118] sm:$0xff]
        %v710 = vld [vmem:[%s202 + $0x120] sm:$0xff]
        %v711 = vld [vmem:[%s202 + $0x128] sm:$0xff]
        %v712 = vld [vmem:[%s202 + $0x130] sm:$0xff]
        %v713 = vld [vmem:[%s202 + $0x138] sm:$0xff]
        %v714 = vld [vmem:[%s202 + $0x140] sm:$0xff]
        %v715 = vld [vmem:[%s202 + $0x148] sm:$0xff]
        %v716 = vld [vmem:[%s202 + $0x150] sm:$0xff]
        %v717 = vld [vmem:[%s202 + $0x158] sm:$0xff]
        %v718 = vld [vmem:[%s202 + $0x160] sm:$0xff]
        %v719 = vld [vmem:[%s202 + $0x168] sm:$0xff]
        %v720 = vld [vmem:[%s202 + $0x170] sm:$0xff]
        %v721 = vld [vmem:[%s202 + $0x178] sm:$0xff]
        %v722 = vld [vmem:[%s202 + $0x180] sm:$0xff]
        %v723 = vld [vmem:[%s202 + $0x188] sm:$0xff]
        %v724 = vld [vmem:[%s202 + $0x190] sm:$0xff]
        %v725 = vld [vmem:[%s202 + $0x198] sm:$0xff]
        %v726 = vld [vmem:[%s202 + $0x1a0] sm:$0xff]
        %v727 = vld [vmem:[%s202 + $0x1a8] sm:$0xff]
        %v728 = vld [vmem:[%s202 + $0x1b0] sm:$0xff]
        %v729 = vld [vmem:[%s202 + $0x1b8] sm:$0xff]
        %v730 = vld [vmem:[%s202 + $0x1c0] sm:$0xff]
        %v731 = vld [vmem:[%s202 + $0x1c8] sm:$0xff]
        %v732 = vld [vmem:[%s202 + $0x1d0] sm:$0xff]
        %v733 = vld [vmem:[%s202 + $0x1d8] sm:$0xff]
        %v734 = vld [vmem:[%s202 + $0x1e0] sm:$0xff]
        %v735 = vld [vmem:[%s202 + $0x1e8] sm:$0xff]
        %v736 = vld [vmem:[%s202 + $0x1f0] sm:$0xff]
        %v737 = vld [vmem:[%s202 + $0x1f8] sm:$0xff]
        %v738 = vld [vmem:[%s202 + $0x200] sm:$0xff]
        %v739 = vld [vmem:[%s202 + $0x208] sm:$0xff]
        %v740 = vld [vmem:[%s202 + $0x210] sm:$0xff]
        %v741 = vld [vmem:[%s202 + $0x218] sm:$0xff]
        %v742 = vld [vmem:[%s202 + $0x220] sm:$0xff]
        %v743 = vld [vmem:[%s202 + $0x228] sm:$0xff]
        %v744 = vld [vmem:[%s202 + $0x230] sm:$0xff]
        %v745 = vld [vmem:[%s202 + $0x238] sm:$0xff]
        %v746 = vld [vmem:[%s202 + $0x240] sm:$0xff]
        %v747 = vld [vmem:[%s202 + $0x248] sm:$0xff]
        %v748 = vld [vmem:[%s202 + $0x250] sm:$0xff]
        %v749 = vld [vmem:[%s202 + $0x258] sm:$0xff]
        %v750 = vld [vmem:[%s202 + $0x260] sm:$0xff]
        %v751 = vld [vmem:[%s202 + $0x268] sm:$0xff]
        %v752 = vld [vmem:[%s202 + $0x270] sm:$0xff]
        %v753 = vld [vmem:[%s202 + $0x278] sm:$0xff]
        %v754 = vld [vmem:[%s202 + $0x280] sm:$0xff]
        %v755 = vld [vmem:[%s202 + $0x288] sm:$0xff]
        %v756 = vld [vmem:[%s202 + $0x290] sm:$0xff]
        %v757 = vld [vmem:[%s202 + $0x298] sm:$0xff]
        %v758 = vld [vmem:[%s202 + $0x2a0] sm:$0xff]
        %v759 = vld [vmem:[%s202 + $0x2a8] sm:$0xff]
        %v760 = vld [vmem:[%s202 + $0x2b0] sm:$0xff]
        %v761 = vld [vmem:[%s202 + $0x2b8] sm:$0xff]
        %v762 = vld [vmem:[%s202 + $0x2c0] sm:$0xff]
        %v763 = vld [vmem:[%s202 + $0x2c8] sm:$0xff]
        %v764 = vld [vmem:[%s202 + $0x2d0] sm:$0xff]
        %v765 = vld [vmem:[%s202 + $0x2d8] sm:$0xff]
        %v766 = vld [vmem:[%s202 + $0x2e0] sm:$0xff]
        %v767 = vld [vmem:[%s202 + $0x2e8] sm:$0xff]
        %v768 = vld [vmem:[%s202 + $0x2f0] sm:$0xff]
        %v769 = vld [vmem:[%s202 + $0x2f8] sm:$0xff]
        %v770 = vld [vmem:[%s202 + $0x300] sm:$0xff]
        %v771 = vld [vmem:[%s202 + $0x308] sm:$0xff]
        %v772 = vld [vmem:[%s202 + $0x310] sm:$0xff]
        %v773 = vld [vmem:[%s202 + $0x318] sm:$0xff]
        %v774 = vld [vmem:[%s202 + $0x320] sm:$0xff]
        %v775 = vld [vmem:[%s202 + $0x328] sm:$0xff]
        %v776 = vld [vmem:[%s202 + $0x330] sm:$0xff]
        %v777 = vld [vmem:[%s202 + $0x338] sm:$0xff]
        %v778 = vld [vmem:[%s202 + $0x340] sm:$0xff]
        %v779 = vld [vmem:[%s202 + $0x348] sm:$0xff]
        %v780 = vld [vmem:[%s202 + $0x350] sm:$0xff]
        %v781 = vld [vmem:[%s202 + $0x358] sm:$0xff]
        %v782 = vld [vmem:[%s202 + $0x360] sm:$0xff]
        %v783 = vld [vmem:[%s202 + $0x368] sm:$0xff]
        %v784 = vld [vmem:[%s202 + $0x370] sm:$0xff]
        %v785 = vld [vmem:[%s202 + $0x378] sm:$0xff]
        %v786 = vld [vmem:[%s202 + $0x380] sm:$0xff]
        %v787 = vld [vmem:[%s202 + $0x388] sm:$0xff]
        %v788 = vld [vmem:[%s202 + $0x390] sm:$0xff]
        %v789 = vld [vmem:[%s202 + $0x398] sm:$0xff]
        %v790 = vld [vmem:[%s202 + $0x3a0] sm:$0xff]
        %v791 = vld [vmem:[%s202 + $0x3a8] sm:$0xff]
        %v792 = vld [vmem:[%s202 + $0x3b0] sm:$0xff]
        %v793 = vld [vmem:[%s202 + $0x3b8] sm:$0xff]
        %v794 = vld [vmem:[%s202 + $0x3c0] sm:$0xff]
        %v795 = vld [vmem:[%s202 + $0x3c8] sm:$0xff]
        %v796 = vld [vmem:[%s202 + $0x3d0] sm:$0xff]
        %v797 = vld [vmem:[%s202 + $0x3d8] sm:$0xff]
        %v798 = vld [vmem:[%s202 + $0x3e0] sm:$0xff]
        %v799 = vld [vmem:[%s202 + $0x3e8] sm:$0xff]
        %v800 = vld [vmem:[%s202 + $0x3f0] sm:$0xff]
        %v801 = vld [vmem:[%s202 + $0x3f8] sm:$0xff]
        %v802 = vld [vmem:[%s202 + $0x400] sm:$0xff]
        %v803 = vld [vmem:[%s202 + $0x408] sm:$0xff]
        %v804 = vld [vmem:[%s202 + $0x410] sm:$0xff]
        %v805 = vld [vmem:[%s202 + $0x418] sm:$0xff]
        %v806 = vld [vmem:[%s202 + $0x420] sm:$0xff]
        %v807 = vld [vmem:[%s202 + $0x428] sm:$0xff]
        %v808 = vld [vmem:[%s202 + $0x430] sm:$0xff]
        %v809 = vld [vmem:[%s202 + $0x438] sm:$0xff]
        %v810 = vld [vmem:[%s202 + $0x440] sm:$0xff]
        %v811 = vld [vmem:[%s202 + $0x448] sm:$0xff]
        %v812 = vld [vmem:[%s202 + $0x450] sm:$0xff]
        %v813 = vld [vmem:[%s202 + $0x458] sm:$0xff]
        %v814 = vld [vmem:[%s202 + $0x460] sm:$0xff]
        %v815 = vld [vmem:[%s202 + $0x468] sm:$0xff]
        %v816 = vld [vmem:[%s202 + $0x470] sm:$0xff]
        %v817 = vld [vmem:[%s202 + $0x478] sm:$0xff]
        %v818 = vld [vmem:[%s202 + $0x480] sm:$0xff]
        %v819 = vld [vmem:[%s202 + $0x488] sm:$0xff]
        %v820 = vld [vmem:[%s202 + $0x490] sm:$0xff]
        %v821 = vld [vmem:[%s202 + $0x498] sm:$0xff]
        %v822 = vld [vmem:[%s202 + $0x4a0] sm:$0xff]
        %v823 = vld [vmem:[%s202 + $0x4a8] sm:$0xff]
        %v824 = vld [vmem:[%s202 + $0x4b0] sm:$0xff]
        %v825 = vld [vmem:[%s202 + $0x4b8] sm:$0xff]
        %v826 = vld [vmem:[%s202 + $0x4c0] sm:$0xff]
        %v827 = vld [vmem:[%s202 + $0x4c8] sm:$0xff]
        %v828 = vld [vmem:[%s202 + $0x4d0] sm:$0xff]
        %v829 = vld [vmem:[%s202 + $0x4d8] sm:$0xff]
        %v830 = vld [vmem:[%s202 + $0x4e0] sm:$0xff]
        %v831 = vld [vmem:[%s202 + $0x4e8] sm:$0xff]
        %v832 = vld [vmem:[%s202 + $0x4f0] sm:$0xff]
        %v833 = vld [vmem:[%s202 + $0x4f8] sm:$0xff]
        %v834 = vld [vmem:[%s202 + $0x500] sm:$0xff]
        %v835 = vld [vmem:[%s202 + $0x508] sm:$0xff]
        %v836 = vld [vmem:[%s202 + $0x510] sm:$0xff]
        %v837 = vld [vmem:[%s202 + $0x518] sm:$0xff]
        %v838 = vld [vmem:[%s202 + $0x520] sm:$0xff]
        %v839 = vld [vmem:[%s202 + $0x528] sm:$0xff]
        %v840 = vld [vmem:[%s202 + $0x530] sm:$0xff]
        %v841 = vld [vmem:[%s202 + $0x538] sm:$0xff]
        %v842 = vld [vmem:[%s202 + $0x540] sm:$0xff]
        %v843 = vld [vmem:[%s202 + $0x548] sm:$0xff]
        %v844 = vld [vmem:[%s202 + $0x550] sm:$0xff]
        %v845 = vld [vmem:[%s202 + $0x558] sm:$0xff]
        %v846 = vld [vmem:[%s202 + $0x560] sm:$0xff]
        %v847 = vld [vmem:[%s202 + $0x568] sm:$0xff]
        %v848 = vld [vmem:[%s202 + $0x570] sm:$0xff]
        %v849 = vld [vmem:[%s202 + $0x578] sm:$0xff]
        %v850 = vld [vmem:[%s202 + $0x580] sm:$0xff]
        %v851 = vld [vmem:[%s202 + $0x588] sm:$0xff]
        %v852 = vld [vmem:[%s202 + $0x590] sm:$0xff]
        %v853 = vld [vmem:[%s202 + $0x598] sm:$0xff]
        %v854 = vld [vmem:[%s202 + $0x5a0] sm:$0xff]
        %v855 = vld [vmem:[%s202 + $0x5a8] sm:$0xff]
        %v856 = vld [vmem:[%s202 + $0x5b0] sm:$0xff]
        %v857 = vld [vmem:[%s202 + $0x5b8] sm:$0xff]
        %v858 = vld [vmem:[%s202 + $0x5c0] sm:$0xff]
        %v859 = vld [vmem:[%s202 + $0x5c8] sm:$0xff]
        %v860 = vld [vmem:[%s202 + $0x5d0] sm:$0xff]
        %v861 = vld [vmem:[%s202 + $0x5d8] sm:$0xff]
        %v862 = vld [vmem:[%s202 + $0x5e0] sm:$0xff]
        %v863 = vld [vmem:[%s202 + $0x5e8] sm:$0xff]
        %v864 = vld [vmem:[%s202 + $0x5f0] sm:$0xff]
        %v865 = vld [vmem:[%s202 + $0x5f8] sm:$0xff]
        %v866 = vld [vmem:[%s202 + $0x600] sm:$0xff]
        %v867 = vld [vmem:[%s202 + $0x608] sm:$0xff]
        %v868 = vld [vmem:[%s202 + $0x610] sm:$0xff]
        %v869 = vld [vmem:[%s202 + $0x618] sm:$0xff]
        %v870 = vld [vmem:[%s202 + $0x620] sm:$0xff]
        %v871 = vld [vmem:[%s202 + $0x628] sm:$0xff]
        %v872 = vld [vmem:[%s202 + $0x630] sm:$0xff]
        %v873 = vld [vmem:[%s202 + $0x638] sm:$0xff]
        %v874 = vld [vmem:[%s202 + $0x640] sm:$0xff]
        %v875 = vld [vmem:[%s202 + $0x648] sm:$0xff]
        %v876 = vld [vmem:[%s202 + $0x650] sm:$0xff]
        %v877 = vld [vmem:[%s202 + $0x658] sm:$0xff]
        %v878 = vld [vmem:[%s202 + $0x660] sm:$0xff]
        %v879 = vld [vmem:[%s202 + $0x668] sm:$0xff]
        %v880 = vld [vmem:[%s202 + $0x670] sm:$0xff]
        %v881 = vld [vmem:[%s202 + $0x678] sm:$0xff]
        %v882 = vld [vmem:[%s202 + $0x680] sm:$0xff]
        %v883 = vld [vmem:[%s202 + $0x688] sm:$0xff]
        %v884 = vld [vmem:[%s202 + $0x690] sm:$0xff]
        %v885 = vld [vmem:[%s202 + $0x698] sm:$0xff]
        %v886 = vld [vmem:[%s202 + $0x6a0] sm:$0xff]
        %v887 = vld [vmem:[%s202 + $0x6a8] sm:$0xff]
        %v888 = vld [vmem:[%s202 + $0x6b0] sm:$0xff]
        %v889 = vld [vmem:[%s202 + $0x6b8] sm:$0xff]
        %v890 = vld [vmem:[%s202 + $0x6c0] sm:$0xff]
        %v891 = vld [vmem:[%s202 + $0x6c8] sm:$0xff]
        %v892 = vld [vmem:[%s202 + $0x6d0] sm:$0xff]
        %v893 = vld [vmem:[%s202 + $0x6d8] sm:$0xff]
        %v894 = vld [vmem:[%s202 + $0x6e0] sm:$0xff]
        %v895 = vld [vmem:[%s202 + $0x6e8] sm:$0xff]
        %v896 = vld [vmem:[%s202 + $0x6f0] sm:$0xff]
        %v897 = vld [vmem:[%s202 + $0x6f8] sm:$0xff]
        %v898 = vld [vmem:[%s202 + $0x700] sm:$0xff]
        %v899 = vld [vmem:[%s202 + $0x708] sm:$0xff]
        %v900 = vld [vmem:[%s202 + $0x710] sm:$0xff]
        %v901 = vld [vmem:[%s202 + $0x718] sm:$0xff]
        %v902 = vld [vmem:[%s202 + $0x720] sm:$0xff]
        %v903 = vld [vmem:[%s202 + $0x728] sm:$0xff]
        %v904 = vld [vmem:[%s202 + $0x730] sm:$0xff]
        %v905 = vld [vmem:[%s202 + $0x738] sm:$0xff]
        %v906 = vld [vmem:[%s202 + $0x740] sm:$0xff]
        %v907 = vld [vmem:[%s202 + $0x748] sm:$0xff]
        %v908 = vld [vmem:[%s202 + $0x750] sm:$0xff]
        %v909 = vld [vmem:[%s202 + $0x758] sm:$0xff]
        %v910 = vld [vmem:[%s202 + $0x760] sm:$0xff]
        %v911 = vld [vmem:[%s202 + $0x768] sm:$0xff]
        %v912 = vld [vmem:[%s202 + $0x770] sm:$0xff]
        %v913 = vld [vmem:[%s202 + $0x778] sm:$0xff]
        %v914 = vld [vmem:[%s202 + $0x780] sm:$0xff]
        %v915 = vld [vmem:[%s202 + $0x788] sm:$0xff]
        %v916 = vld [vmem:[%s202 + $0x790] sm:$0xff]
        %v917 = vld [vmem:[%s202 + $0x798] sm:$0xff]
        %v918 = vld [vmem:[%s202 + $0x7a0] sm:$0xff]
        %v919 = vld [vmem:[%s202 + $0x7a8] sm:$0xff]
        %v920 = vld [vmem:[%s202 + $0x7b0] sm:$0xff]
        %v921 = vld [vmem:[%s202 + $0x7b8] sm:$0xff]
        %v922 = vld [vmem:[%s202 + $0x7c0] sm:$0xff]
        %v923 = vld [vmem:[%s202 + $0x7c8] sm:$0xff]
        %v924 = vld [vmem:[%s202 + $0x7d0] sm:$0xff]
        %v925 = vld [vmem:[%s202 + $0x7d8] sm:$0xff]
        %v926 = vld [vmem:[%s202 + $0x7e0] sm:$0xff]
        %v927 = vld [vmem:[%s202 + $0x7e8] sm:$0xff]
        %v928 = vld [vmem:[%s202 + $0x7f0] sm:$0xff]
        %v929 = vld [vmem:[%s202 + $0x7f8] sm:$0xff]
        %v930 = vld [vmem:[%s202 + $0x800] sm:$0xff]
        %v931 = vld [vmem:[%s202 + $0x808] sm:$0xff]
        %v932 = vld [vmem:[%s202 + $0x810] sm:$0xff]
        %v933 = vld [vmem:[%s202 + $0x818] sm:$0xff]
        %v934 = vld [vmem:[%s202 + $0x820] sm:$0xff]
        %v935 = vld [vmem:[%s202 + $0x828] sm:$0xff]
        %v936 = vld [vmem:[%s202 + $0x830] sm:$0xff]
        %v937 = vld [vmem:[%s202 + $0x838] sm:$0xff]
        %v938 = vld [vmem:[%s202 + $0x840] sm:$0xff]
        %v939 = vld [vmem:[%s202 + $0x848] sm:$0xff]
        %v940 = vld [vmem:[%s202 + $0x850] sm:$0xff]
        %v941 = vld [vmem:[%s202 + $0x858] sm:$0xff]
        %v942 = vld [vmem:[%s202 + $0x860] sm:$0xff]
        %v943 = vld [vmem:[%s202 + $0x868] sm:$0xff]
        %v944 = vld [vmem:[%s202 + $0x870] sm:$0xff]
        %v945 = vld [vmem:[%s202 + $0x878] sm:$0xff]
        %v946 = vld [vmem:[%s202 + $0x880] sm:$0xff]
        %v947 = vld [vmem:[%s202 + $0x888] sm:$0xff]
        %v948 = vld [vmem:[%s202 + $0x890] sm:$0xff]
        %v949 = vld [vmem:[%s202 + $0x898] sm:$0xff]
        %v950 = vld [vmem:[%s202 + $0x8a0] sm:$0xff]
        %v951 = vld [vmem:[%s202 + $0x8a8] sm:$0xff]
        %v952 = vld [vmem:[%s202 + $0x8b0] sm:$0xff]
        %v953 = vld [vmem:[%s202 + $0x8b8] sm:$0xff]
        %v954 = vld [vmem:[%s202 + $0x8c0] sm:$0xff]
        %v955 = vld [vmem:[%s202 + $0x8c8] sm:$0xff]
        %v956 = vld [vmem:[%s202 + $0x8d0] sm:$0xff]
        %v957 = vld [vmem:[%s202 + $0x8d8] sm:$0xff]
        %v958 = vld [vmem:[%s202 + $0x8e0] sm:$0xff]
        %v959 = vld [vmem:[%s202 + $0x8e8] sm:$0xff]
        %v960 = vld [vmem:[%s202 + $0x8f0] sm:$0xff]
        %v961 = vld [vmem:[%s202 + $0x8f8] sm:$0xff]
        %v962 = vld [vmem:[%s202 + $0x900] sm:$0xff]
        %v963 = vld [vmem:[%s202 + $0x908] sm:$0xff]
        %v964 = vld [vmem:[%s202 + $0x910] sm:$0xff]
        %v965 = vld [vmem:[%s202 + $0x918] sm:$0xff]
        %v966 = vld [vmem:[%s202 + $0x920] sm:$0xff]
        %v967 = vld [vmem:[%s202 + $0x928] sm:$0xff]
        %v968 = vld [vmem:[%s202 + $0x930] sm:$0xff]
        %v969 = vld [vmem:[%s202 + $0x938] sm:$0xff]
        %v970 = vld [vmem:[%s202 + $0x940] sm:$0xff]
        %v971 = vld [vmem:[%s202 + $0x948] sm:$0xff]
        %v972 = vld [vmem:[%s202 + $0x950] sm:$0xff]
        %v973 = vld [vmem:[%s202 + $0x958] sm:$0xff]
        %v974 = vld [vmem:[%s202 + $0x960] sm:$0xff]
        %v975 = vld [vmem:[%s202 + $0x968] sm:$0xff]
        %v976 = vld [vmem:[%s202 + $0x970] sm:$0xff]
        %v977 = vld [vmem:[%s202 + $0x978] sm:$0xff]
        %v978 = vld [vmem:[%s202 + $0x980] sm:$0xff]
        %v979 = vld [vmem:[%s202 + $0x988] sm:$0xff]
        %v980 = vld [vmem:[%s202 + $0x990] sm:$0xff]
        %v981 = vld [vmem:[%s202 + $0x998] sm:$0xff]
        %v982 = vld [vmem:[%s202 + $0x9a0] sm:$0xff]
        %v983 = vld [vmem:[%s202 + $0x9a8] sm:$0xff]
        %v984 = vld [vmem:[%s202 + $0x9b0] sm:$0xff]
        %v985 = vld [vmem:[%s202 + $0x9b8] sm:$0xff]
        %v986 = vld [vmem:[%s202 + $0x9c0] sm:$0xff]
        %v987 = vld [vmem:[%s202 + $0x9c8] sm:$0xff]
        %v988 = vld [vmem:[%s202 + $0x9d0] sm:$0xff]
        %v989 = vld [vmem:[%s202 + $0x9d8] sm:$0xff]
        %v990 = vld [vmem:[%s202 + $0x9e0] sm:$0xff]
        %v991 = vld [vmem:[%s202 + $0x9e8] sm:$0xff]
        %v992 = vld [vmem:[%s202 + $0x9f0] sm:$0xff]
        %v993 = vld [vmem:[%s202 + $0x9f8] sm:$0xff]
        %v994 = vld [vmem:[%s202 + $0xa00] sm:$0xff]
        %v995 = vld [vmem:[%s202 + $0xa08] sm:$0xff]
        %v996 = vld [vmem:[%s202 + $0xa10] sm:$0xff]
        %v997 = vld [vmem:[%s202 + $0xa18] sm:$0xff]
        %v998 = vld [vmem:[%s202 + $0xa20] sm:$0xff]
        %v999 = vld [vmem:[%s202 + $0xa28] sm:$0xff]
        %v1000 = vld [vmem:[%s202 + $0xa30] sm:$0xff]
        %v1001 = vld [vmem:[%s202 + $0xa38] sm:$0xff]
        %v1002 = vld [vmem:[%s202 + $0xa40] sm:$0xff]
        %v1003 = vld [vmem:[%s202 + $0xa48] sm:$0xff]
        %v1004 = vld [vmem:[%s202 + $0xa50] sm:$0xff]
        %v1005 = vld [vmem:[%s202 + $0xa58] sm:$0xff]
        %v1006 = vld [vmem:[%s202 + $0xa60] sm:$0xff]
        %v1007 = vld [vmem:[%s202 + $0xa68] sm:$0xff]
        %v1008 = vld [vmem:[%s202 + $0xa70] sm:$0xff]
        %v1009 = vld [vmem:[%s202 + $0xa78] sm:$0xff]
        %v1010 = vld [vmem:[%s202 + $0xa80] sm:$0xff]
        %v1011 = vld [vmem:[%s202 + $0xa88] sm:$0xff]
        %v1012 = vld [vmem:[%s202 + $0xa90] sm:$0xff]
        %v1013 = vld [vmem:[%s202 + $0xa98] sm:$0xff]
        %v1014 = vld [vmem:[%s202 + $0xaa0] sm:$0xff]
        %v1015 = vld [vmem:[%s202 + $0xaa8] sm:$0xff]
        %v1016 = vld [vmem:[%s202 + $0xab0] sm:$0xff]
        %v1017 = vld [vmem:[%s202 + $0xab8] sm:$0xff]
        %v1018 = vld [vmem:[%s202 + $0xac0] sm:$0xff]
        %v1019 = vld [vmem:[%s202 + $0xac8] sm:$0xff]
        %v1020 = vld [vmem:[%s202 + $0xad0] sm:$0xff]
        %v1021 = vld [vmem:[%s202 + $0xad8] sm:$0xff]
        %v1022 = vld [vmem:[%s202 + $0xae0] sm:$0xff]
        %v1023 = vld [vmem:[%s202 + $0xae8] sm:$0xff]
        %v1024 = vld [vmem:[%s202 + $0xaf0] sm:$0xff]
        %v1025 = vld [vmem:[%s202 + $0xaf8] sm:$0xff]
        %v1026 = vld [vmem:[%s202 + $0xb00] sm:$0xff]
        %v1027 = vld [vmem:[%s202 + $0xb08] sm:$0xff]
        %v1028 = vld [vmem:[%s202 + $0xb10] sm:$0xff]
        %v1029 = vld [vmem:[%s202 + $0xb18] sm:$0xff]
        %v1030 = vld [vmem:[%s202 + $0xb20] sm:$0xff]
        %v1031 = vld [vmem:[%s202 + $0xb28] sm:$0xff]
        %v1032 = vld [vmem:[%s202 + $0xb30] sm:$0xff]
        %v1033 = vld [vmem:[%s202 + $0xb38] sm:$0xff]
        %v1034 = vld [vmem:[%s202 + $0xb40] sm:$0xff]
        %v1035 = vld [vmem:[%s202 + $0xb48] sm:$0xff]
        %v1036 = vld [vmem:[%s202 + $0xb50] sm:$0xff]
        %v1037 = vld [vmem:[%s202 + $0xb58] sm:$0xff]
        %v1038 = vld [vmem:[%s202 + $0xb60] sm:$0xff]
        %v1039 = vld [vmem:[%s202 + $0xb68] sm:$0xff]
        %v1040 = vld [vmem:[%s202 + $0xb70] sm:$0xff]
        %v1041 = vld [vmem:[%s202 + $0xb78] sm:$0xff]
        %v1042 = vld [vmem:[%s202 + $0xb80] sm:$0xff]
        %v1043 = vld [vmem:[%s202 + $0xb88] sm:$0xff]
        %v1044 = vld [vmem:[%s202 + $0xb90] sm:$0xff]
        %v1045 = vld [vmem:[%s202 + $0xb98] sm:$0xff]
        %v1046 = vld [vmem:[%s202 + $0xba0] sm:$0xff]
        %v1047 = vld [vmem:[%s202 + $0xba8] sm:$0xff]
        %v1048 = vld [vmem:[%s202 + $0xbb0] sm:$0xff]
        %v1049 = vld [vmem:[%s202 + $0xbb8] sm:$0xff]
        %v1050 = vld [vmem:[%s202 + $0xbc0] sm:$0xff]
        %v1051 = vld [vmem:[%s202 + $0xbc8] sm:$0xff]
        %v1052 = vld [vmem:[%s202 + $0xbd0] sm:$0xff]
        %v1053 = vld [vmem:[%s202 + $0xbd8] sm:$0xff]
        %v1054 = vld [vmem:[%s202 + $0xbe0] sm:$0xff]
        %v1055 = vld [vmem:[%s202 + $0xbe8] sm:$0xff]
        %v1056 = vld [vmem:[%s202 + $0xbf0] sm:$0xff]
        %v1057 = vld [vmem:[%s202 + $0xbf8] sm:$0xff]
        %v1058 = vld [vmem:[%s211] sm:$0xff]
        %v1060 = vlaneseq
        %v1061 = vshrl.u32 %v1060, 7
        %v1062 = vsub.s32 0, %v1061
        %v1063 = vrot.slane %v1058, %v1062
        %v1064 = vlaneseq
        %v1065 = vshrl.u32 %v1064, 7
        %v1066 = vsub.s32 1, %v1065
        %v1067 = vrot.slane %v1058, %v1066
        %v1068 = vlaneseq
        %v1069 = vshrl.u32 %v1068, 7
        %v1070 = vsub.s32 2, %v1069
        %v1071 = vrot.slane %v1058, %v1070
        %v1072 = vlaneseq
        %v1073 = vshrl.u32 %v1072, 7
        %v1074 = vsub.s32 3, %v1073
        %v1075 = vrot.slane %v1058, %v1074
        %v1076 = vlaneseq
        %v1077 = vshrl.u32 %v1076, 7
        %v1078 = vsub.s32 4, %v1077
        %v1079 = vrot.slane %v1058, %v1078
        %v1080 = vlaneseq
        %v1081 = vshrl.u32 %v1080, 7
        %v1082 = vsub.s32 5, %v1081
        %v1083 = vrot.slane %v1058, %v1082
        %v1084 = vlaneseq
        %v1085 = vshrl.u32 %v1084, 7
        %v1086 = vsub.s32 6, %v1085
        %v1087 = vrot.slane %v1058, %v1086
        %v1088 = vlaneseq
        %v1089 = vshrl.u32 %v1088, 7
        %v1090 = vsub.s32 7, %v1089
        %v1091 = vrot.slane %v1058, %v1090
        %v1484 = vunpack.c.l.b16 %v674
        %v1485 = vunpack.c.h.b16 %v674
        %v1486 = vunpack.c.l.b16 %v675
        %v1487 = vunpack.c.h.b16 %v675
        %v1488 = vunpack.c.l.b16 %v676
        %v1489 = vunpack.c.h.b16 %v676
        %v1490 = vunpack.c.l.b16 %v677
        %v1491 = vunpack.c.h.b16 %v677
        %v1492 = vunpack.c.l.b16 %v678
        %v1493 = vunpack.c.h.b16 %v678
        %v1494 = vunpack.c.l.b16 %v679
        %v1495 = vunpack.c.h.b16 %v679
        %v1496 = vunpack.c.l.b16 %v680
        %v1497 = vunpack.c.h.b16 %v680
        %v1498 = vunpack.c.l.b16 %v681
        %v1499 = vunpack.c.h.b16 %v681
        %v1500 = vunpack.c.l.b16 %v682
        %v1501 = vunpack.c.h.b16 %v682
        %v1502 = vunpack.c.l.b16 %v683
        %v1503 = vunpack.c.h.b16 %v683
        %v1504 = vunpack.c.l.b16 %v684
        %v1505 = vunpack.c.h.b16 %v684
        %v1506 = vunpack.c.l.b16 %v685
        %v1507 = vunpack.c.h.b16 %v685
        %v1508 = vunpack.c.l.b16 %v686
        %v1509 = vunpack.c.h.b16 %v686
        %v1510 = vunpack.c.l.b16 %v687
        %v1511 = vunpack.c.h.b16 %v687
        %v1512 = vunpack.c.l.b16 %v688
        %v1513 = vunpack.c.h.b16 %v688
        %v1514 = vunpack.c.l.b16 %v689
        %v1515 = vunpack.c.h.b16 %v689
        %v1516 = vunpack.c.l.b16 %v690
        %v1517 = vunpack.c.h.b16 %v690
        %v1518 = vunpack.c.l.b16 %v691
        %v1519 = vunpack.c.h.b16 %v691
        %v1520 = vunpack.c.l.b16 %v692
        %v1521 = vunpack.c.h.b16 %v692
        %v1522 = vunpack.c.l.b16 %v693
        %v1523 = vunpack.c.h.b16 %v693
        %v1524 = vunpack.c.l.b16 %v694
        %v1525 = vunpack.c.h.b16 %v694
        %v1526 = vunpack.c.l.b16 %v695
        %v1527 = vunpack.c.h.b16 %v695
        %v1528 = vunpack.c.l.b16 %v696
        %v1529 = vunpack.c.h.b16 %v696
        %v1530 = vunpack.c.l.b16 %v697
        %v1531 = vunpack.c.h.b16 %v697
        %v1532 = vunpack.c.l.b16 %v698
        %v1533 = vunpack.c.h.b16 %v698
        %v1534 = vunpack.c.l.b16 %v699
        %v1535 = vunpack.c.h.b16 %v699
        %v1536 = vunpack.c.l.b16 %v700
        %v1537 = vunpack.c.h.b16 %v700
        %v1538 = vunpack.c.l.b16 %v701
        %v1539 = vunpack.c.h.b16 %v701
        %v1540 = vunpack.c.l.b16 %v702
        %v1541 = vunpack.c.h.b16 %v702
        %v1542 = vunpack.c.l.b16 %v703
        %v1543 = vunpack.c.h.b16 %v703
        %v1544 = vunpack.c.l.b16 %v704
        %v1545 = vunpack.c.h.b16 %v704
        %v1546 = vunpack.c.l.b16 %v705
        %v1547 = vunpack.c.h.b16 %v705
        %v1548 = vunpack.c.l.b16 %v706
        %v1549 = vunpack.c.h.b16 %v706
        %v1550 = vunpack.c.l.b16 %v707
        %v1551 = vunpack.c.h.b16 %v707
        %v1552 = vunpack.c.l.b16 %v708
        %v1553 = vunpack.c.h.b16 %v708
        %v1554 = vunpack.c.l.b16 %v709
        %v1555 = vunpack.c.h.b16 %v709
        %v1556 = vunpack.c.l.b16 %v710
        %v1557 = vunpack.c.h.b16 %v710
        %v1558 = vunpack.c.l.b16 %v711
        %v1559 = vunpack.c.h.b16 %v711
        %v1560 = vunpack.c.l.b16 %v712
        %v1561 = vunpack.c.h.b16 %v712
        %v1562 = vunpack.c.l.b16 %v713
        %v1563 = vunpack.c.h.b16 %v713
        %v1564 = vunpack.c.l.b16 %v714
        %v1565 = vunpack.c.h.b16 %v714
        %v1566 = vunpack.c.l.b16 %v715
        %v1567 = vunpack.c.h.b16 %v715
        %v1568 = vunpack.c.l.b16 %v716
        %v1569 = vunpack.c.h.b16 %v716
        %v1570 = vunpack.c.l.b16 %v717
        %v1571 = vunpack.c.h.b16 %v717
        %v1572 = vunpack.c.l.b16 %v718
        %v1573 = vunpack.c.h.b16 %v718
        %v1574 = vunpack.c.l.b16 %v719
        %v1575 = vunpack.c.h.b16 %v719
        %v1576 = vunpack.c.l.b16 %v720
        %v1577 = vunpack.c.h.b16 %v720
        %v1578 = vunpack.c.l.b16 %v721
        %v1579 = vunpack.c.h.b16 %v721
        %v1580 = vunpack.c.l.b16 %v722
        %v1581 = vunpack.c.h.b16 %v722
        %v1582 = vunpack.c.l.b16 %v723
        %v1583 = vunpack.c.h.b16 %v723
        %v1584 = vunpack.c.l.b16 %v724
        %v1585 = vunpack.c.h.b16 %v724
        %v1586 = vunpack.c.l.b16 %v725
        %v1587 = vunpack.c.h.b16 %v725
        %v1588 = vunpack.c.l.b16 %v726
        %v1589 = vunpack.c.h.b16 %v726
        %v1590 = vunpack.c.l.b16 %v727
        %v1591 = vunpack.c.h.b16 %v727
        %v1592 = vunpack.c.l.b16 %v728
        %v1593 = vunpack.c.h.b16 %v728
        %v1594 = vunpack.c.l.b16 %v729
        %v1595 = vunpack.c.h.b16 %v729
        %v1596 = vunpack.c.l.b16 %v730
        %v1597 = vunpack.c.h.b16 %v730
        %v1598 = vunpack.c.l.b16 %v731
        %v1599 = vunpack.c.h.b16 %v731
        %v1600 = vunpack.c.l.b16 %v732
        %v1601 = vunpack.c.h.b16 %v732
        %v1602 = vunpack.c.l.b16 %v733
        %v1603 = vunpack.c.h.b16 %v733
        %v1604 = vunpack.c.l.b16 %v734
        %v1605 = vunpack.c.h.b16 %v734
        %v1606 = vunpack.c.l.b16 %v735
        %v1607 = vunpack.c.h.b16 %v735
        %v1608 = vunpack.c.l.b16 %v736
        %v1609 = vunpack.c.h.b16 %v736
        %v1610 = vunpack.c.l.b16 %v737
        %v1611 = vunpack.c.h.b16 %v737
        %v1612 = vunpack.c.l.b16 %v738
        %v1613 = vunpack.c.h.b16 %v738
        %v1614 = vunpack.c.l.b16 %v739
        %v1615 = vunpack.c.h.b16 %v739
        %v1616 = vunpack.c.l.b16 %v740
        %v1617 = vunpack.c.h.b16 %v740
        %v1618 = vunpack.c.l.b16 %v741
        %v1619 = vunpack.c.h.b16 %v741
        %v1620 = vunpack.c.l.b16 %v742
        %v1621 = vunpack.c.h.b16 %v742
        %v1622 = vunpack.c.l.b16 %v743
        %v1623 = vunpack.c.h.b16 %v743
        %v1624 = vunpack.c.l.b16 %v744
        %v1625 = vunpack.c.h.b16 %v744
        %v1626 = vunpack.c.l.b16 %v745
        %v1627 = vunpack.c.h.b16 %v745
        %v1628 = vunpack.c.l.b16 %v746
        %v1629 = vunpack.c.h.b16 %v746
        %v1630 = vunpack.c.l.b16 %v747
        %v1631 = vunpack.c.h.b16 %v747
        %v1632 = vunpack.c.l.b16 %v748
        %v1633 = vunpack.c.h.b16 %v748
        %v1634 = vunpack.c.l.b16 %v749
        %v1635 = vunpack.c.h.b16 %v749
        %v1636 = vunpack.c.l.b16 %v750
        %v1637 = vunpack.c.h.b16 %v750
        %v1638 = vunpack.c.l.b16 %v751
        %v1639 = vunpack.c.h.b16 %v751
        %v1640 = vunpack.c.l.b16 %v752
        %v1641 = vunpack.c.h.b16 %v752
        %v1642 = vunpack.c.l.b16 %v753
        %v1643 = vunpack.c.h.b16 %v753
        %v1644 = vunpack.c.l.b16 %v754
        %v1645 = vunpack.c.h.b16 %v754
        %v1646 = vunpack.c.l.b16 %v755
        %v1647 = vunpack.c.h.b16 %v755
        %v1648 = vunpack.c.l.b16 %v756
        %v1649 = vunpack.c.h.b16 %v756
        %v1650 = vunpack.c.l.b16 %v757
        %v1651 = vunpack.c.h.b16 %v757
        %v1652 = vunpack.c.l.b16 %v758
        %v1653 = vunpack.c.h.b16 %v758
        %v1654 = vunpack.c.l.b16 %v759
        %v1655 = vunpack.c.h.b16 %v759
        %v1656 = vunpack.c.l.b16 %v760
        %v1657 = vunpack.c.h.b16 %v760
        %v1658 = vunpack.c.l.b16 %v761
        %v1659 = vunpack.c.h.b16 %v761
        %v1660 = vunpack.c.l.b16 %v762
        %v1661 = vunpack.c.h.b16 %v762
        %v1662 = vunpack.c.l.b16 %v763
        %v1663 = vunpack.c.h.b16 %v763
        %v1664 = vunpack.c.l.b16 %v764
        %v1665 = vunpack.c.h.b16 %v764
        %v1666 = vunpack.c.l.b16 %v765
        %v1667 = vunpack.c.h.b16 %v765
        %v1668 = vunpack.c.l.b16 %v766
        %v1669 = vunpack.c.h.b16 %v766
        %v1670 = vunpack.c.l.b16 %v767
        %v1671 = vunpack.c.h.b16 %v767
        %v1672 = vunpack.c.l.b16 %v768
        %v1673 = vunpack.c.h.b16 %v768
        %v1674 = vunpack.c.l.b16 %v769
        %v1675 = vunpack.c.h.b16 %v769
        %v1676 = vunpack.c.l.b16 %v770
        %v1677 = vunpack.c.h.b16 %v770
        %v1678 = vunpack.c.l.b16 %v771
        %v1679 = vunpack.c.h.b16 %v771
        %v1680 = vunpack.c.l.b16 %v772
        %v1681 = vunpack.c.h.b16 %v772
        %v1682 = vunpack.c.l.b16 %v773
        %v1683 = vunpack.c.h.b16 %v773
        %v1684 = vunpack.c.l.b16 %v774
        %v1685 = vunpack.c.h.b16 %v774
        %v1686 = vunpack.c.l.b16 %v775
        %v1687 = vunpack.c.h.b16 %v775
        %v1688 = vunpack.c.l.b16 %v776
        %v1689 = vunpack.c.h.b16 %v776
        %v1690 = vunpack.c.l.b16 %v777
        %v1691 = vunpack.c.h.b16 %v777
        %v1692 = vunpack.c.l.b16 %v778
        %v1693 = vunpack.c.h.b16 %v778
        %v1694 = vunpack.c.l.b16 %v779
        %v1695 = vunpack.c.h.b16 %v779
        %v1696 = vunpack.c.l.b16 %v780
        %v1697 = vunpack.c.h.b16 %v780
        %v1698 = vunpack.c.l.b16 %v781
        %v1699 = vunpack.c.h.b16 %v781
        %v1700 = vunpack.c.l.b16 %v782
        %v1701 = vunpack.c.h.b16 %v782
        %v1702 = vunpack.c.l.b16 %v783
        %v1703 = vunpack.c.h.b16 %v783
        %v1704 = vunpack.c.l.b16 %v784
        %v1705 = vunpack.c.h.b16 %v784
        %v1706 = vunpack.c.l.b16 %v785
        %v1707 = vunpack.c.h.b16 %v785
        %v1708 = vunpack.c.l.b16 %v786
        %v1709 = vunpack.c.h.b16 %v786
        %v1710 = vunpack.c.l.b16 %v787
        %v1711 = vunpack.c.h.b16 %v787
        %v1712 = vunpack.c.l.b16 %v788
        %v1713 = vunpack.c.h.b16 %v788
        %v1714 = vunpack.c.l.b16 %v789
        %v1715 = vunpack.c.h.b16 %v789
        %v1716 = vunpack.c.l.b16 %v790
        %v1717 = vunpack.c.h.b16 %v790
        %v1718 = vunpack.c.l.b16 %v791
        %v1719 = vunpack.c.h.b16 %v791
        %v1720 = vunpack.c.l.b16 %v792
        %v1721 = vunpack.c.h.b16 %v792
        %v1722 = vunpack.c.l.b16 %v793
        %v1723 = vunpack.c.h.b16 %v793
        %v1724 = vunpack.c.l.b16 %v794
        %v1725 = vunpack.c.h.b16 %v794
        %v1726 = vunpack.c.l.b16 %v795
        %v1727 = vunpack.c.h.b16 %v795
        %v1728 = vunpack.c.l.b16 %v796
        %v1729 = vunpack.c.h.b16 %v796
        %v1730 = vunpack.c.l.b16 %v797
        %v1731 = vunpack.c.h.b16 %v797
        %v1732 = vunpack.c.l.b16 %v798
        %v1733 = vunpack.c.h.b16 %v798
        %v1734 = vunpack.c.l.b16 %v799
        %v1735 = vunpack.c.h.b16 %v799
        %v1736 = vunpack.c.l.b16 %v800
        %v1737 = vunpack.c.h.b16 %v800
        %v1738 = vunpack.c.l.b16 %v801
        %v1739 = vunpack.c.h.b16 %v801
        %v1740 = vunpack.c.l.b16 %v802
        %v1741 = vunpack.c.h.b16 %v802
        %v1742 = vunpack.c.l.b16 %v803
        %v1743 = vunpack.c.h.b16 %v803
        %v1744 = vunpack.c.l.b16 %v804
        %v1745 = vunpack.c.h.b16 %v804
        %v1746 = vunpack.c.l.b16 %v805
        %v1747 = vunpack.c.h.b16 %v805
        %v1748 = vunpack.c.l.b16 %v806
        %v1749 = vunpack.c.h.b16 %v806
        %v1750 = vunpack.c.l.b16 %v807
        %v1751 = vunpack.c.h.b16 %v807
        %v1752 = vunpack.c.l.b16 %v808
        %v1753 = vunpack.c.h.b16 %v808
        %v1754 = vunpack.c.l.b16 %v809
        %v1755 = vunpack.c.h.b16 %v809
        %v1756 = vunpack.c.l.b16 %v810
        %v1757 = vunpack.c.h.b16 %v810
        %v1758 = vunpack.c.l.b16 %v811
        %v1759 = vunpack.c.h.b16 %v811
        %v1760 = vunpack.c.l.b16 %v812
        %v1761 = vunpack.c.h.b16 %v812
        %v1762 = vunpack.c.l.b16 %v813
        %v1763 = vunpack.c.h.b16 %v813
        %v1764 = vunpack.c.l.b16 %v814
        %v1765 = vunpack.c.h.b16 %v814
        %v1766 = vunpack.c.l.b16 %v815
        %v1767 = vunpack.c.h.b16 %v815
        %v1768 = vunpack.c.l.b16 %v816
        %v1769 = vunpack.c.h.b16 %v816
        %v1770 = vunpack.c.l.b16 %v817
        %v1771 = vunpack.c.h.b16 %v817
        %v1772 = vunpack.c.l.b16 %v818
        %v1773 = vunpack.c.h.b16 %v818
        %v1774 = vunpack.c.l.b16 %v819
        %v1775 = vunpack.c.h.b16 %v819
        %v1776 = vunpack.c.l.b16 %v820
        %v1777 = vunpack.c.h.b16 %v820
        %v1778 = vunpack.c.l.b16 %v821
        %v1779 = vunpack.c.h.b16 %v821
        %v1780 = vunpack.c.l.b16 %v822
        %v1781 = vunpack.c.h.b16 %v822
        %v1782 = vunpack.c.l.b16 %v823
        %v1783 = vunpack.c.h.b16 %v823
        %v1784 = vunpack.c.l.b16 %v824
        %v1785 = vunpack.c.h.b16 %v824
        %v1786 = vunpack.c.l.b16 %v825
        %v1787 = vunpack.c.h.b16 %v825
        %v1788 = vunpack.c.l.b16 %v826
        %v1789 = vunpack.c.h.b16 %v826
        %v1790 = vunpack.c.l.b16 %v827
        %v1791 = vunpack.c.h.b16 %v827
        %v1792 = vunpack.c.l.b16 %v828
        %v1793 = vunpack.c.h.b16 %v828
        %v1794 = vunpack.c.l.b16 %v829
        %v1795 = vunpack.c.h.b16 %v829
        %v1796 = vunpack.c.l.b16 %v830
        %v1797 = vunpack.c.h.b16 %v830
        %v1798 = vunpack.c.l.b16 %v831
        %v1799 = vunpack.c.h.b16 %v831
        %v1800 = vunpack.c.l.b16 %v832
        %v1801 = vunpack.c.h.b16 %v832
        %v1802 = vunpack.c.l.b16 %v833
        %v1803 = vunpack.c.h.b16 %v833
        %v1804 = vunpack.c.l.b16 %v834
        %v1805 = vunpack.c.h.b16 %v834
        %v1806 = vunpack.c.l.b16 %v835
        %v1807 = vunpack.c.h.b16 %v835
        %v1808 = vunpack.c.l.b16 %v836
        %v1809 = vunpack.c.h.b16 %v836
        %v1810 = vunpack.c.l.b16 %v837
        %v1811 = vunpack.c.h.b16 %v837
        %v1812 = vunpack.c.l.b16 %v838
        %v1813 = vunpack.c.h.b16 %v838
        %v1814 = vunpack.c.l.b16 %v839
        %v1815 = vunpack.c.h.b16 %v839
        %v1816 = vunpack.c.l.b16 %v840
        %v1817 = vunpack.c.h.b16 %v840
        %v1818 = vunpack.c.l.b16 %v841
        %v1819 = vunpack.c.h.b16 %v841
        %v1820 = vunpack.c.l.b16 %v842
        %v1821 = vunpack.c.h.b16 %v842
        %v1822 = vunpack.c.l.b16 %v843
        %v1823 = vunpack.c.h.b16 %v843
        %v1824 = vunpack.c.l.b16 %v844
        %v1825 = vunpack.c.h.b16 %v844
        %v1826 = vunpack.c.l.b16 %v845
        %v1827 = vunpack.c.h.b16 %v845
        %v1828 = vunpack.c.l.b16 %v846
        %v1829 = vunpack.c.h.b16 %v846
        %v1830 = vunpack.c.l.b16 %v847
        %v1831 = vunpack.c.h.b16 %v847
        %v1832 = vunpack.c.l.b16 %v848
        %v1833 = vunpack.c.h.b16 %v848
        %v1834 = vunpack.c.l.b16 %v849
        %v1835 = vunpack.c.h.b16 %v849
        %v1836 = vunpack.c.l.b16 %v850
        %v1837 = vunpack.c.h.b16 %v850
        %v1838 = vunpack.c.l.b16 %v851
        %v1839 = vunpack.c.h.b16 %v851
        %v1840 = vunpack.c.l.b16 %v852
        %v1841 = vunpack.c.h.b16 %v852
        %v1842 = vunpack.c.l.b16 %v853
        %v1843 = vunpack.c.h.b16 %v853
        %v1844 = vunpack.c.l.b16 %v854
        %v1845 = vunpack.c.h.b16 %v854
        %v1846 = vunpack.c.l.b16 %v855
        %v1847 = vunpack.c.h.b16 %v855
        %v1848 = vunpack.c.l.b16 %v856
        %v1849 = vunpack.c.h.b16 %v856
        %v1850 = vunpack.c.l.b16 %v857
        %v1851 = vunpack.c.h.b16 %v857
        %v1852 = vunpack.c.l.b16 %v858
        %v1853 = vunpack.c.h.b16 %v858
        %v1854 = vunpack.c.l.b16 %v859
        %v1855 = vunpack.c.h.b16 %v859
        %v1856 = vunpack.c.l.b16 %v860
        %v1857 = vunpack.c.h.b16 %v860
        %v1858 = vunpack.c.l.b16 %v861
        %v1859 = vunpack.c.h.b16 %v861
        %v1860 = vunpack.c.l.b16 %v862
        %v1861 = vunpack.c.h.b16 %v862
        %v1862 = vunpack.c.l.b16 %v863
        %v1863 = vunpack.c.h.b16 %v863
        %v1864 = vunpack.c.l.b16 %v864
        %v1865 = vunpack.c.h.b16 %v864
        %v1866 = vunpack.c.l.b16 %v865
        %v1867 = vunpack.c.h.b16 %v865
        %v1868 = vunpack.c.l.b16 %v866
        %v1869 = vunpack.c.h.b16 %v866
        %v1870 = vunpack.c.l.b16 %v867
        %v1871 = vunpack.c.h.b16 %v867
        %v1872 = vunpack.c.l.b16 %v868
        %v1873 = vunpack.c.h.b16 %v868
        %v1874 = vunpack.c.l.b16 %v869
        %v1875 = vunpack.c.h.b16 %v869
        %v1876 = vunpack.c.l.b16 %v870
        %v1877 = vunpack.c.h.b16 %v870
        %v1878 = vunpack.c.l.b16 %v871
        %v1879 = vunpack.c.h.b16 %v871
        %v1880 = vunpack.c.l.b16 %v872
        %v1881 = vunpack.c.h.b16 %v872
        %v1882 = vunpack.c.l.b16 %v873
        %v1883 = vunpack.c.h.b16 %v873
        %v1884 = vunpack.c.l.b16 %v874
        %v1885 = vunpack.c.h.b16 %v874
        %v1886 = vunpack.c.l.b16 %v875
        %v1887 = vunpack.c.h.b16 %v875
        %v1888 = vunpack.c.l.b16 %v876
        %v1889 = vunpack.c.h.b16 %v876
        %v1890 = vunpack.c.l.b16 %v877
        %v1891 = vunpack.c.h.b16 %v877
        %v1892 = vunpack.c.l.b16 %v878
        %v1893 = vunpack.c.h.b16 %v878
        %v1894 = vunpack.c.l.b16 %v879
        %v1895 = vunpack.c.h.b16 %v879
        %v1896 = vunpack.c.l.b16 %v880
        %v1897 = vunpack.c.h.b16 %v880
        %v1898 = vunpack.c.l.b16 %v881
        %v1899 = vunpack.c.h.b16 %v881
        %v1900 = vunpack.c.l.b16 %v882
        %v1901 = vunpack.c.h.b16 %v882
        %v1902 = vunpack.c.l.b16 %v883
        %v1903 = vunpack.c.h.b16 %v883
        %v1904 = vunpack.c.l.b16 %v884
        %v1905 = vunpack.c.h.b16 %v884
        %v1906 = vunpack.c.l.b16 %v885
        %v1907 = vunpack.c.h.b16 %v885
        %v1908 = vunpack.c.l.b16 %v886
        %v1909 = vunpack.c.h.b16 %v886
        %v1910 = vunpack.c.l.b16 %v887
        %v1911 = vunpack.c.h.b16 %v887
        %v1912 = vunpack.c.l.b16 %v888
        %v1913 = vunpack.c.h.b16 %v888
        %v1914 = vunpack.c.l.b16 %v889
        %v1915 = vunpack.c.h.b16 %v889
        %v1916 = vunpack.c.l.b16 %v890
        %v1917 = vunpack.c.h.b16 %v890
        %v1918 = vunpack.c.l.b16 %v891
        %v1919 = vunpack.c.h.b16 %v891
        %v1920 = vunpack.c.l.b16 %v892
        %v1921 = vunpack.c.h.b16 %v892
        %v1922 = vunpack.c.l.b16 %v893
        %v1923 = vunpack.c.h.b16 %v893
        %v1924 = vunpack.c.l.b16 %v894
        %v1925 = vunpack.c.h.b16 %v894
        %v1926 = vunpack.c.l.b16 %v895
        %v1927 = vunpack.c.h.b16 %v895
        %v1928 = vunpack.c.l.b16 %v896
        %v1929 = vunpack.c.h.b16 %v896
        %v1930 = vunpack.c.l.b16 %v897
        %v1931 = vunpack.c.h.b16 %v897
        %v1932 = vunpack.c.l.b16 %v898
        %v1933 = vunpack.c.h.b16 %v898
        %v1934 = vunpack.c.l.b16 %v899
        %v1935 = vunpack.c.h.b16 %v899
        %v1936 = vunpack.c.l.b16 %v900
        %v1937 = vunpack.c.h.b16 %v900
        %v1938 = vunpack.c.l.b16 %v901
        %v1939 = vunpack.c.h.b16 %v901
        %v1940 = vunpack.c.l.b16 %v902
        %v1941 = vunpack.c.h.b16 %v902
        %v1942 = vunpack.c.l.b16 %v903
        %v1943 = vunpack.c.h.b16 %v903
        %v1944 = vunpack.c.l.b16 %v904
        %v1945 = vunpack.c.h.b16 %v904
        %v1946 = vunpack.c.l.b16 %v905
        %v1947 = vunpack.c.h.b16 %v905
        %v1948 = vunpack.c.l.b16 %v906
        %v1949 = vunpack.c.h.b16 %v906
        %v1950 = vunpack.c.l.b16 %v907
        %v1951 = vunpack.c.h.b16 %v907
        %v1952 = vunpack.c.l.b16 %v908
        %v1953 = vunpack.c.h.b16 %v908
        %v1954 = vunpack.c.l.b16 %v909
        %v1955 = vunpack.c.h.b16 %v909
        %v1956 = vunpack.c.l.b16 %v910
        %v1957 = vunpack.c.h.b16 %v910
        %v1958 = vunpack.c.l.b16 %v911
        %v1959 = vunpack.c.h.b16 %v911
        %v1960 = vunpack.c.l.b16 %v912
        %v1961 = vunpack.c.h.b16 %v912
        %v1962 = vunpack.c.l.b16 %v913
        %v1963 = vunpack.c.h.b16 %v913
        %v1964 = vunpack.c.l.b16 %v914
        %v1965 = vunpack.c.h.b16 %v914
        %v1966 = vunpack.c.l.b16 %v915
        %v1967 = vunpack.c.h.b16 %v915
        %v1968 = vunpack.c.l.b16 %v916
        %v1969 = vunpack.c.h.b16 %v916
        %v1970 = vunpack.c.l.b16 %v917
        %v1971 = vunpack.c.h.b16 %v917
        %v1972 = vunpack.c.l.b16 %v918
        %v1973 = vunpack.c.h.b16 %v918
        %v1974 = vunpack.c.l.b16 %v919
        %v1975 = vunpack.c.h.b16 %v919
        %v1976 = vunpack.c.l.b16 %v920
        %v1977 = vunpack.c.h.b16 %v920
        %v1978 = vunpack.c.l.b16 %v921
        %v1979 = vunpack.c.h.b16 %v921
        %v1980 = vunpack.c.l.b16 %v922
        %v1981 = vunpack.c.h.b16 %v922
        %v1982 = vunpack.c.l.b16 %v923
        %v1983 = vunpack.c.h.b16 %v923
        %v1984 = vunpack.c.l.b16 %v924
        %v1985 = vunpack.c.h.b16 %v924
        %v1986 = vunpack.c.l.b16 %v925
        %v1987 = vunpack.c.h.b16 %v925
        %v1988 = vunpack.c.l.b16 %v926
        %v1989 = vunpack.c.h.b16 %v926
        %v1990 = vunpack.c.l.b16 %v927
        %v1991 = vunpack.c.h.b16 %v927
        %v1992 = vunpack.c.l.b16 %v928
        %v1993 = vunpack.c.h.b16 %v928
        %v1994 = vunpack.c.l.b16 %v929
        %v1995 = vunpack.c.h.b16 %v929
        %v1996 = vunpack.c.l.b16 %v930
        %v1997 = vunpack.c.h.b16 %v930
        %v1998 = vunpack.c.l.b16 %v931
        %v1999 = vunpack.c.h.b16 %v931
        %v2000 = vunpack.c.l.b16 %v932
        %v2001 = vunpack.c.h.b16 %v932
        %v2002 = vunpack.c.l.b16 %v933
        %v2003 = vunpack.c.h.b16 %v933
        %v2004 = vunpack.c.l.b16 %v934
        %v2005 = vunpack.c.h.b16 %v934
        %v2006 = vunpack.c.l.b16 %v935
        %v2007 = vunpack.c.h.b16 %v935
        %v2008 = vunpack.c.l.b16 %v936
        %v2009 = vunpack.c.h.b16 %v936
        %v2010 = vunpack.c.l.b16 %v937
        %v2011 = vunpack.c.h.b16 %v937
        %v2012 = vunpack.c.l.b16 %v938
        %v2013 = vunpack.c.h.b16 %v938
        %v2014 = vunpack.c.l.b16 %v939
        %v2015 = vunpack.c.h.b16 %v939
        %v2016 = vunpack.c.l.b16 %v940
        %v2017 = vunpack.c.h.b16 %v940
        %v2018 = vunpack.c.l.b16 %v941
        %v2019 = vunpack.c.h.b16 %v941
        %v2020 = vunpack.c.l.b16 %v942
        %v2021 = vunpack.c.h.b16 %v942
        %v2022 = vunpack.c.l.b16 %v943
        %v2023 = vunpack.c.h.b16 %v943
        %v2024 = vunpack.c.l.b16 %v944
        %v2025 = vunpack.c.h.b16 %v944
        %v2026 = vunpack.c.l.b16 %v945
        %v2027 = vunpack.c.h.b16 %v945
        %v2028 = vunpack.c.l.b16 %v946
        %v2029 = vunpack.c.h.b16 %v946
        %v2030 = vunpack.c.l.b16 %v947
        %v2031 = vunpack.c.h.b16 %v947
        %v2032 = vunpack.c.l.b16 %v948
        %v2033 = vunpack.c.h.b16 %v948
        %v2034 = vunpack.c.l.b16 %v949
        %v2035 = vunpack.c.h.b16 %v949
        %v2036 = vunpack.c.l.b16 %v950
        %v2037 = vunpack.c.h.b16 %v950
        %v2038 = vunpack.c.l.b16 %v951
        %v2039 = vunpack.c.h.b16 %v951
        %v2040 = vunpack.c.l.b16 %v952
        %v2041 = vunpack.c.h.b16 %v952
        %v2042 = vunpack.c.l.b16 %v953
        %v2043 = vunpack.c.h.b16 %v953
        %v2044 = vunpack.c.l.b16 %v954
        %v2045 = vunpack.c.h.b16 %v954
        %v2046 = vunpack.c.l.b16 %v955
        %v2047 = vunpack.c.h.b16 %v955
        %v2048 = vunpack.c.l.b16 %v956
        %v2049 = vunpack.c.h.b16 %v956
        %v2050 = vunpack.c.l.b16 %v957
        %v2051 = vunpack.c.h.b16 %v957
        %v2052 = vunpack.c.l.b16 %v958
        %v2053 = vunpack.c.h.b16 %v958
        %v2054 = vunpack.c.l.b16 %v959
        %v2055 = vunpack.c.h.b16 %v959
        %v2056 = vunpack.c.l.b16 %v960
        %v2057 = vunpack.c.h.b16 %v960
        %v2058 = vunpack.c.l.b16 %v961
        %v2059 = vunpack.c.h.b16 %v961
        %v2060 = vunpack.c.l.b16 %v962
        %v2061 = vunpack.c.h.b16 %v962
        %v2062 = vunpack.c.l.b16 %v963
        %v2063 = vunpack.c.h.b16 %v963
        %v2064 = vunpack.c.l.b16 %v964
        %v2065 = vunpack.c.h.b16 %v964
        %v2066 = vunpack.c.l.b16 %v965
        %v2067 = vunpack.c.h.b16 %v965
        %v2068 = vunpack.c.l.b16 %v966
        %v2069 = vunpack.c.h.b16 %v966
        %v2070 = vunpack.c.l.b16 %v967
        %v2071 = vunpack.c.h.b16 %v967
        %v2072 = vunpack.c.l.b16 %v968
        %v2073 = vunpack.c.h.b16 %v968
        %v2074 = vunpack.c.l.b16 %v969
        %v2075 = vunpack.c.h.b16 %v969
        %v2076 = vunpack.c.l.b16 %v970
        %v2077 = vunpack.c.h.b16 %v970
        %v2078 = vunpack.c.l.b16 %v971
        %v2079 = vunpack.c.h.b16 %v971
        %v2080 = vunpack.c.l.b16 %v972
        %v2081 = vunpack.c.h.b16 %v972
        %v2082 = vunpack.c.l.b16 %v973
        %v2083 = vunpack.c.h.b16 %v973
        %v2084 = vunpack.c.l.b16 %v974
        %v2085 = vunpack.c.h.b16 %v974
        %v2086 = vunpack.c.l.b16 %v975
        %v2087 = vunpack.c.h.b16 %v975
        %v2088 = vunpack.c.l.b16 %v976
        %v2089 = vunpack.c.h.b16 %v976
        %v2090 = vunpack.c.l.b16 %v977
        %v2091 = vunpack.c.h.b16 %v977
        %v2092 = vunpack.c.l.b16 %v978
        %v2093 = vunpack.c.h.b16 %v978
        %v2094 = vunpack.c.l.b16 %v979
        %v2095 = vunpack.c.h.b16 %v979
        %v2096 = vunpack.c.l.b16 %v980
        %v2097 = vunpack.c.h.b16 %v980
        %v2098 = vunpack.c.l.b16 %v981
        %v2099 = vunpack.c.h.b16 %v981
        %v2100 = vunpack.c.l.b16 %v982
        %v2101 = vunpack.c.h.b16 %v982
        %v2102 = vunpack.c.l.b16 %v983
        %v2103 = vunpack.c.h.b16 %v983
        %v2104 = vunpack.c.l.b16 %v984
        %v2105 = vunpack.c.h.b16 %v984
        %v2106 = vunpack.c.l.b16 %v985
        %v2107 = vunpack.c.h.b16 %v985
        %v2108 = vunpack.c.l.b16 %v986
        %v2109 = vunpack.c.h.b16 %v986
        %v2110 = vunpack.c.l.b16 %v987
        %v2111 = vunpack.c.h.b16 %v987
        %v2112 = vunpack.c.l.b16 %v988
        %v2113 = vunpack.c.h.b16 %v988
        %v2114 = vunpack.c.l.b16 %v989
        %v2115 = vunpack.c.h.b16 %v989
        %v2116 = vunpack.c.l.b16 %v990
        %v2117 = vunpack.c.h.b16 %v990
        %v2118 = vunpack.c.l.b16 %v991
        %v2119 = vunpack.c.h.b16 %v991
        %v2120 = vunpack.c.l.b16 %v992
        %v2121 = vunpack.c.h.b16 %v992
        %v2122 = vunpack.c.l.b16 %v993
        %v2123 = vunpack.c.h.b16 %v993
        %v2124 = vunpack.c.l.b16 %v994
        %v2125 = vunpack.c.h.b16 %v994
        %v2126 = vunpack.c.l.b16 %v995
        %v2127 = vunpack.c.h.b16 %v995
        %v2128 = vunpack.c.l.b16 %v996
        %v2129 = vunpack.c.h.b16 %v996
        %v2130 = vunpack.c.l.b16 %v997
        %v2131 = vunpack.c.h.b16 %v997
        %v2132 = vunpack.c.l.b16 %v998
        %v2133 = vunpack.c.h.b16 %v998
        %v2134 = vunpack.c.l.b16 %v999
        %v2135 = vunpack.c.h.b16 %v999
        %v2136 = vunpack.c.l.b16 %v1000
        %v2137 = vunpack.c.h.b16 %v1000
        %v2138 = vunpack.c.l.b16 %v1001
        %v2139 = vunpack.c.h.b16 %v1001
        %v2140 = vunpack.c.l.b16 %v1002
        %v2141 = vunpack.c.h.b16 %v1002
        %v2142 = vunpack.c.l.b16 %v1003
        %v2143 = vunpack.c.h.b16 %v1003
        %v2144 = vunpack.c.l.b16 %v1004
        %v2145 = vunpack.c.h.b16 %v1004
        %v2146 = vunpack.c.l.b16 %v1005
        %v2147 = vunpack.c.h.b16 %v1005
        %v2148 = vunpack.c.l.b16 %v1006
        %v2149 = vunpack.c.h.b16 %v1006
        %v2150 = vunpack.c.l.b16 %v1007
        %v2151 = vunpack.c.h.b16 %v1007
        %v2152 = vunpack.c.l.b16 %v1008
        %v2153 = vunpack.c.h.b16 %v1008
        %v2154 = vunpack.c.l.b16 %v1009
        %v2155 = vunpack.c.h.b16 %v1009
        %v2156 = vunpack.c.l.b16 %v1010
        %v2157 = vunpack.c.h.b16 %v1010
        %v2158 = vunpack.c.l.b16 %v1011
        %v2159 = vunpack.c.h.b16 %v1011
        %v2160 = vunpack.c.l.b16 %v1012
        %v2161 = vunpack.c.h.b16 %v1012
        %v2162 = vunpack.c.l.b16 %v1013
        %v2163 = vunpack.c.h.b16 %v1013
        %v2164 = vunpack.c.l.b16 %v1014
        %v2165 = vunpack.c.h.b16 %v1014
        %v2166 = vunpack.c.l.b16 %v1015
        %v2167 = vunpack.c.h.b16 %v1015
        %v2168 = vunpack.c.l.b16 %v1016
        %v2169 = vunpack.c.h.b16 %v1016
        %v2170 = vunpack.c.l.b16 %v1017
        %v2171 = vunpack.c.h.b16 %v1017
        %v2172 = vunpack.c.l.b16 %v1018
        %v2173 = vunpack.c.h.b16 %v1018
        %v2174 = vunpack.c.l.b16 %v1019
        %v2175 = vunpack.c.h.b16 %v1019
        %v2176 = vunpack.c.l.b16 %v1020
        %v2177 = vunpack.c.h.b16 %v1020
        %v2178 = vunpack.c.l.b16 %v1021
        %v2179 = vunpack.c.h.b16 %v1021
        %v2180 = vunpack.c.l.b16 %v1022
        %v2181 = vunpack.c.h.b16 %v1022
        %v2182 = vunpack.c.l.b16 %v1023
        %v2183 = vunpack.c.h.b16 %v1023
        %v2184 = vunpack.c.l.b16 %v1024
        %v2185 = vunpack.c.h.b16 %v1024
        %v2186 = vunpack.c.l.b16 %v1025
        %v2187 = vunpack.c.h.b16 %v1025
        %v2188 = vunpack.c.l.b16 %v1026
        %v2189 = vunpack.c.h.b16 %v1026
        %v2190 = vunpack.c.l.b16 %v1027
        %v2191 = vunpack.c.h.b16 %v1027
        %v2192 = vunpack.c.l.b16 %v1028
        %v2193 = vunpack.c.h.b16 %v1028
        %v2194 = vunpack.c.l.b16 %v1029
        %v2195 = vunpack.c.h.b16 %v1029
        %v2196 = vunpack.c.l.b16 %v1030
        %v2197 = vunpack.c.h.b16 %v1030
        %v2198 = vunpack.c.l.b16 %v1031
        %v2199 = vunpack.c.h.b16 %v1031
        %v2200 = vunpack.c.l.b16 %v1032
        %v2201 = vunpack.c.h.b16 %v1032
        %v2202 = vunpack.c.l.b16 %v1033
        %v2203 = vunpack.c.h.b16 %v1033
        %v2204 = vunpack.c.l.b16 %v1034
        %v2205 = vunpack.c.h.b16 %v1034
        %v2206 = vunpack.c.l.b16 %v1035
        %v2207 = vunpack.c.h.b16 %v1035
        %v2208 = vunpack.c.l.b16 %v1036
        %v2209 = vunpack.c.h.b16 %v1036
        %v2210 = vunpack.c.l.b16 %v1037
        %v2211 = vunpack.c.h.b16 %v1037
        %v2212 = vunpack.c.l.b16 %v1038
        %v2213 = vunpack.c.h.b16 %v1038
        %v2214 = vunpack.c.l.b16 %v1039
        %v2215 = vunpack.c.h.b16 %v1039
        %v2216 = vunpack.c.l.b16 %v1040
        %v2217 = vunpack.c.h.b16 %v1040
        %v2218 = vunpack.c.l.b16 %v1041
        %v2219 = vunpack.c.h.b16 %v1041
        %v2220 = vunpack.c.l.b16 %v1042
        %v2221 = vunpack.c.h.b16 %v1042
        %v2222 = vunpack.c.l.b16 %v1043
        %v2223 = vunpack.c.h.b16 %v1043
        %v2224 = vunpack.c.l.b16 %v1044
        %v2225 = vunpack.c.h.b16 %v1044
        %v2226 = vunpack.c.l.b16 %v1045
        %v2227 = vunpack.c.h.b16 %v1045
        %v2228 = vunpack.c.l.b16 %v1046
        %v2229 = vunpack.c.h.b16 %v1046
        %v2230 = vunpack.c.l.b16 %v1047
        %v2231 = vunpack.c.h.b16 %v1047
        %v2232 = vunpack.c.l.b16 %v1048
        %v2233 = vunpack.c.h.b16 %v1048
        %v2234 = vunpack.c.l.b16 %v1049
        %v2235 = vunpack.c.h.b16 %v1049
        %v2236 = vunpack.c.l.b16 %v1050
        %v2237 = vunpack.c.h.b16 %v1050
        %v2238 = vunpack.c.l.b16 %v1051
        %v2239 = vunpack.c.h.b16 %v1051
        %v2240 = vunpack.c.l.b16 %v1052
        %v2241 = vunpack.c.h.b16 %v1052
        %v2242 = vunpack.c.l.b16 %v1053
        %v2243 = vunpack.c.h.b16 %v1053
        %v2244 = vunpack.c.l.b16 %v1054
        %v2245 = vunpack.c.h.b16 %v1054
        %v2246 = vunpack.c.l.b16 %v1055
        %v2247 = vunpack.c.h.b16 %v1055
        %v2248 = vunpack.c.l.b16 %v1056
        %v2249 = vunpack.c.h.b16 %v1056
        %v2250 = vunpack.c.l.b16 %v1057
        %v2251 = vunpack.c.h.b16 %v1057
        %v2252 = vpack.c.b16 %v1492, %v1484
        %v2253 = vpack.c.b16 %v1493, %v1485
        %v2254 = vpack.c.b16 %v1494, %v1486
        %v2255 = vpack.c.b16 %v1495, %v1487
        %v2256 = vpack.c.b16 %v1496, %v1488
        %v2257 = vpack.c.b16 %v1497, %v1489
        %v2258 = vpack.c.b16 %v1498, %v1490
        %v2259 = vpack.c.b16 %v1499, %v1491
        %v2260 = vpack.c.b16 %v1508, %v1500
        %v2261 = vpack.c.b16 %v1509, %v1501
        %v2262 = vpack.c.b16 %v1510, %v1502
        %v2263 = vpack.c.b16 %v1511, %v1503
        %v2264 = vpack.c.b16 %v1512, %v1504
        %v2265 = vpack.c.b16 %v1513, %v1505
        %v2266 = vpack.c.b16 %v1514, %v1506
        %v2267 = vpack.c.b16 %v1515, %v1507
        %v2268 = vpack.c.b16 %v1524, %v1516
        %v2269 = vpack.c.b16 %v1525, %v1517
        %v2270 = vpack.c.b16 %v1526, %v1518
        %v2271 = vpack.c.b16 %v1527, %v1519
        %v2272 = vpack.c.b16 %v1528, %v1520
        %v2273 = vpack.c.b16 %v1529, %v1521
        %v2274 = vpack.c.b16 %v1530, %v1522
        %v2275 = vpack.c.b16 %v1531, %v1523
        %v2276 = vpack.c.b16 %v1540, %v1532
        %v2277 = vpack.c.b16 %v1541, %v1533
        %v2278 = vpack.c.b16 %v1542, %v1534
        %v2279 = vpack.c.b16 %v1543, %v1535
        %v2280 = vpack.c.b16 %v1544, %v1536
        %v2281 = vpack.c.b16 %v1545, %v1537
        %v2282 = vpack.c.b16 %v1546, %v1538
        %v2283 = vpack.c.b16 %v1547, %v1539
        %v2284 = vpack.c.b16 %v1556, %v1548
        %v2285 = vpack.c.b16 %v1557, %v1549
        %v2286 = vpack.c.b16 %v1558, %v1550
        %v2287 = vpack.c.b16 %v1559, %v1551
        %v2288 = vpack.c.b16 %v1560, %v1552
        %v2289 = vpack.c.b16 %v1561, %v1553
        %v2290 = vpack.c.b16 %v1562, %v1554
        %v2291 = vpack.c.b16 %v1563, %v1555
        %v2292 = vpack.c.b16 %v1572, %v1564
        %v2293 = vpack.c.b16 %v1573, %v1565
        %v2294 = vpack.c.b16 %v1574, %v1566
        %v2295 = vpack.c.b16 %v1575, %v1567
        %v2296 = vpack.c.b16 %v1576, %v1568
        %v2297 = vpack.c.b16 %v1577, %v1569
        %v2298 = vpack.c.b16 %v1578, %v1570
        %v2299 = vpack.c.b16 %v1579, %v1571
        %v2300 = vpack.c.b16 %v1588, %v1580
        %v2301 = vpack.c.b16 %v1589, %v1581
        %v2302 = vpack.c.b16 %v1590, %v1582
        %v2303 = vpack.c.b16 %v1591, %v1583
        %v2304 = vpack.c.b16 %v1592, %v1584
        %v2305 = vpack.c.b16 %v1593, %v1585
        %v2306 = vpack.c.b16 %v1594, %v1586
        %v2307 = vpack.c.b16 %v1595, %v1587
        %v2308 = vpack.c.b16 %v1604, %v1596
        %v2309 = vpack.c.b16 %v1605, %v1597
        %v2310 = vpack.c.b16 %v1606, %v1598
        %v2311 = vpack.c.b16 %v1607, %v1599
        %v2312 = vpack.c.b16 %v1608, %v1600
        %v2313 = vpack.c.b16 %v1609, %v1601
        %v2314 = vpack.c.b16 %v1610, %v1602
        %v2315 = vpack.c.b16 %v1611, %v1603
        %v2316 = vpack.c.b16 %v1620, %v1612
        %v2317 = vpack.c.b16 %v1621, %v1613
        %v2318 = vpack.c.b16 %v1622, %v1614
        %v2319 = vpack.c.b16 %v1623, %v1615
        %v2320 = vpack.c.b16 %v1624, %v1616
        %v2321 = vpack.c.b16 %v1625, %v1617
        %v2322 = vpack.c.b16 %v1626, %v1618
        %v2323 = vpack.c.b16 %v1627, %v1619
        %v2324 = vpack.c.b16 %v1636, %v1628
        %v2325 = vpack.c.b16 %v1637, %v1629
        %v2326 = vpack.c.b16 %v1638, %v1630
        %v2327 = vpack.c.b16 %v1639, %v1631
        %v2328 = vpack.c.b16 %v1640, %v1632
        %v2329 = vpack.c.b16 %v1641, %v1633
        %v2330 = vpack.c.b16 %v1642, %v1634
        %v2331 = vpack.c.b16 %v1643, %v1635
        %v2332 = vpack.c.b16 %v1652, %v1644
        %v2333 = vpack.c.b16 %v1653, %v1645
        %v2334 = vpack.c.b16 %v1654, %v1646
        %v2335 = vpack.c.b16 %v1655, %v1647
        %v2336 = vpack.c.b16 %v1656, %v1648
        %v2337 = vpack.c.b16 %v1657, %v1649
        %v2338 = vpack.c.b16 %v1658, %v1650
        %v2339 = vpack.c.b16 %v1659, %v1651
        %v2340 = vpack.c.b16 %v1668, %v1660
        %v2341 = vpack.c.b16 %v1669, %v1661
        %v2342 = vpack.c.b16 %v1670, %v1662
        %v2343 = vpack.c.b16 %v1671, %v1663
        %v2344 = vpack.c.b16 %v1672, %v1664
        %v2345 = vpack.c.b16 %v1673, %v1665
        %v2346 = vpack.c.b16 %v1674, %v1666
        %v2347 = vpack.c.b16 %v1675, %v1667
        %v2348 = vpack.c.b16 %v1684, %v1676
        %v2349 = vpack.c.b16 %v1685, %v1677
        %v2350 = vpack.c.b16 %v1686, %v1678
        %v2351 = vpack.c.b16 %v1687, %v1679
        %v2352 = vpack.c.b16 %v1688, %v1680
        %v2353 = vpack.c.b16 %v1689, %v1681
        %v2354 = vpack.c.b16 %v1690, %v1682
        %v2355 = vpack.c.b16 %v1691, %v1683
        %v2356 = vpack.c.b16 %v1700, %v1692
        %v2357 = vpack.c.b16 %v1701, %v1693
        %v2358 = vpack.c.b16 %v1702, %v1694
        %v2359 = vpack.c.b16 %v1703, %v1695
        %v2360 = vpack.c.b16 %v1704, %v1696
        %v2361 = vpack.c.b16 %v1705, %v1697
        %v2362 = vpack.c.b16 %v1706, %v1698
        %v2363 = vpack.c.b16 %v1707, %v1699
        %v2364 = vpack.c.b16 %v1716, %v1708
        %v2365 = vpack.c.b16 %v1717, %v1709
        %v2366 = vpack.c.b16 %v1718, %v1710
        %v2367 = vpack.c.b16 %v1719, %v1711
        %v2368 = vpack.c.b16 %v1720, %v1712
        %v2369 = vpack.c.b16 %v1721, %v1713
        %v2370 = vpack.c.b16 %v1722, %v1714
        %v2371 = vpack.c.b16 %v1723, %v1715
        %v2372 = vpack.c.b16 %v1732, %v1724
        %v2373 = vpack.c.b16 %v1733, %v1725
        %v2374 = vpack.c.b16 %v1734, %v1726
        %v2375 = vpack.c.b16 %v1735, %v1727
        %v2376 = vpack.c.b16 %v1736, %v1728
        %v2377 = vpack.c.b16 %v1737, %v1729
        %v2378 = vpack.c.b16 %v1738, %v1730
        %v2379 = vpack.c.b16 %v1739, %v1731
        %v2380 = vpack.c.b16 %v1748, %v1740
        %v2381 = vpack.c.b16 %v1749, %v1741
        %v2382 = vpack.c.b16 %v1750, %v1742
        %v2383 = vpack.c.b16 %v1751, %v1743
        %v2384 = vpack.c.b16 %v1752, %v1744
        %v2385 = vpack.c.b16 %v1753, %v1745
        %v2386 = vpack.c.b16 %v1754, %v1746
        %v2387 = vpack.c.b16 %v1755, %v1747
        %v2388 = vpack.c.b16 %v1764, %v1756
        %v2389 = vpack.c.b16 %v1765, %v1757
        %v2390 = vpack.c.b16 %v1766, %v1758
        %v2391 = vpack.c.b16 %v1767, %v1759
        %v2392 = vpack.c.b16 %v1768, %v1760
        %v2393 = vpack.c.b16 %v1769, %v1761
        %v2394 = vpack.c.b16 %v1770, %v1762
        %v2395 = vpack.c.b16 %v1771, %v1763
        %v2396 = vpack.c.b16 %v1780, %v1772
        %v2397 = vpack.c.b16 %v1781, %v1773
        %v2398 = vpack.c.b16 %v1782, %v1774
        %v2399 = vpack.c.b16 %v1783, %v1775
        %v2400 = vpack.c.b16 %v1784, %v1776
        %v2401 = vpack.c.b16 %v1785, %v1777
        %v2402 = vpack.c.b16 %v1786, %v1778
        %v2403 = vpack.c.b16 %v1787, %v1779
        %v2404 = vpack.c.b16 %v1796, %v1788
        %v2405 = vpack.c.b16 %v1797, %v1789
        %v2406 = vpack.c.b16 %v1798, %v1790
        %v2407 = vpack.c.b16 %v1799, %v1791
        %v2408 = vpack.c.b16 %v1800, %v1792
        %v2409 = vpack.c.b16 %v1801, %v1793
        %v2410 = vpack.c.b16 %v1802, %v1794
        %v2411 = vpack.c.b16 %v1803, %v1795
        %v2412 = vpack.c.b16 %v1812, %v1804
        %v2413 = vpack.c.b16 %v1813, %v1805
        %v2414 = vpack.c.b16 %v1814, %v1806
        %v2415 = vpack.c.b16 %v1815, %v1807
        %v2416 = vpack.c.b16 %v1816, %v1808
        %v2417 = vpack.c.b16 %v1817, %v1809
        %v2418 = vpack.c.b16 %v1818, %v1810
        %v2419 = vpack.c.b16 %v1819, %v1811
        %v2420 = vpack.c.b16 %v1828, %v1820
        %v2421 = vpack.c.b16 %v1829, %v1821
        %v2422 = vpack.c.b16 %v1830, %v1822
        %v2423 = vpack.c.b16 %v1831, %v1823
        %v2424 = vpack.c.b16 %v1832, %v1824
        %v2425 = vpack.c.b16 %v1833, %v1825
        %v2426 = vpack.c.b16 %v1834, %v1826
        %v2427 = vpack.c.b16 %v1835, %v1827
        %v2428 = vpack.c.b16 %v1844, %v1836
        %v2429 = vpack.c.b16 %v1845, %v1837
        %v2430 = vpack.c.b16 %v1846, %v1838
        %v2431 = vpack.c.b16 %v1847, %v1839
        %v2432 = vpack.c.b16 %v1848, %v1840
        %v2433 = vpack.c.b16 %v1849, %v1841
        %v2434 = vpack.c.b16 %v1850, %v1842
        %v2435 = vpack.c.b16 %v1851, %v1843
        %v2436 = vpack.c.b16 %v1860, %v1852
        %v2437 = vpack.c.b16 %v1861, %v1853
        %v2438 = vpack.c.b16 %v1862, %v1854
        %v2439 = vpack.c.b16 %v1863, %v1855
        %v2440 = vpack.c.b16 %v1864, %v1856
        %v2441 = vpack.c.b16 %v1865, %v1857
        %v2442 = vpack.c.b16 %v1866, %v1858
        %v2443 = vpack.c.b16 %v1867, %v1859
        %v2444 = vpack.c.b16 %v1876, %v1868
        %v2445 = vpack.c.b16 %v1877, %v1869
        %v2446 = vpack.c.b16 %v1878, %v1870
        %v2447 = vpack.c.b16 %v1879, %v1871
        %v2448 = vpack.c.b16 %v1880, %v1872
        %v2449 = vpack.c.b16 %v1881, %v1873
        %v2450 = vpack.c.b16 %v1882, %v1874
        %v2451 = vpack.c.b16 %v1883, %v1875
        %v2452 = vpack.c.b16 %v1892, %v1884
        %v2453 = vpack.c.b16 %v1893, %v1885
        %v2454 = vpack.c.b16 %v1894, %v1886
        %v2455 = vpack.c.b16 %v1895, %v1887
        %v2456 = vpack.c.b16 %v1896, %v1888
        %v2457 = vpack.c.b16 %v1897, %v1889
        %v2458 = vpack.c.b16 %v1898, %v1890
        %v2459 = vpack.c.b16 %v1899, %v1891
        %v2460 = vpack.c.b16 %v1908, %v1900
        %v2461 = vpack.c.b16 %v1909, %v1901
        %v2462 = vpack.c.b16 %v1910, %v1902
        %v2463 = vpack.c.b16 %v1911, %v1903
        %v2464 = vpack.c.b16 %v1912, %v1904
        %v2465 = vpack.c.b16 %v1913, %v1905
        %v2466 = vpack.c.b16 %v1914, %v1906
        %v2467 = vpack.c.b16 %v1915, %v1907
        %v2468 = vpack.c.b16 %v1924, %v1916
        %v2469 = vpack.c.b16 %v1925, %v1917
        %v2470 = vpack.c.b16 %v1926, %v1918
        %v2471 = vpack.c.b16 %v1927, %v1919
        %v2472 = vpack.c.b16 %v1928, %v1920
        %v2473 = vpack.c.b16 %v1929, %v1921
        %v2474 = vpack.c.b16 %v1930, %v1922
        %v2475 = vpack.c.b16 %v1931, %v1923
        %v2476 = vpack.c.b16 %v1940, %v1932
        %v2477 = vpack.c.b16 %v1941, %v1933
        %v2478 = vpack.c.b16 %v1942, %v1934
        %v2479 = vpack.c.b16 %v1943, %v1935
        %v2480 = vpack.c.b16 %v1944, %v1936
        %v2481 = vpack.c.b16 %v1945, %v1937
        %v2482 = vpack.c.b16 %v1946, %v1938
        %v2483 = vpack.c.b16 %v1947, %v1939
        %v2484 = vpack.c.b16 %v1956, %v1948
        %v2485 = vpack.c.b16 %v1957, %v1949
        %v2486 = vpack.c.b16 %v1958, %v1950
        %v2487 = vpack.c.b16 %v1959, %v1951
        %v2488 = vpack.c.b16 %v1960, %v1952
        %v2489 = vpack.c.b16 %v1961, %v1953
        %v2490 = vpack.c.b16 %v1962, %v1954
        %v2491 = vpack.c.b16 %v1963, %v1955
        %v2492 = vpack.c.b16 %v1972, %v1964
        %v2493 = vpack.c.b16 %v1973, %v1965
        %v2494 = vpack.c.b16 %v1974, %v1966
        %v2495 = vpack.c.b16 %v1975, %v1967
        %v2496 = vpack.c.b16 %v1976, %v1968
        %v2497 = vpack.c.b16 %v1977, %v1969
        %v2498 = vpack.c.b16 %v1978, %v1970
        %v2499 = vpack.c.b16 %v1979, %v1971
        %v2500 = vpack.c.b16 %v1988, %v1980
        %v2501 = vpack.c.b16 %v1989, %v1981
        %v2502 = vpack.c.b16 %v1990, %v1982
        %v2503 = vpack.c.b16 %v1991, %v1983
        %v2504 = vpack.c.b16 %v1992, %v1984
        %v2505 = vpack.c.b16 %v1993, %v1985
        %v2506 = vpack.c.b16 %v1994, %v1986
        %v2507 = vpack.c.b16 %v1995, %v1987
        %v2508 = vpack.c.b16 %v2004, %v1996
        %v2509 = vpack.c.b16 %v2005, %v1997
        %v2510 = vpack.c.b16 %v2006, %v1998
        %v2511 = vpack.c.b16 %v2007, %v1999
        %v2512 = vpack.c.b16 %v2008, %v2000
        %v2513 = vpack.c.b16 %v2009, %v2001
        %v2514 = vpack.c.b16 %v2010, %v2002
        %v2515 = vpack.c.b16 %v2011, %v2003
        %v2516 = vpack.c.b16 %v2020, %v2012
        %v2517 = vpack.c.b16 %v2021, %v2013
        %v2518 = vpack.c.b16 %v2022, %v2014
        %v2519 = vpack.c.b16 %v2023, %v2015
        %v2520 = vpack.c.b16 %v2024, %v2016
        %v2521 = vpack.c.b16 %v2025, %v2017
        %v2522 = vpack.c.b16 %v2026, %v2018
        %v2523 = vpack.c.b16 %v2027, %v2019
        %v2524 = vpack.c.b16 %v2036, %v2028
        %v2525 = vpack.c.b16 %v2037, %v2029
        %v2526 = vpack.c.b16 %v2038, %v2030
        %v2527 = vpack.c.b16 %v2039, %v2031
        %v2528 = vpack.c.b16 %v2040, %v2032
        %v2529 = vpack.c.b16 %v2041, %v2033
        %v2530 = vpack.c.b16 %v2042, %v2034
        %v2531 = vpack.c.b16 %v2043, %v2035
        %v2532 = vpack.c.b16 %v2052, %v2044
        %v2533 = vpack.c.b16 %v2053, %v2045
        %v2534 = vpack.c.b16 %v2054, %v2046
        %v2535 = vpack.c.b16 %v2055, %v2047
        %v2536 = vpack.c.b16 %v2056, %v2048
        %v2537 = vpack.c.b16 %v2057, %v2049
        %v2538 = vpack.c.b16 %v2058, %v2050
        %v2539 = vpack.c.b16 %v2059, %v2051
        %v2540 = vpack.c.b16 %v2068, %v2060
        %v2541 = vpack.c.b16 %v2069, %v2061
        %v2542 = vpack.c.b16 %v2070, %v2062
        %v2543 = vpack.c.b16 %v2071, %v2063
        %v2544 = vpack.c.b16 %v2072, %v2064
        %v2545 = vpack.c.b16 %v2073, %v2065
        %v2546 = vpack.c.b16 %v2074, %v2066
        %v2547 = vpack.c.b16 %v2075, %v2067
        %v2548 = vpack.c.b16 %v2084, %v2076
        %v2549 = vpack.c.b16 %v2085, %v2077
        %v2550 = vpack.c.b16 %v2086, %v2078
        %v2551 = vpack.c.b16 %v2087, %v2079
        %v2552 = vpack.c.b16 %v2088, %v2080
        %v2553 = vpack.c.b16 %v2089, %v2081
        %v2554 = vpack.c.b16 %v2090, %v2082
        %v2555 = vpack.c.b16 %v2091, %v2083
        %v2556 = vpack.c.b16 %v2100, %v2092
        %v2557 = vpack.c.b16 %v2101, %v2093
        %v2558 = vpack.c.b16 %v2102, %v2094
        %v2559 = vpack.c.b16 %v2103, %v2095
        %v2560 = vpack.c.b16 %v2104, %v2096
        %v2561 = vpack.c.b16 %v2105, %v2097
        %v2562 = vpack.c.b16 %v2106, %v2098
        %v2563 = vpack.c.b16 %v2107, %v2099
        %v2564 = vpack.c.b16 %v2116, %v2108
        %v2565 = vpack.c.b16 %v2117, %v2109
        %v2566 = vpack.c.b16 %v2118, %v2110
        %v2567 = vpack.c.b16 %v2119, %v2111
        %v2568 = vpack.c.b16 %v2120, %v2112
        %v2569 = vpack.c.b16 %v2121, %v2113
        %v2570 = vpack.c.b16 %v2122, %v2114
        %v2571 = vpack.c.b16 %v2123, %v2115
        %v2572 = vpack.c.b16 %v2132, %v2124
        %v2573 = vpack.c.b16 %v2133, %v2125
        %v2574 = vpack.c.b16 %v2134, %v2126
        %v2575 = vpack.c.b16 %v2135, %v2127
        %v2576 = vpack.c.b16 %v2136, %v2128
        %v2577 = vpack.c.b16 %v2137, %v2129
        %v2578 = vpack.c.b16 %v2138, %v2130
        %v2579 = vpack.c.b16 %v2139, %v2131
        %v2580 = vpack.c.b16 %v2148, %v2140
        %v2581 = vpack.c.b16 %v2149, %v2141
        %v2582 = vpack.c.b16 %v2150, %v2142
        %v2583 = vpack.c.b16 %v2151, %v2143
        %v2584 = vpack.c.b16 %v2152, %v2144
        %v2585 = vpack.c.b16 %v2153, %v2145
        %v2586 = vpack.c.b16 %v2154, %v2146
        %v2587 = vpack.c.b16 %v2155, %v2147
        %v2588 = vpack.c.b16 %v2164, %v2156
        %v2589 = vpack.c.b16 %v2165, %v2157
        %v2590 = vpack.c.b16 %v2166, %v2158
        %v2591 = vpack.c.b16 %v2167, %v2159
        %v2592 = vpack.c.b16 %v2168, %v2160
        %v2593 = vpack.c.b16 %v2169, %v2161
        %v2594 = vpack.c.b16 %v2170, %v2162
        %v2595 = vpack.c.b16 %v2171, %v2163
        %v2596 = vpack.c.b16 %v2180, %v2172
        %v2597 = vpack.c.b16 %v2181, %v2173
        %v2598 = vpack.c.b16 %v2182, %v2174
        %v2599 = vpack.c.b16 %v2183, %v2175
        %v2600 = vpack.c.b16 %v2184, %v2176
        %v2601 = vpack.c.b16 %v2185, %v2177
        %v2602 = vpack.c.b16 %v2186, %v2178
        %v2603 = vpack.c.b16 %v2187, %v2179
        %v2604 = vpack.c.b16 %v2196, %v2188
        %v2605 = vpack.c.b16 %v2197, %v2189
        %v2606 = vpack.c.b16 %v2198, %v2190
        %v2607 = vpack.c.b16 %v2199, %v2191
        %v2608 = vpack.c.b16 %v2200, %v2192
        %v2609 = vpack.c.b16 %v2201, %v2193
        %v2610 = vpack.c.b16 %v2202, %v2194
        %v2611 = vpack.c.b16 %v2203, %v2195
        %v2612 = vpack.c.b16 %v2212, %v2204
        %v2613 = vpack.c.b16 %v2213, %v2205
        %v2614 = vpack.c.b16 %v2214, %v2206
        %v2615 = vpack.c.b16 %v2215, %v2207
        %v2616 = vpack.c.b16 %v2216, %v2208
        %v2617 = vpack.c.b16 %v2217, %v2209
        %v2618 = vpack.c.b16 %v2218, %v2210
        %v2619 = vpack.c.b16 %v2219, %v2211
        %v2620 = vpack.c.b16 %v2228, %v2220
        %v2621 = vpack.c.b16 %v2229, %v2221
        %v2622 = vpack.c.b16 %v2230, %v2222
        %v2623 = vpack.c.b16 %v2231, %v2223
        %v2624 = vpack.c.b16 %v2232, %v2224
        %v2625 = vpack.c.b16 %v2233, %v2225
        %v2626 = vpack.c.b16 %v2234, %v2226
        %v2627 = vpack.c.b16 %v2235, %v2227
        %v2628 = vpack.c.b16 %v2244, %v2236
        %v2629 = vpack.c.b16 %v2245, %v2237
        %v2630 = vpack.c.b16 %v2246, %v2238
        %v2631 = vpack.c.b16 %v2247, %v2239
        %v2632 = vpack.c.b16 %v2248, %v2240
        %v2633 = vpack.c.b16 %v2249, %v2241
        %v2634 = vpack.c.b16 %v2250, %v2242
        %v2635 = vpack.c.b16 %v2251, %v2243
        %3020 = vmatprep.subr.bf16.mxu0 %v2253
        %3021 = vmatpush1.bf16.msra.mxu0 %v2252
        %3022 = vmatprep.subr.bf16.mxu0 %v2261
        %3023 = vmatpush1.bf16.msra.mxu0 %v2260
        %3024 = vmatprep.subr.bf16.mxu0 %v2269
        %3025 = vmatpush1.bf16.msra.mxu0 %v2268
        %3026 = vmatprep.subr.bf16.mxu0 %v2277
        %3027 = vmatpush1.bf16.msra.mxu0 %v2276
        %3028 = vmatprep.subr.bf16.mxu0 %v2285
        %3029 = vmatpush1.bf16.msra.mxu0 %v2284
        %3030 = vmatprep.subr.bf16.mxu0 %v2293
        %3031 = vmatpush1.bf16.msra.mxu0 %v2292
        %3032 = vmatprep.subr.bf16.mxu0 %v2301
        %3033 = vmatpush1.bf16.msra.mxu0 %v2300
        %3034 = vmatprep.subr.bf16.mxu0 %v2309
        %3035 = vmatpush1.bf16.msra.mxu0 %v2308
        %3036 = vmatprep.subr.bf16.mxu0 %v2317
        %3037 = vmatpush1.bf16.msra.mxu0 %v2316
        %3038 = vmatprep.subr.bf16.mxu0 %v2325
        %3039 = vmatpush1.bf16.msra.mxu0 %v2324
        %3040 = vmatprep.subr.bf16.mxu0 %v2333
        %3041 = vmatpush1.bf16.msra.mxu0 %v2332
        %3042 = vmatprep.subr.bf16.mxu0 %v2341
        %3043 = vmatpush1.bf16.msra.mxu0 %v2340
        %3044 = vmatprep.subr.bf16.mxu0 %v2349
        %3045 = vmatpush1.bf16.msra.mxu0 %v2348
        %3046 = vmatprep.subr.bf16.mxu0 %v2357
        %3047 = vmatpush1.bf16.msra.mxu0 %v2356
        %3048 = vmatprep.subr.bf16.mxu0 %v2365
        %3049 = vmatpush1.bf16.msra.mxu0 %v2364
        %3050 = vmatprep.subr.bf16.mxu0 %v2373
        %3051 = vmatpush1.bf16.msra.mxu0 %v2372
        %3052 = vmatprep.mubr.bf16.mxu0 %v531
        %3053 = vmatmul.mubr.bf16.gmra.mrb[0].mxu0 %v530
        %v3054 = vpop.f32.mrb[0].mxu0
        %v3055 = vadd.f32 %v1063, %v3054
        %v3056 = vpop.f32.mrb[0].mxu0
        %v3057 = vadd.f32 %v1067, %v3056
        %v3058 = vpop.f32.mrb[0].mxu0
        %v3059 = vadd.f32 %v1063, %v3058
        %v3060 = vpop.f32.mrb[0].mxu0
        %v3061 = vadd.f32 %v1067, %v3060
        %3062 = vmatprep.mubr.bf16.mxu0 %v537
        %3063 = vmatmul.mubr.bf16.gmra.mrb[0].mxu0 %v536
        %v3064 = vpop.f32.mrb[0].mxu0
        %v3065 = vadd.f32 %v1063, %v3064
        %v3066 = vpop.f32.mrb[0].mxu0
        %v3067 = vadd.f32 %v1067, %v3066
        %v3068 = vpop.f32.mrb[0].mxu0
        %v3069 = vadd.f32 %v1063, %v3068
        %v3070 = vpop.f32.mrb[0].mxu0
        %v3071 = vadd.f32 %v1067, %v3070
        %3072 = vmatprep.mubr.bf16.mxu0 %v543
        %3073 = vmatmul.mubr.bf16.gmra.mrb[0].mxu0 %v542
        %v3074 = vpop.f32.mrb[0].mxu0
        %v3075 = vadd.f32 %v1063, %v3074
        %v3076 = vpop.f32.mrb[0].mxu0
        %v3077 = vadd.f32 %v1067, %v3076
        %v3078 = vpop.f32.mrb[0].mxu0
        %v3079 = vadd.f32 %v1063, %v3078
        %v3080 = vpop.f32.mrb[0].mxu0
        %v3081 = vadd.f32 %v1067, %v3080
        %3082 = vmatprep.mubr.bf16.mxu0 %v549
        %3083 = vmatmul.mubr.bf16.gmra.mrb[0].mxu0 %v548
        %v3084 = vpop.f32.mrb[0].mxu0
        %v3085 = vadd.f32 %v1063, %v3084
        %v3086 = vpop.f32.mrb[0].mxu0
        %v3087 = vadd.f32 %v1067, %v3086
        %v3088 = vpop.f32.mrb[0].mxu0
        %v3089 = vadd.f32 %v1063, %v3088
        %v3090 = vpop.f32.mrb[0].mxu0
        %v3091 = vadd.f32 %v1067, %v3090
        %3092 = vmatprep.mubr.bf16.mxu0 %v555
        %3093 = vmatmul.mubr.bf16.gmra.mrb[0].mxu0 %v554
        %v3094 = vpop.f32.mrb[0].mxu0
        %v3095 = vadd.f32 %v1063, %v3094
        %v3096 = vpop.f32.mrb[0].mxu0
        %v3097 = vadd.f32 %v1067, %v3096
        %v3098 = vpop.f32.mrb[0].mxu0
        %v3099 = vadd.f32 %v1063, %v3098
        %v3100 = vpop.f32.mrb[0].mxu0
        %v3101 = vadd.f32 %v1067, %v3100
        %3102 = vmatprep.mubr.bf16.mxu0 %v561
        %3103 = vmatmul.mubr.bf16.gmra.mrb[0].mxu0 %v560
        %v3104 = vpop.f32.mrb[0].mxu0
        %v3105 = vadd.f32 %v1063, %v3104
        %v3106 = vpop.f32.mrb[0].mxu0
        %v3107 = vadd.f32 %v1067, %v3106
        %v3108 = vpop.f32.mrb[0].mxu0
        %v3109 = vadd.f32 %v1063, %v3108
        %v3110 = vpop.f32.mrb[0].mxu0
        %v3111 = vadd.f32 %v1067, %v3110
        %3112 = vmatprep.mubr.bf16.mxu0 %v567
        %3113 = vmatmul.mubr.bf16.gmra.mrb[0].mxu0 %v566
        %v3114 = vpop.f32.mrb[0].mxu0
        %v3115 = vadd.f32 %v1063, %v3114
        %v3116 = vpop.f32.mrb[0].mxu0
        %v3117 = vadd.f32 %v1067, %v3116
        %v3118 = vpop.f32.mrb[0].mxu0
        %v3119 = vadd.f32 %v1063, %v3118
        %v3120 = vpop.f32.mrb[0].mxu0
        %v3121 = vadd.f32 %v1067, %v3120
        %3122 = vmatprep.mubr.bf16.mxu0 %v573
        %3123 = vmatmul.mubr.bf16.gmra.mrb[0].mxu0 %v572
        %v3124 = vpop.f32.mrb[0].mxu0
        %v3125 = vadd.f32 %v1063, %v3124
        %v3126 = vpop.f32.mrb[0].mxu0
        %v3127 = vadd.f32 %v1067, %v3126
        %v3128 = vpop.f32.mrb[0].mxu0
        %v3129 = vadd.f32 %v1063, %v3128
        %v3130 = vpop.f32.mrb[0].mxu0
        %v3131 = vadd.f32 %v1067, %v3130
        %3132 = vmatprep.mubr.bf16.mxu0 %v579
        %3133 = vmatmul.mubr.bf16.gmra.mrb[0].mxu0 %v578
        %v3134 = vpop.f32.mrb[0].mxu0
        %v3135 = vadd.f32 %v1063, %v3134
        %v3136 = vpop.f32.mrb[0].mxu0
        %v3137 = vadd.f32 %v1067, %v3136
        %v3138 = vpop.f32.mrb[0].mxu0
        %v3139 = vadd.f32 %v1063, %v3138
        %v3140 = vpop.f32.mrb[0].mxu0
        %v3141 = vadd.f32 %v1067, %v3140
        %3142 = vmatprep.mubr.bf16.mxu0 %v585
        %3143 = vmatmul.mubr.bf16.gmra.mrb[0].mxu0 %v584
        %v3144 = vpop.f32.mrb[0].mxu0
        %v3145 = vadd.f32 %v1063, %v3144
        %v3146 = vpop.f32.mrb[0].mxu0
        %v3147 = vadd.f32 %v1067, %v3146
        %v3148 = vpop.f32.mrb[0].mxu0
        %v3149 = vadd.f32 %v1063, %v3148
        %v3150 = vpop.f32.mrb[0].mxu0
        %v3151 = vadd.f32 %v1067, %v3150
        %3152 = vmatprep.mubr.bf16.mxu0 %v591
        %3153 = vmatmul.mubr.bf16.gmra.mrb[0].mxu0 %v590
        %v3154 = vpop.f32.mrb[0].mxu0
        %v3155 = vadd.f32 %v1063, %v3154
        %v3156 = vpop.f32.mrb[0].mxu0
        %v3157 = vadd.f32 %v1067, %v3156
        %v3158 = vpop.f32.mrb[0].mxu0
        %v3159 = vadd.f32 %v1063, %v3158
        %v3160 = vpop.f32.mrb[0].mxu0
        %v3161 = vadd.f32 %v1067, %v3160
        %3162 = vmatprep.mubr.bf16.mxu0 %v597
        %3163 = vmatmul.mubr.bf16.gmra.mrb[0].mxu0 %v596
        %v3164 = vpop.f32.mrb[0].mxu0
        %v3165 = vadd.f32 %v1063, %v3164
        %v3166 = vpop.f32.mrb[0].mxu0
        %v3167 = vadd.f32 %v1067, %v3166
        %v3168 = vpop.f32.mrb[0].mxu0
        %v3169 = vadd.f32 %v1063, %v3168
        %v3170 = vpop.f32.mrb[0].mxu0
        %v3171 = vadd.f32 %v1067, %v3170
        %3172 = vmatprep.mubr.bf16.mxu0 %v603
        %3173 = vmatmul.mubr.bf16.gmra.mrb[0].mxu0 %v602
        %v3174 = vpop.f32.mrb[0].mxu0
        %v3175 = vadd.f32 %v1063, %v3174
        %v3176 = vpop.f32.mrb[0].mxu0
        %v3177 = vadd.f32 %v1067, %v3176
        %v3178 = vpop.f32.mrb[0].mxu0
        %v3179 = vadd.f32 %v1063, %v3178
        %v3180 = vpop.f32.mrb[0].mxu0
        %v3181 = vadd.f32 %v1067, %v3180
        %3182 = vmatprep.mubr.bf16.mxu0 %v609
        %3183 = vmatmul.mubr.bf16.gmra.mrb[0].mxu0 %v608
        %v3184 = vpop.f32.mrb[0].mxu0
        %v3185 = vadd.f32 %v1063, %v3184
        %v3186 = vpop.f32.mrb[0].mxu0
        %v3187 = vadd.f32 %v1067, %v3186
        %v3188 = vpop.f32.mrb[0].mxu0
        %v3189 = vadd.f32 %v1063, %v3188
        %v3190 = vpop.f32.mrb[0].mxu0
        %v3191 = vadd.f32 %v1067, %v3190
        %3192 = vmatprep.mubr.bf16.mxu0 %v615
        %3193 = vmatmul.mubr.bf16.gmra.mrb[0].mxu0 %v614
        %v3194 = vpop.f32.mrb[0].mxu0
        %v3195 = vadd.f32 %v1063, %v3194
        %v3196 = vpop.f32.mrb[0].mxu0
        %v3197 = vadd.f32 %v1067, %v3196
        %v3198 = vpop.f32.mrb[0].mxu0
        %v3199 = vadd.f32 %v1063, %v3198
        %v3200 = vpop.f32.mrb[0].mxu0
        %v3201 = vadd.f32 %v1067, %v3200
        %3202 = vmatprep.mubr.bf16.mxu0 %v621
        %3203 = vmatmul.mubr.bf16.gmra.mrb[0].mxu0 %v620
        %v3204 = vpop.f32.mrb[0].mxu0
        %v3205 = vadd.f32 %v1063, %v3204
        %v3206 = vpop.f32.mrb[0].mxu0
        %v3207 = vadd.f32 %v1067, %v3206
        %v3208 = vpop.f32.mrb[0].mxu0
        %v3209 = vadd.f32 %v1063, %v3208
        %v3210 = vpop.f32.mrb[0].mxu0
        %v3211 = vadd.f32 %v1067, %v3210
        %3212 = vmatprep.mubr.bf16.mxu0 %v627
        %3213 = vmatmul.mubr.bf16.gmra.mrb[0].mxu0 %v626
        %v3214 = vpop.f32.mrb[0].mxu0
        %v3215 = vadd.f32 %v1063, %v3214
        %v3216 = vpop.f32.mrb[0].mxu0
        %v3217 = vadd.f32 %v1067, %v3216
        %v3218 = vpop.f32.mrb[0].mxu0
        %v3219 = vadd.f32 %v1063, %v3218
        %v3220 = vpop.f32.mrb[0].mxu0
        %v3221 = vadd.f32 %v1067, %v3220
        %3222 = vmatprep.mubr.bf16.mxu0 %v633
        %3223 = vmatmul.mubr.bf16.gmra.mrb[0].mxu0 %v632
        %v3224 = vpop.f32.mrb[0].mxu0
        %v3225 = vadd.f32 %v1063, %v3224
        %v3226 = vpop.f32.mrb[0].mxu0
        %v3227 = vadd.f32 %v1067, %v3226
        %v3228 = vpop.f32.mrb[0].mxu0
        %v3229 = vadd.f32 %v1063, %v3228
        %v3230 = vpop.f32.mrb[0].mxu0
        %v3231 = vadd.f32 %v1067, %v3230
        %3232 = vmatprep.mubr.bf16.mxu0 %v639
        %3233 = vmatmul.mubr.bf16.gmra.mrb[0].mxu0 %v638
        %v3234 = vpop.f32.mrb[0].mxu0
        %v3235 = vadd.f32 %v1063, %v3234
        %v3236 = vpop.f32.mrb[0].mxu0
        %v3237 = vadd.f32 %v1067, %v3236
        %v3238 = vpop.f32.mrb[0].mxu0
        %v3239 = vadd.f32 %v1063, %v3238
        %v3240 = vpop.f32.mrb[0].mxu0
        %v3241 = vadd.f32 %v1067, %v3240
        %3242 = vmatprep.mubr.bf16.mxu0 %v645
        %3243 = vmatmul.mubr.bf16.gmra.mrb[0].mxu0 %v644
        %v3244 = vpop.f32.mrb[0].mxu0
        %v3245 = vadd.f32 %v1063, %v3244
        %v3246 = vpop.f32.mrb[0].mxu0
        %v3247 = vadd.f32 %v1067, %v3246
        %v3248 = vpop.f32.mrb[0].mxu0
        %v3249 = vadd.f32 %v1063, %v3248
        %v3250 = vpop.f32.mrb[0].mxu0
        %v3251 = vadd.f32 %v1067, %v3250
        %3252 = vmatprep.mubr.bf16.mxu0 %v651
        %3253 = vmatmul.mubr.bf16.gmra.mrb[0].mxu0 %v650
        %v3254 = vpop.f32.mrb[0].mxu0
        %v3255 = vadd.f32 %v1063, %v3254
        %v3256 = vpop.f32.mrb[0].mxu0
        %v3257 = vadd.f32 %v1067, %v3256
        %v3258 = vpop.f32.mrb[0].mxu0
        %v3259 = vadd.f32 %v1063, %v3258
        %v3260 = vpop.f32.mrb[0].mxu0
        %v3261 = vadd.f32 %v1067, %v3260
        %3262 = vmatprep.mubr.bf16.mxu0 %v657
        %3263 = vmatmul.mubr.bf16.gmra.mrb[0].mxu0 %v656
        %v3264 = vpop.f32.mrb[0].mxu0
        %v3265 = vadd.f32 %v1063, %v3264
        %v3266 = vpop.f32.mrb[0].mxu0
        %v3267 = vadd.f32 %v1067, %v3266
        %v3268 = vpop.f32.mrb[0].mxu0
        %v3269 = vadd.f32 %v1063, %v3268
        %v3270 = vpop.f32.mrb[0].mxu0
        %v3271 = vadd.f32 %v1067, %v3270
        %3272 = vmatprep.mubr.bf16.mxu0 %v663
        %3273 = vmatmul.mubr.bf16.gmra.mrb[0].mxu0 %v662
        %v3274 = vpop.f32.mrb[0].mxu0
        %v3275 = vadd.f32 %v1063, %v3274
        %v3276 = vpop.f32.mrb[0].mxu0
        %v3277 = vadd.f32 %v1067, %v3276
        %v3278 = vpop.f32.mrb[0].mxu0
        %v3279 = vadd.f32 %v1063, %v3278
        %v3280 = vpop.f32.mrb[0].mxu0
        %v3281 = vadd.f32 %v1067, %v3280
        %3282 = vmatprep.mubr.bf16.mxu0 %v669
        %3283 = vmatmul.mubr.bf16.gmra.mrb[0].mxu0 %v668
        %v3284 = vpop.f32.mrb[0].mxu0
        %v3285 = vadd.f32 %v1063, %v3284
        %v3286 = vpop.f32.mrb[0].mxu0
        %v3287 = vadd.f32 %v1067, %v3286
        %v3288 = vpop.f32.mrb[0].mxu0
        %v3289 = vadd.f32 %v1063, %v3288
        %v3290 = vpop.f32.mrb[0].mxu0
        %v3291 = vadd.f32 %v1067, %v3290
        %3292 = vdwg.mxu0
        %3293 = vmatprep.subr.bf16.mxu0 %v2381
        %3294 = vmatpush1.bf16.msra.mxu0 %v2380
        %3295 = vmatprep.subr.bf16.mxu0 %v2389
        %3296 = vmatpush1.bf16.msra.mxu0 %v2388
        %3297 = vmatprep.subr.bf16.mxu0 %v2397
        %3298 = vmatpush1.bf16.msra.mxu0 %v2396
        %3299 = vmatprep.subr.bf16.mxu0 %v2405
        %3300 = vmatpush1.bf16.msra.mxu0 %v2404
        %3301 = vmatprep.subr.bf16.mxu0 %v2413
        %3302 = vmatpush1.bf16.msra.mxu0 %v2412
        %3303 = vmatprep.subr.bf16.mxu0 %v2421
        %3304 = vmatpush1.bf16.msra.mxu0 %v2420
        %3305 = vmatprep.subr.bf16.mxu0 %v2429
        %3306 = vmatpush1.bf16.msra.mxu0 %v2428
        %3307 = vmatprep.subr.bf16.mxu0 %v2437
        %3308 = vmatpush1.bf16.msra.mxu0 %v2436
        %3309 = vmatprep.subr.bf16.mxu0 %v2445
        %3310 = vmatpush1.bf16.msra.mxu0 %v2444
        %3311 = vmatprep.subr.bf16.mxu0 %v2453
        %3312 = vmatpush1.bf16.msra.mxu0 %v2452
        %3313 = vmatprep.subr.bf16.mxu0 %v2461
        %3314 = vmatpush1.bf16.msra.mxu0 %v2460
        %3315 = vmatprep.subr.bf16.mxu0 %v2469
        %3316 = vmatpush1.bf16.msra.mxu0 %v2468
        %3317 = vmatprep.subr.bf16.mxu0 %v2477
        %3318 = vmatpush1.bf16.msra.mxu0 %v2476
        %3319 = vmatprep.subr.bf16.mxu0 %v2485
        %3320 = vmatpush1.bf16.msra.mxu0 %v2484
        %3321 = vmatprep.subr.bf16.mxu0 %v2493
        %3322 = vmatpush1.bf16.msra.mxu0 %v2492
        %3323 = vmatprep.subr.bf16.mxu0 %v2501
        %3324 = vmatpush1.bf16.msra.mxu0 %v2500
        %3325 = vmatprep.mubr.bf16.mxu0 %v533
        %3326 = vmatmul.mubr.bf16.gmra.mrb[0].mxu0 %v532
        %v3327 = vpop.f32.mrb[0].mxu0
        %v3328 = vadd.f32 %v3055, %v3327
        %v3329 = vpop.f32.mrb[0].mxu0
        %v3330 = vadd.f32 %v3057, %v3329
        %v3331 = vpop.f32.mrb[0].mxu0
        %v3332 = vadd.f32 %v3059, %v3331
        %v3333 = vpop.f32.mrb[0].mxu0
        %v3334 = vadd.f32 %v3061, %v3333
        %3335 = vmatprep.mubr.bf16.mxu0 %v539
        %3336 = vmatmul.mubr.bf16.gmra.mrb[0].mxu0 %v538
        %v3337 = vpop.f32.mrb[0].mxu0
        %v3338 = vadd.f32 %v3065, %v3337
        %v3339 = vpop.f32.mrb[0].mxu0
        %v3340 = vadd.f32 %v3067, %v3339
        %v3341 = vpop.f32.mrb[0].mxu0
        %v3342 = vadd.f32 %v3069, %v3341
        %v3343 = vpop.f32.mrb[0].mxu0
        %v3344 = vadd.f32 %v3071, %v3343
        %3345 = vmatprep.mubr.bf16.mxu0 %v545
        %3346 = vmatmul.mubr.bf16.gmra.mrb[0].mxu0 %v544
        %v3347 = vpop.f32.mrb[0].mxu0
        %v3348 = vadd.f32 %v3075, %v3347
        %v3349 = vpop.f32.mrb[0].mxu0
        %v3350 = vadd.f32 %v3077, %v3349
        %v3351 = vpop.f32.mrb[0].mxu0
        %v3352 = vadd.f32 %v3079, %v3351
        %v3353 = vpop.f32.mrb[0].mxu0
        %v3354 = vadd.f32 %v3081, %v3353
        %3355 = vmatprep.mubr.bf16.mxu0 %v551
        %3356 = vmatmul.mubr.bf16.gmra.mrb[0].mxu0 %v550
        %v3357 = vpop.f32.mrb[0].mxu0
        %v3358 = vadd.f32 %v3085, %v3357
        %v3359 = vpop.f32.mrb[0].mxu0
        %v3360 = vadd.f32 %v3087, %v3359
        %v3361 = vpop.f32.mrb[0].mxu0
        %v3362 = vadd.f32 %v3089, %v3361
        %v3363 = vpop.f32.mrb[0].mxu0
        %v3364 = vadd.f32 %v3091, %v3363
        %3365 = vmatprep.mubr.bf16.mxu0 %v557
        %3366 = vmatmul.mubr.bf16.gmra.mrb[0].mxu0 %v556
        %v3367 = vpop.f32.mrb[0].mxu0
        %v3368 = vadd.f32 %v3095, %v3367
        %v3369 = vpop.f32.mrb[0].mxu0
        %v3370 = vadd.f32 %v3097, %v3369
        %v3371 = vpop.f32.mrb[0].mxu0
        %v3372 = vadd.f32 %v3099, %v3371
        %v3373 = vpop.f32.mrb[0].mxu0
        %v3374 = vadd.f32 %v3101, %v3373
        %3375 = vmatprep.mubr.bf16.mxu0 %v563
        %3376 = vmatmul.mubr.bf16.gmra.mrb[0].mxu0 %v562
        %v3377 = vpop.f32.mrb[0].mxu0
        %v3378 = vadd.f32 %v3105, %v3377
        %v3379 = vpop.f32.mrb[0].mxu0
        %v3380 = vadd.f32 %v3107, %v3379
        %v3381 = vpop.f32.mrb[0].mxu0
        %v3382 = vadd.f32 %v3109, %v3381
        %v3383 = vpop.f32.mrb[0].mxu0
        %v3384 = vadd.f32 %v3111, %v3383
        %3385 = vmatprep.mubr.bf16.mxu0 %v569
        %3386 = vmatmul.mubr.bf16.gmra.mrb[0].mxu0 %v568
        %v3387 = vpop.f32.mrb[0].mxu0
        %v3388 = vadd.f32 %v3115, %v3387
        %v3389 = vpop.f32.mrb[0].mxu0
        %v3390 = vadd.f32 %v3117, %v3389
        %v3391 = vpop.f32.mrb[0].mxu0
        %v3392 = vadd.f32 %v3119, %v3391
        %v3393 = vpop.f32.mrb[0].mxu0
        %v3394 = vadd.f32 %v3121, %v3393
        %3395 = vmatprep.mubr.bf16.mxu0 %v575
        %3396 = vmatmul.mubr.bf16.gmra.mrb[0].mxu0 %v574
        %v3397 = vpop.f32.mrb[0].mxu0
        %v3398 = vadd.f32 %v3125, %v3397
        %v3399 = vpop.f32.mrb[0].mxu0
        %v3400 = vadd.f32 %v3127, %v3399
        %v3401 = vpop.f32.mrb[0].mxu0
        %v3402 = vadd.f32 %v3129, %v3401
        %v3403 = vpop.f32.mrb[0].mxu0
        %v3404 = vadd.f32 %v3131, %v3403
        %3405 = vmatprep.mubr.bf16.mxu0 %v581
        %3406 = vmatmul.mubr.bf16.gmra.mrb[0].mxu0 %v580
        %v3407 = vpop.f32.mrb[0].mxu0
        %v3408 = vadd.f32 %v3135, %v3407
        %v3409 = vpop.f32.mrb[0].mxu0
        %v3410 = vadd.f32 %v3137, %v3409
        %v3411 = vpop.f32.mrb[0].mxu0
        %v3412 = vadd.f32 %v3139, %v3411
        %v3413 = vpop.f32.mrb[0].mxu0
        %v3414 = vadd.f32 %v3141, %v3413
        %3415 = vmatprep.mubr.bf16.mxu0 %v587
        %3416 = vmatmul.mubr.bf16.gmra.mrb[0].mxu0 %v586
        %v3417 = vpop.f32.mrb[0].mxu0
        %v3418 = vadd.f32 %v3145, %v3417
        %v3419 = vpop.f32.mrb[0].mxu0
        %v3420 = vadd.f32 %v3147, %v3419
        %v3421 = vpop.f32.mrb[0].mxu0
        %v3422 = vadd.f32 %v3149, %v3421
        %v3423 = vpop.f32.mrb[0].mxu0
        %v3424 = vadd.f32 %v3151, %v3423
        %3425 = vmatprep.mubr.bf16.mxu0 %v593
        %3426 = vmatmul.mubr.bf16.gmra.mrb[0].mxu0 %v592
        %v3427 = vpop.f32.mrb[0].mxu0
        %v3428 = vadd.f32 %v3155, %v3427
        %v3429 = vpop.f32.mrb[0].mxu0
        %v3430 = vadd.f32 %v3157, %v3429
        %v3431 = vpop.f32.mrb[0].mxu0
        %v3432 = vadd.f32 %v3159, %v3431
        %v3433 = vpop.f32.mrb[0].mxu0
        %v3434 = vadd.f32 %v3161, %v3433
        %3435 = vmatprep.mubr.bf16.mxu0 %v599
        %3436 = vmatmul.mubr.bf16.gmra.mrb[0].mxu0 %v598
        %v3437 = vpop.f32.mrb[0].mxu0
        %v3438 = vadd.f32 %v3165, %v3437
        %v3439 = vpop.f32.mrb[0].mxu0
        %v3440 = vadd.f32 %v3167, %v3439
        %v3441 = vpop.f32.mrb[0].mxu0
        %v3442 = vadd.f32 %v3169, %v3441
        %v3443 = vpop.f32.mrb[0].mxu0
        %v3444 = vadd.f32 %v3171, %v3443
        %3445 = vmatprep.mubr.bf16.mxu0 %v605
        %3446 = vmatmul.mubr.bf16.gmra.mrb[0].mxu0 %v604
        %v3447 = vpop.f32.mrb[0].mxu0
        %v3448 = vadd.f32 %v3175, %v3447
        %v3449 = vpop.f32.mrb[0].mxu0
        %v3450 = vadd.f32 %v3177, %v3449
        %v3451 = vpop.f32.mrb[0].mxu0
        %v3452 = vadd.f32 %v3179, %v3451
        %v3453 = vpop.f32.mrb[0].mxu0
        %v3454 = vadd.f32 %v3181, %v3453
        %3455 = vmatprep.mubr.bf16.mxu0 %v611
        %3456 = vmatmul.mubr.bf16.gmra.mrb[0].mxu0 %v610
        %v3457 = vpop.f32.mrb[0].mxu0
        %v3458 = vadd.f32 %v3185, %v3457
        %v3459 = vpop.f32.mrb[0].mxu0
        %v3460 = vadd.f32 %v3187, %v3459
        %v3461 = vpop.f32.mrb[0].mxu0
        %v3462 = vadd.f32 %v3189, %v3461
        %v3463 = vpop.f32.mrb[0].mxu0
        %v3464 = vadd.f32 %v3191, %v3463
        %3465 = vmatprep.mubr.bf16.mxu0 %v617
        %3466 = vmatmul.mubr.bf16.gmra.mrb[0].mxu0 %v616
        %v3467 = vpop.f32.mrb[0].mxu0
        %v3468 = vadd.f32 %v3195, %v3467
        %v3469 = vpop.f32.mrb[0].mxu0
        %v3470 = vadd.f32 %v3197, %v3469
        %v3471 = vpop.f32.mrb[0].mxu0
        %v3472 = vadd.f32 %v3199, %v3471
        %v3473 = vpop.f32.mrb[0].mxu0
        %v3474 = vadd.f32 %v3201, %v3473
        %3475 = vmatprep.mubr.bf16.mxu0 %v623
        %3476 = vmatmul.mubr.bf16.gmra.mrb[0].mxu0 %v622
        %v3477 = vpop.f32.mrb[0].mxu0
        %v3478 = vadd.f32 %v3205, %v3477
        %v3479 = vpop.f32.mrb[0].mxu0
        %v3480 = vadd.f32 %v3207, %v3479
        %v3481 = vpop.f32.mrb[0].mxu0
        %v3482 = vadd.f32 %v3209, %v3481
        %v3483 = vpop.f32.mrb[0].mxu0
        %v3484 = vadd.f32 %v3211, %v3483
        %3485 = vmatprep.mubr.bf16.mxu0 %v629
        %3486 = vmatmul.mubr.bf16.gmra.mrb[0].mxu0 %v628
        %v3487 = vpop.f32.mrb[0].mxu0
        %v3488 = vadd.f32 %v3215, %v3487
        %v3489 = vpop.f32.mrb[0].mxu0
        %v3490 = vadd.f32 %v3217, %v3489
        %v3491 = vpop.f32.mrb[0].mxu0
        %v3492 = vadd.f32 %v3219, %v3491
        %v3493 = vpop.f32.mrb[0].mxu0
        %v3494 = vadd.f32 %v3221, %v3493
        %3495 = vmatprep.mubr.bf16.mxu0 %v635
        %3496 = vmatmul.mubr.bf16.gmra.mrb[0].mxu0 %v634
        %v3497 = vpop.f32.mrb[0].mxu0
        %v3498 = vadd.f32 %v3225, %v3497
        %v3499 = vpop.f32.mrb[0].mxu0
        %v3500 = vadd.f32 %v3227, %v3499
        %v3501 = vpop.f32.mrb[0].mxu0
        %v3502 = vadd.f32 %v3229, %v3501
        %v3503 = vpop.f32.mrb[0].mxu0
        %v3504 = vadd.f32 %v3231, %v3503
        %3505 = vmatprep.mubr.bf16.mxu0 %v641
        %3506 = vmatmul.mubr.bf16.gmra.mrb[0].mxu0 %v640
        %v3507 = vpop.f32.mrb[0].mxu0
        %v3508 = vadd.f32 %v3235, %v3507
        %v3509 = vpop.f32.mrb[0].mxu0
        %v3510 = vadd.f32 %v3237, %v3509
        %v3511 = vpop.f32.mrb[0].mxu0
        %v3512 = vadd.f32 %v3239, %v3511
        %v3513 = vpop.f32.mrb[0].mxu0
        %v3514 = vadd.f32 %v3241, %v3513
        %3515 = vmatprep.mubr.bf16.mxu0 %v647
        %3516 = vmatmul.mubr.bf16.gmra.mrb[0].mxu0 %v646
        %v3517 = vpop.f32.mrb[0].mxu0
        %v3518 = vadd.f32 %v3245, %v3517
        %v3519 = vpop.f32.mrb[0].mxu0
        %v3520 = vadd.f32 %v3247, %v3519
        %v3521 = vpop.f32.mrb[0].mxu0
        %v3522 = vadd.f32 %v3249, %v3521
        %v3523 = vpop.f32.mrb[0].mxu0
        %v3524 = vadd.f32 %v3251, %v3523
        %3525 = vmatprep.mubr.bf16.mxu0 %v653
        %3526 = vmatmul.mubr.bf16.gmra.mrb[0].mxu0 %v652
        %v3527 = vpop.f32.mrb[0].mxu0
        %v3528 = vadd.f32 %v3255, %v3527
        %v3529 = vpop.f32.mrb[0].mxu0
        %v3530 = vadd.f32 %v3257, %v3529
        %v3531 = vpop.f32.mrb[0].mxu0
        %v3532 = vadd.f32 %v3259, %v3531
        %v3533 = vpop.f32.mrb[0].mxu0
        %v3534 = vadd.f32 %v3261, %v3533
        %3535 = vmatprep.mubr.bf16.mxu0 %v659
        %3536 = vmatmul.mubr.bf16.gmra.mrb[0].mxu0 %v658
        %v3537 = vpop.f32.mrb[0].mxu0
        %v3538 = vadd.f32 %v3265, %v3537
        %v3539 = vpop.f32.mrb[0].mxu0
        %v3540 = vadd.f32 %v3267, %v3539
        %v3541 = vpop.f32.mrb[0].mxu0
        %v3542 = vadd.f32 %v3269, %v3541
        %v3543 = vpop.f32.mrb[0].mxu0
        %v3544 = vadd.f32 %v3271, %v3543
        %3545 = vmatprep.mubr.bf16.mxu0 %v665
        %3546 = vmatmul.mubr.bf16.gmra.mrb[0].mxu0 %v664
        %v3547 = vpop.f32.mrb[0].mxu0
        %v3548 = vadd.f32 %v3275, %v3547
        %v3549 = vpop.f32.mrb[0].mxu0
        %v3550 = vadd.f32 %v3277, %v3549
        %v3551 = vpop.f32.mrb[0].mxu0
        %v3552 = vadd.f32 %v3279, %v3551
        %v3553 = vpop.f32.mrb[0].mxu0
        %v3554 = vadd.f32 %v3281, %v3553
        %3555 = vmatprep.mubr.bf16.mxu0 %v671
        %3556 = vmatmul.mubr.bf16.gmra.mrb[0].mxu0 %v670
        %v3557 = vpop.f32.mrb[0].mxu0
        %v3558 = vadd.f32 %v3285, %v3557
        %v3559 = vpop.f32.mrb[0].mxu0
        %v3560 = vadd.f32 %v3287, %v3559
        %v3561 = vpop.f32.mrb[0].mxu0
        %v3562 = vadd.f32 %v3289, %v3561
        %v3563 = vpop.f32.mrb[0].mxu0
        %v3564 = vadd.f32 %v3291, %v3563
        %3565 = vdwg.mxu0
        %3566 = vmatprep.subr.bf16.mxu0 %v2509
        %3567 = vmatpush1.bf16.msra.mxu0 %v2508
        %3568 = vmatprep.subr.bf16.mxu0 %v2517
        %3569 = vmatpush1.bf16.msra.mxu0 %v2516
        %3570 = vmatprep.subr.bf16.mxu0 %v2525
        %3571 = vmatpush1.bf16.msra.mxu0 %v2524
        %3572 = vmatprep.subr.bf16.mxu0 %v2533
        %3573 = vmatpush1.bf16.msra.mxu0 %v2532
        %3574 = vmatprep.subr.bf16.mxu0 %v2541
        %3575 = vmatpush1.bf16.msra.mxu0 %v2540
        %3576 = vmatprep.subr.bf16.mxu0 %v2549
        %3577 = vmatpush1.bf16.msra.mxu0 %v2548
        %3578 = vmatprep.subr.bf16.mxu0 %v2557
        %3579 = vmatpush1.bf16.msra.mxu0 %v2556
        %3580 = vmatprep.subr.bf16.mxu0 %v2565
        %3581 = vmatpush1.bf16.msra.mxu0 %v2564
        %3582 = vmatprep.subr.bf16.mxu0 %v2573
        %3583 = vmatpush1.bf16.msra.mxu0 %v2572
        %3584 = vmatprep.subr.bf16.mxu0 %v2581
        %3585 = vmatpush1.bf16.msra.mxu0 %v2580
        %3586 = vmatprep.subr.bf16.mxu0 %v2589
        %3587 = vmatpush1.bf16.msra.mxu0 %v2588
        %3588 = vmatprep.subr.bf16.mxu0 %v2597
        %3589 = vmatpush1.bf16.msra.mxu0 %v2596
        %3590 = vmatprep.subr.bf16.mxu0 %v2605
        %3591 = vmatpush1.bf16.msra.mxu0 %v2604
        %3592 = vmatprep.subr.bf16.mxu0 %v2613
        %3593 = vmatpush1.bf16.msra.mxu0 %v2612
        %3594 = vmatprep.subr.bf16.mxu0 %v2621
        %3595 = vmatpush1.bf16.msra.mxu0 %v2620
        %3596 = vmatprep.subr.bf16.mxu0 %v2629
        %3597 = vmatpush1.bf16.msra.mxu0 %v2628
        %3598 = vmatprep.mubr.bf16.mxu0 %v535
        %3599 = vmatmul.mubr.bf16.gmra.mrb[0].mxu0 %v534
        %v3600 = vpop.f32.mrb[0].mxu0
        %v3601 = vadd.f32 %v3328, %v3600
        %v3602 = vpop.f32.mrb[0].mxu0
        %v3603 = vadd.f32 %v3330, %v3602
        %v3604 = vpop.f32.mrb[0].mxu0
        %v3605 = vadd.f32 %v3332, %v3604
        %v3606 = vpop.f32.mrb[0].mxu0
        %v3607 = vadd.f32 %v3334, %v3606
        %3608 = vmatprep.mubr.bf16.mxu0 %v541
        %3609 = vmatmul.mubr.bf16.gmra.mrb[0].mxu0 %v540
        %v3610 = vpop.f32.mrb[0].mxu0
        %v3611 = vadd.f32 %v3338, %v3610
        %v3612 = vpop.f32.mrb[0].mxu0
        %v3613 = vadd.f32 %v3340, %v3612
        %v3614 = vpop.f32.mrb[0].mxu0
        %v3615 = vadd.f32 %v3342, %v3614
        %v3616 = vpop.f32.mrb[0].mxu0
        %v3617 = vadd.f32 %v3344, %v3616
        %3618 = vmatprep.mubr.bf16.mxu0 %v547
        %3619 = vmatmul.mubr.bf16.gmra.mrb[0].mxu0 %v546
        %v3620 = vpop.f32.mrb[0].mxu0
        %v3621 = vadd.f32 %v3348, %v3620
        %v3622 = vpop.f32.mrb[0].mxu0
        %v3623 = vadd.f32 %v3350, %v3622
        %v3624 = vpop.f32.mrb[0].mxu0
        %v3625 = vadd.f32 %v3352, %v3624
        %v3626 = vpop.f32.mrb[0].mxu0
        %v3627 = vadd.f32 %v3354, %v3626
        %3628 = vmatprep.mubr.bf16.mxu0 %v553
        %3629 = vmatmul.mubr.bf16.gmra.mrb[0].mxu0 %v552
        %v3630 = vpop.f32.mrb[0].mxu0
        %v3631 = vadd.f32 %v3358, %v3630
        %v3632 = vpop.f32.mrb[0].mxu0
        %v3633 = vadd.f32 %v3360, %v3632
        %v3634 = vpop.f32.mrb[0].mxu0
        %v3635 = vadd.f32 %v3362, %v3634
        %v3636 = vpop.f32.mrb[0].mxu0
        %v3637 = vadd.f32 %v3364, %v3636
        %3638 = vmatprep.mubr.bf16.mxu0 %v559
        %3639 = vmatmul.mubr.bf16.gmra.mrb[0].mxu0 %v558
        %v3640 = vpop.f32.mrb[0].mxu0
        %v3641 = vadd.f32 %v3368, %v3640
        %v3642 = vpop.f32.mrb[0].mxu0
        %v3643 = vadd.f32 %v3370, %v3642
        %v3644 = vpop.f32.mrb[0].mxu0
        %v3645 = vadd.f32 %v3372, %v3644
        %v3646 = vpop.f32.mrb[0].mxu0
        %v3647 = vadd.f32 %v3374, %v3646
        %3648 = vmatprep.mubr.bf16.mxu0 %v565
        %3649 = vmatmul.mubr.bf16.gmra.mrb[0].mxu0 %v564
        %v3650 = vpop.f32.mrb[0].mxu0
        %v3651 = vadd.f32 %v3378, %v3650
        %v3652 = vpop.f32.mrb[0].mxu0
        %v3653 = vadd.f32 %v3380, %v3652
        %v3654 = vpop.f32.mrb[0].mxu0
        %v3655 = vadd.f32 %v3382, %v3654
        %v3656 = vpop.f32.mrb[0].mxu0
        %v3657 = vadd.f32 %v3384, %v3656
        %3658 = vmatprep.mubr.bf16.mxu0 %v571
        %3659 = vmatmul.mubr.bf16.gmra.mrb[0].mxu0 %v570
        %v3660 = vpop.f32.mrb[0].mxu0
        %v3661 = vadd.f32 %v3388, %v3660
        %v3662 = vpop.f32.mrb[0].mxu0
        %v3663 = vadd.f32 %v3390, %v3662
        %v3664 = vpop.f32.mrb[0].mxu0
        %v3665 = vadd.f32 %v3392, %v3664
        %v3666 = vpop.f32.mrb[0].mxu0
        %v3667 = vadd.f32 %v3394, %v3666
        %3668 = vmatprep.mubr.bf16.mxu0 %v577
        %3669 = vmatmul.mubr.bf16.gmra.mrb[0].mxu0 %v576
        %v3670 = vpop.f32.mrb[0].mxu0
        %v3671 = vadd.f32 %v3398, %v3670
        %v3672 = vpop.f32.mrb[0].mxu0
        %v3673 = vadd.f32 %v3400, %v3672
        %v3674 = vpop.f32.mrb[0].mxu0
        %v3675 = vadd.f32 %v3402, %v3674
        %v3676 = vpop.f32.mrb[0].mxu0
        %v3677 = vadd.f32 %v3404, %v3676
        %3678 = vmatprep.mubr.bf16.mxu0 %v583
        %3679 = vmatmul.mubr.bf16.gmra.mrb[0].mxu0 %v582
        %v3680 = vpop.f32.mrb[0].mxu0
        %v3681 = vadd.f32 %v3408, %v3680
        %v3682 = vpop.f32.mrb[0].mxu0
        %v3683 = vadd.f32 %v3410, %v3682
        %v3684 = vpop.f32.mrb[0].mxu0
        %v3685 = vadd.f32 %v3412, %v3684
        %v3686 = vpop.f32.mrb[0].mxu0
        %v3687 = vadd.f32 %v3414, %v3686
        %3688 = vmatprep.mubr.bf16.mxu0 %v589
        %3689 = vmatmul.mubr.bf16.gmra.mrb[0].mxu0 %v588
        %v3690 = vpop.f32.mrb[0].mxu0
        %v3691 = vadd.f32 %v3418, %v3690
        %v3692 = vpop.f32.mrb[0].mxu0
        %v3693 = vadd.f32 %v3420, %v3692
        %v3694 = vpop.f32.mrb[0].mxu0
        %v3695 = vadd.f32 %v3422, %v3694
        %v3696 = vpop.f32.mrb[0].mxu0
        %v3697 = vadd.f32 %v3424, %v3696
        %3698 = vmatprep.mubr.bf16.mxu0 %v595
        %3699 = vmatmul.mubr.bf16.gmra.mrb[0].mxu0 %v594
        %v3700 = vpop.f32.mrb[0].mxu0
        %v3701 = vadd.f32 %v3428, %v3700
        %v3702 = vpop.f32.mrb[0].mxu0
        %v3703 = vadd.f32 %v3430, %v3702
        %v3704 = vpop.f32.mrb[0].mxu0
        %v3705 = vadd.f32 %v3432, %v3704
        %v3706 = vpop.f32.mrb[0].mxu0
        %v3707 = vadd.f32 %v3434, %v3706
        %3708 = vmatprep.mubr.bf16.mxu0 %v601
        %3709 = vmatmul.mubr.bf16.gmra.mrb[0].mxu0 %v600
        %v3710 = vpop.f32.mrb[0].mxu0
        %v3711 = vadd.f32 %v3438, %v3710
        %v3712 = vpop.f32.mrb[0].mxu0
        %v3713 = vadd.f32 %v3440, %v3712
        %v3714 = vpop.f32.mrb[0].mxu0
        %v3715 = vadd.f32 %v3442, %v3714
        %v3716 = vpop.f32.mrb[0].mxu0
        %v3717 = vadd.f32 %v3444, %v3716
        %3718 = vmatprep.mubr.bf16.mxu0 %v607
        %3719 = vmatmul.mubr.bf16.gmra.mrb[0].mxu0 %v606
        %v3720 = vpop.f32.mrb[0].mxu0
        %v3721 = vadd.f32 %v3448, %v3720
        %v3722 = vpop.f32.mrb[0].mxu0
        %v3723 = vadd.f32 %v3450, %v3722
        %v3724 = vpop.f32.mrb[0].mxu0
        %v3725 = vadd.f32 %v3452, %v3724
        %v3726 = vpop.f32.mrb[0].mxu0
        %v3727 = vadd.f32 %v3454, %v3726
        %3728 = vmatprep.mubr.bf16.mxu0 %v613
        %3729 = vmatmul.mubr.bf16.gmra.mrb[0].mxu0 %v612
        %v3730 = vpop.f32.mrb[0].mxu0
        %v3731 = vadd.f32 %v3458, %v3730
        %v3732 = vpop.f32.mrb[0].mxu0
        %v3733 = vadd.f32 %v3460, %v3732
        %v3734 = vpop.f32.mrb[0].mxu0
        %v3735 = vadd.f32 %v3462, %v3734
        %v3736 = vpop.f32.mrb[0].mxu0
        %v3737 = vadd.f32 %v3464, %v3736
        %3738 = vmatprep.mubr.bf16.mxu0 %v619
        %3739 = vmatmul.mubr.bf16.gmra.mrb[0].mxu0 %v618
        %v3740 = vpop.f32.mrb[0].mxu0
        %v3741 = vadd.f32 %v3468, %v3740
        %v3742 = vpop.f32.mrb[0].mxu0
        %v3743 = vadd.f32 %v3470, %v3742
        %v3744 = vpop.f32.mrb[0].mxu0
        %v3745 = vadd.f32 %v3472, %v3744
        %v3746 = vpop.f32.mrb[0].mxu0
        %v3747 = vadd.f32 %v3474, %v3746
        %3748 = vmatprep.mubr.bf16.mxu0 %v625
        %3749 = vmatmul.mubr.bf16.gmra.mrb[0].mxu0 %v624
        %v3750 = vpop.f32.mrb[0].mxu0
        %v3751 = vadd.f32 %v3478, %v3750
        %v3752 = vpop.f32.mrb[0].mxu0
        %v3753 = vadd.f32 %v3480, %v3752
        %v3754 = vpop.f32.mrb[0].mxu0
        %v3755 = vadd.f32 %v3482, %v3754
        %v3756 = vpop.f32.mrb[0].mxu0
        %v3757 = vadd.f32 %v3484, %v3756
        %3758 = vmatprep.mubr.bf16.mxu0 %v631
        %3759 = vmatmul.mubr.bf16.gmra.mrb[0].mxu0 %v630
        %v3760 = vpop.f32.mrb[0].mxu0
        %v3761 = vadd.f32 %v3488, %v3760
        %v3762 = vpop.f32.mrb[0].mxu0
        %v3763 = vadd.f32 %v3490, %v3762
        %v3764 = vpop.f32.mrb[0].mxu0
        %v3765 = vadd.f32 %v3492, %v3764
        %v3766 = vpop.f32.mrb[0].mxu0
        %v3767 = vadd.f32 %v3494, %v3766
        %3768 = vmatprep.mubr.bf16.mxu0 %v637
        %3769 = vmatmul.mubr.bf16.gmra.mrb[0].mxu0 %v636
        %v3770 = vpop.f32.mrb[0].mxu0
        %v3771 = vadd.f32 %v3498, %v3770
        %v3772 = vpop.f32.mrb[0].mxu0
        %v3773 = vadd.f32 %v3500, %v3772
        %v3774 = vpop.f32.mrb[0].mxu0
        %v3775 = vadd.f32 %v3502, %v3774
        %v3776 = vpop.f32.mrb[0].mxu0
        %v3777 = vadd.f32 %v3504, %v3776
        %3778 = vmatprep.mubr.bf16.mxu0 %v643
        %3779 = vmatmul.mubr.bf16.gmra.mrb[0].mxu0 %v642
        %v3780 = vpop.f32.mrb[0].mxu0
        %v3781 = vadd.f32 %v3508, %v3780
        %v3782 = vpop.f32.mrb[0].mxu0
        %v3783 = vadd.f32 %v3510, %v3782
        %v3784 = vpop.f32.mrb[0].mxu0
        %v3785 = vadd.f32 %v3512, %v3784
        %v3786 = vpop.f32.mrb[0].mxu0
        %v3787 = vadd.f32 %v3514, %v3786
        %3788 = vmatprep.mubr.bf16.mxu0 %v649
        %3789 = vmatmul.mubr.bf16.gmra.mrb[0].mxu0 %v648
        %v3790 = vpop.f32.mrb[0].mxu0
        %v3791 = vadd.f32 %v3518, %v3790
        %v3792 = vpop.f32.mrb[0].mxu0
        %v3793 = vadd.f32 %v3520, %v3792
        %v3794 = vpop.f32.mrb[0].mxu0
        %v3795 = vadd.f32 %v3522, %v3794
        %v3796 = vpop.f32.mrb[0].mxu0
        %v3797 = vadd.f32 %v3524, %v3796
        %3798 = vmatprep.mubr.bf16.mxu0 %v655
        %3799 = vmatmul.mubr.bf16.gmra.mrb[0].mxu0 %v654
        %v3800 = vpop.f32.mrb[0].mxu0
        %v3801 = vadd.f32 %v3528, %v3800
        %v3802 = vpop.f32.mrb[0].mxu0
        %v3803 = vadd.f32 %v3530, %v3802
        %v3804 = vpop.f32.mrb[0].mxu0
        %v3805 = vadd.f32 %v3532, %v3804
        %v3806 = vpop.f32.mrb[0].mxu0
        %v3807 = vadd.f32 %v3534, %v3806
        %3808 = vmatprep.mubr.bf16.mxu0 %v661
        %3809 = vmatmul.mubr.bf16.gmra.mrb[0].mxu0 %v660
        %v3810 = vpop.f32.mrb[0].mxu0
        %v3811 = vadd.f32 %v3538, %v3810
        %v3812 = vpop.f32.mrb[0].mxu0
        %v3813 = vadd.f32 %v3540, %v3812
        %v3814 = vpop.f32.mrb[0].mxu0
        %v3815 = vadd.f32 %v3542, %v3814
        %v3816 = vpop.f32.mrb[0].mxu0
        %v3817 = vadd.f32 %v3544, %v3816
        %3818 = vmatprep.mubr.bf16.mxu0 %v667
        %3819 = vmatmul.mubr.bf16.gmra.mrb[0].mxu0 %v666
        %v3820 = vpop.f32.mrb[0].mxu0
        %v3821 = vadd.f32 %v3548, %v3820
        %v3822 = vpop.f32.mrb[0].mxu0
        %v3823 = vadd.f32 %v3550, %v3822
        %v3824 = vpop.f32.mrb[0].mxu0
        %v3825 = vadd.f32 %v3552, %v3824
        %v3826 = vpop.f32.mrb[0].mxu0
        %v3827 = vadd.f32 %v3554, %v3826
        %3828 = vmatprep.mubr.bf16.mxu0 %v673
        %3829 = vmatmul.mubr.bf16.gmra.mrb[0].mxu0 %v672
        %v3830 = vpop.f32.mrb[0].mxu0
        %v3831 = vadd.f32 %v3558, %v3830
        %v3832 = vpop.f32.mrb[0].mxu0
        %v3833 = vadd.f32 %v3560, %v3832
        %v3834 = vpop.f32.mrb[0].mxu0
        %v3835 = vadd.f32 %v3562, %v3834
        %v3836 = vpop.f32.mrb[0].mxu0
        %v3837 = vadd.f32 %v3564, %v3836
        %3838 = vdwg.mxu0
        %3839 = vmatprep.subr.bf16.mxu0 %v2255
        %3840 = vmatpush1.bf16.msra.mxu0 %v2254
        %3841 = vmatprep.subr.bf16.mxu0 %v2263
        %3842 = vmatpush1.bf16.msra.mxu0 %v2262
        %3843 = vmatprep.subr.bf16.mxu0 %v2271
        %3844 = vmatpush1.bf16.msra.mxu0 %v2270
        %3845 = vmatprep.subr.bf16.mxu0 %v2279
        %3846 = vmatpush1.bf16.msra.mxu0 %v2278
        %3847 = vmatprep.subr.bf16.mxu0 %v2287
        %3848 = vmatpush1.bf16.msra.mxu0 %v2286
        %3849 = vmatprep.subr.bf16.mxu0 %v2295
        %3850 = vmatpush1.bf16.msra.mxu0 %v2294
        %3851 = vmatprep.subr.bf16.mxu0 %v2303
        %3852 = vmatpush1.bf16.msra.mxu0 %v2302
        %3853 = vmatprep.subr.bf16.mxu0 %v2311
        %3854 = vmatpush1.bf16.msra.mxu0 %v2310
        %3855 = vmatprep.subr.bf16.mxu0 %v2319
        %3856 = vmatpush1.bf16.msra.mxu0 %v2318
        %3857 = vmatprep.subr.bf16.mxu0 %v2327
        %3858 = vmatpush1.bf16.msra.mxu0 %v2326
        %3859 = vmatprep.subr.bf16.mxu0 %v2335
        %3860 = vmatpush1.bf16.msra.mxu0 %v2334
        %3861 = vmatprep.subr.bf16.mxu0 %v2343
        %3862 = vmatpush1.bf16.msra.mxu0 %v2342
        %3863 = vmatprep.subr.bf16.mxu0 %v2351
        %3864 = vmatpush1.bf16.msra.mxu0 %v2350
        %3865 = vmatprep.subr.bf16.mxu0 %v2359
        %3866 = vmatpush1.bf16.msra.mxu0 %v2358
        %3867 = vmatprep.subr.bf16.mxu0 %v2367
        %3868 = vmatpush1.bf16.msra.mxu0 %v2366
        %3869 = vmatprep.subr.bf16.mxu0 %v2375
        %3870 = vmatpush1.bf16.msra.mxu0 %v2374
        %3871 = vmatprep.mubr.bf16.mxu0 %v531
        %3872 = vmatmul.mubr.bf16.gmra.mrb[0].mxu0 %v530
        %v3873 = vpop.f32.mrb[0].mxu0
        %v3874 = vadd.f32 %v1071, %v3873
        %v3875 = vpop.f32.mrb[0].mxu0
        %v3876 = vadd.f32 %v1075, %v3875
        %v3877 = vpop.f32.mrb[0].mxu0
        %v3878 = vadd.f32 %v1071, %v3877
        %v3879 = vpop.f32.mrb[0].mxu0
        %v3880 = vadd.f32 %v1075, %v3879
        %3881 = vmatprep.mubr.bf16.mxu0 %v537
        %3882 = vmatmul.mubr.bf16.gmra.mrb[0].mxu0 %v536
        %v3883 = vpop.f32.mrb[0].mxu0
        %v3884 = vadd.f32 %v1071, %v3883
        %v3885 = vpop.f32.mrb[0].mxu0
        %v3886 = vadd.f32 %v1075, %v3885
        %v3887 = vpop.f32.mrb[0].mxu0
        %v3888 = vadd.f32 %v1071, %v3887
        %v3889 = vpop.f32.mrb[0].mxu0
        %v3890 = vadd.f32 %v1075, %v3889
        %3891 = vmatprep.mubr.bf16.mxu0 %v543
        %3892 = vmatmul.mubr.bf16.gmra.mrb[0].mxu0 %v542
        %v3893 = vpop.f32.mrb[0].mxu0
        %v3894 = vadd.f32 %v1071, %v3893
        %v3895 = vpop.f32.mrb[0].mxu0
        %v3896 = vadd.f32 %v1075, %v3895
        %v3897 = vpop.f32.mrb[0].mxu0
        %v3898 = vadd.f32 %v1071, %v3897
        %v3899 = vpop.f32.mrb[0].mxu0
        %v3900 = vadd.f32 %v1075, %v3899
        %3901 = vmatprep.mubr.bf16.mxu0 %v549
        %3902 = vmatmul.mubr.bf16.gmra.mrb[0].mxu0 %v548
        %v3903 = vpop.f32.mrb[0].mxu0
        %v3904 = vadd.f32 %v1071, %v3903
        %v3905 = vpop.f32.mrb[0].mxu0
        %v3906 = vadd.f32 %v1075, %v3905
        %v3907 = vpop.f32.mrb[0].mxu0
        %v3908 = vadd.f32 %v1071, %v3907
        %v3909 = vpop.f32.mrb[0].mxu0
        %v3910 = vadd.f32 %v1075, %v3909
        %3911 = vmatprep.mubr.bf16.mxu0 %v555
        %3912 = vmatmul.mubr.bf16.gmra.mrb[0].mxu0 %v554
        %v3913 = vpop.f32.mrb[0].mxu0
        %v3914 = vadd.f32 %v1071, %v3913
        %v3915 = vpop.f32.mrb[0].mxu0
        %v3916 = vadd.f32 %v1075, %v3915
        %v3917 = vpop.f32.mrb[0].mxu0
        %v3918 = vadd.f32 %v1071, %v3917
        %v3919 = vpop.f32.mrb[0].mxu0
        %v3920 = vadd.f32 %v1075, %v3919
        %3921 = vmatprep.mubr.bf16.mxu0 %v561
        %3922 = vmatmul.mubr.bf16.gmra.mrb[0].mxu0 %v560
        %v3923 = vpop.f32.mrb[0].mxu0
        %v3924 = vadd.f32 %v1071, %v3923
        %v3925 = vpop.f32.mrb[0].mxu0
        %v3926 = vadd.f32 %v1075, %v3925
        %v3927 = vpop.f32.mrb[0].mxu0
        %v3928 = vadd.f32 %v1071, %v3927
        %v3929 = vpop.f32.mrb[0].mxu0
        %v3930 = vadd.f32 %v1075, %v3929
        %3931 = vmatprep.mubr.bf16.mxu0 %v567
        %3932 = vmatmul.mubr.bf16.gmra.mrb[0].mxu0 %v566
        %v3933 = vpop.f32.mrb[0].mxu0
        %v3934 = vadd.f32 %v1071, %v3933
        %v3935 = vpop.f32.mrb[0].mxu0
        %v3936 = vadd.f32 %v1075, %v3935
        %v3937 = vpop.f32.mrb[0].mxu0
        %v3938 = vadd.f32 %v1071, %v3937
        %v3939 = vpop.f32.mrb[0].mxu0
        %v3940 = vadd.f32 %v1075, %v3939
        %3941 = vmatprep.mubr.bf16.mxu0 %v573
        %3942 = vmatmul.mubr.bf16.gmra.mrb[0].mxu0 %v572
        %v3943 = vpop.f32.mrb[0].mxu0
        %v3944 = vadd.f32 %v1071, %v3943
        %v3945 = vpop.f32.mrb[0].mxu0
        %v3946 = vadd.f32 %v1075, %v3945
        %v3947 = vpop.f32.mrb[0].mxu0
        %v3948 = vadd.f32 %v1071, %v3947
        %v3949 = vpop.f32.mrb[0].mxu0
        %v3950 = vadd.f32 %v1075, %v3949
        %3951 = vmatprep.mubr.bf16.mxu0 %v579
        %3952 = vmatmul.mubr.bf16.gmra.mrb[0].mxu0 %v578
        %v3953 = vpop.f32.mrb[0].mxu0
        %v3954 = vadd.f32 %v1071, %v3953
        %v3955 = vpop.f32.mrb[0].mxu0
        %v3956 = vadd.f32 %v1075, %v3955
        %v3957 = vpop.f32.mrb[0].mxu0
        %v3958 = vadd.f32 %v1071, %v3957
        %v3959 = vpop.f32.mrb[0].mxu0
        %v3960 = vadd.f32 %v1075, %v3959
        %3961 = vmatprep.mubr.bf16.mxu0 %v585
        %3962 = vmatmul.mubr.bf16.gmra.mrb[0].mxu0 %v584
        %v3963 = vpop.f32.mrb[0].mxu0
        %v3964 = vadd.f32 %v1071, %v3963
        %v3965 = vpop.f32.mrb[0].mxu0
        %v3966 = vadd.f32 %v1075, %v3965
        %v3967 = vpop.f32.mrb[0].mxu0
        %v3968 = vadd.f32 %v1071, %v3967
        %v3969 = vpop.f32.mrb[0].mxu0
        %v3970 = vadd.f32 %v1075, %v3969
        %3971 = vmatprep.mubr.bf16.mxu0 %v591
        %3972 = vmatmul.mubr.bf16.gmra.mrb[0].mxu0 %v590
        %v3973 = vpop.f32.mrb[0].mxu0
        %v3974 = vadd.f32 %v1071, %v3973
        %v3975 = vpop.f32.mrb[0].mxu0
        %v3976 = vadd.f32 %v1075, %v3975
        %v3977 = vpop.f32.mrb[0].mxu0
        %v3978 = vadd.f32 %v1071, %v3977
        %v3979 = vpop.f32.mrb[0].mxu0
        %v3980 = vadd.f32 %v1075, %v3979
        %3981 = vmatprep.mubr.bf16.mxu0 %v597
        %3982 = vmatmul.mubr.bf16.gmra.mrb[0].mxu0 %v596
        %v3983 = vpop.f32.mrb[0].mxu0
        %v3984 = vadd.f32 %v1071, %v3983
        %v3985 = vpop.f32.mrb[0].mxu0
        %v3986 = vadd.f32 %v1075, %v3985
        %v3987 = vpop.f32.mrb[0].mxu0
        %v3988 = vadd.f32 %v1071, %v3987
        %v3989 = vpop.f32.mrb[0].mxu0
        %v3990 = vadd.f32 %v1075, %v3989
        %3991 = vmatprep.mubr.bf16.mxu0 %v603
        %3992 = vmatmul.mubr.bf16.gmra.mrb[0].mxu0 %v602
        %v3993 = vpop.f32.mrb[0].mxu0
        %v3994 = vadd.f32 %v1071, %v3993
        %v3995 = vpop.f32.mrb[0].mxu0
        %v3996 = vadd.f32 %v1075, %v3995
        %v3997 = vpop.f32.mrb[0].mxu0
        %v3998 = vadd.f32 %v1071, %v3997
        %v3999 = vpop.f32.mrb[0].mxu0
        %v4000 = vadd.f32 %v1075, %v3999
        %4001 = vmatprep.mubr.bf16.mxu0 %v609
        %4002 = vmatmul.mubr.bf16.gmra.mrb[0].mxu0 %v608
        %v4003 = vpop.f32.mrb[0].mxu0
        %v4004 = vadd.f32 %v1071, %v4003
        %v4005 = vpop.f32.mrb[0].mxu0
        %v4006 = vadd.f32 %v1075, %v4005
        %v4007 = vpop.f32.mrb[0].mxu0
        %v4008 = vadd.f32 %v1071, %v4007
        %v4009 = vpop.f32.mrb[0].mxu0
        %v4010 = vadd.f32 %v1075, %v4009
        %4011 = vmatprep.mubr.bf16.mxu0 %v615
        %4012 = vmatmul.mubr.bf16.gmra.mrb[0].mxu0 %v614
        %v4013 = vpop.f32.mrb[0].mxu0
        %v4014 = vadd.f32 %v1071, %v4013
        %v4015 = vpop.f32.mrb[0].mxu0
        %v4016 = vadd.f32 %v1075, %v4015
        %v4017 = vpop.f32.mrb[0].mxu0
        %v4018 = vadd.f32 %v1071, %v4017
        %v4019 = vpop.f32.mrb[0].mxu0
        %v4020 = vadd.f32 %v1075, %v4019
        %4021 = vmatprep.mubr.bf16.mxu0 %v621
        %4022 = vmatmul.mubr.bf16.gmra.mrb[0].mxu0 %v620
        %v4023 = vpop.f32.mrb[0].mxu0
        %v4024 = vadd.f32 %v1071, %v4023
        %v4025 = vpop.f32.mrb[0].mxu0
        %v4026 = vadd.f32 %v1075, %v4025
        %v4027 = vpop.f32.mrb[0].mxu0
        %v4028 = vadd.f32 %v1071, %v4027
        %v4029 = vpop.f32.mrb[0].mxu0
        %v4030 = vadd.f32 %v1075, %v4029
        %4031 = vmatprep.mubr.bf16.mxu0 %v627
        %4032 = vmatmul.mubr.bf16.gmra.mrb[0].mxu0 %v626
        %v4033 = vpop.f32.mrb[0].mxu0
        %v4034 = vadd.f32 %v1071, %v4033
        %v4035 = vpop.f32.mrb[0].mxu0
        %v4036 = vadd.f32 %v1075, %v4035
        %v4037 = vpop.f32.mrb[0].mxu0
        %v4038 = vadd.f32 %v1071, %v4037
        %v4039 = vpop.f32.mrb[0].mxu0
        %v4040 = vadd.f32 %v1075, %v4039
        %4041 = vmatprep.mubr.bf16.mxu0 %v633
        %4042 = vmatmul.mubr.bf16.gmra.mrb[0].mxu0 %v632
        %v4043 = vpop.f32.mrb[0].mxu0
        %v4044 = vadd.f32 %v1071, %v4043
        %v4045 = vpop.f32.mrb[0].mxu0
        %v4046 = vadd.f32 %v1075, %v4045
        %v4047 = vpop.f32.mrb[0].mxu0
        %v4048 = vadd.f32 %v1071, %v4047
        %v4049 = vpop.f32.mrb[0].mxu0
        %v4050 = vadd.f32 %v1075, %v4049
        %4051 = vmatprep.mubr.bf16.mxu0 %v639
        %4052 = vmatmul.mubr.bf16.gmra.mrb[0].mxu0 %v638
        %v4053 = vpop.f32.mrb[0].mxu0
        %v4054 = vadd.f32 %v1071, %v4053
        %v4055 = vpop.f32.mrb[0].mxu0
        %v4056 = vadd.f32 %v1075, %v4055
        %v4057 = vpop.f32.mrb[0].mxu0
        %v4058 = vadd.f32 %v1071, %v4057
        %v4059 = vpop.f32.mrb[0].mxu0
        %v4060 = vadd.f32 %v1075, %v4059
        %4061 = vmatprep.mubr.bf16.mxu0 %v645
        %4062 = vmatmul.mubr.bf16.gmra.mrb[0].mxu0 %v644
        %v4063 = vpop.f32.mrb[0].mxu0
        %v4064 = vadd.f32 %v1071, %v4063
        %v4065 = vpop.f32.mrb[0].mxu0
        %v4066 = vadd.f32 %v1075, %v4065
        %v4067 = vpop.f32.mrb[0].mxu0
        %v4068 = vadd.f32 %v1071, %v4067
        %v4069 = vpop.f32.mrb[0].mxu0
        %v4070 = vadd.f32 %v1075, %v4069
        %4071 = vmatprep.mubr.bf16.mxu0 %v651
        %4072 = vmatmul.mubr.bf16.gmra.mrb[0].mxu0 %v650
        %v4073 = vpop.f32.mrb[0].mxu0
        %v4074 = vadd.f32 %v1071, %v4073
        %v4075 = vpop.f32.mrb[0].mxu0
        %v4076 = vadd.f32 %v1075, %v4075
        %v4077 = vpop.f32.mrb[0].mxu0
        %v4078 = vadd.f32 %v1071, %v4077
        %v4079 = vpop.f32.mrb[0].mxu0
        %v4080 = vadd.f32 %v1075, %v4079
        %4081 = vmatprep.mubr.bf16.mxu0 %v657
        %4082 = vmatmul.mubr.bf16.gmra.mrb[0].mxu0 %v656
        %v4083 = vpop.f32.mrb[0].mxu0
        %v4084 = vadd.f32 %v1071, %v4083
        %v4085 = vpop.f32.mrb[0].mxu0
        %v4086 = vadd.f32 %v1075, %v4085
        %v4087 = vpop.f32.mrb[0].mxu0
        %v4088 = vadd.f32 %v1071, %v4087
        %v4089 = vpop.f32.mrb[0].mxu0
        %v4090 = vadd.f32 %v1075, %v4089
        %4091 = vmatprep.mubr.bf16.mxu0 %v663
        %4092 = vmatmul.mubr.bf16.gmra.mrb[0].mxu0 %v662
        %v4093 = vpop.f32.mrb[0].mxu0
        %v4094 = vadd.f32 %v1071, %v4093
        %v4095 = vpop.f32.mrb[0].mxu0
        %v4096 = vadd.f32 %v1075, %v4095
        %v4097 = vpop.f32.mrb[0].mxu0
        %v4098 = vadd.f32 %v1071, %v4097
        %v4099 = vpop.f32.mrb[0].mxu0
        %v4100 = vadd.f32 %v1075, %v4099
        %4101 = vmatprep.mubr.bf16.mxu0 %v669
        %4102 = vmatmul.mubr.bf16.gmra.mrb[0].mxu0 %v668
        %v4103 = vpop.f32.mrb[0].mxu0
        %v4104 = vadd.f32 %v1071, %v4103
        %v4105 = vpop.f32.mrb[0].mxu0
        %v4106 = vadd.f32 %v1075, %v4105
        %v4107 = vpop.f32.mrb[0].mxu0
        %v4108 = vadd.f32 %v1071, %v4107
        %v4109 = vpop.f32.mrb[0].mxu0
        %v4110 = vadd.f32 %v1075, %v4109
        %4111 = vdwg.mxu0
        %4112 = vmatprep.subr.bf16.mxu0 %v2383
        %4113 = vmatpush1.bf16.msra.mxu0 %v2382
        %4114 = vmatprep.subr.bf16.mxu0 %v2391
        %4115 = vmatpush1.bf16.msra.mxu0 %v2390
        %4116 = vmatprep.subr.bf16.mxu0 %v2399
        %4117 = vmatpush1.bf16.msra.mxu0 %v2398
        %4118 = vmatprep.subr.bf16.mxu0 %v2407
        %4119 = vmatpush1.bf16.msra.mxu0 %v2406
        %4120 = vmatprep.subr.bf16.mxu0 %v2415
        %4121 = vmatpush1.bf16.msra.mxu0 %v2414
        %4122 = vmatprep.subr.bf16.mxu0 %v2423
        %4123 = vmatpush1.bf16.msra.mxu0 %v2422
        %4124 = vmatprep.subr.bf16.mxu0 %v2431
        %4125 = vmatpush1.bf16.msra.mxu0 %v2430
        %4126 = vmatprep.subr.bf16.mxu0 %v2439
        %4127 = vmatpush1.bf16.msra.mxu0 %v2438
        %4128 = vmatprep.subr.bf16.mxu0 %v2447
        %4129 = vmatpush1.bf16.msra.mxu0 %v2446
        %4130 = vmatprep.subr.bf16.mxu0 %v2455
        %4131 = vmatpush1.bf16.msra.mxu0 %v2454
        %4132 = vmatprep.subr.bf16.mxu0 %v2463
        %4133 = vmatpush1.bf16.msra.mxu0 %v2462
        %4134 = vmatprep.subr.bf16.mxu0 %v2471
        %4135 = vmatpush1.bf16.msra.mxu0 %v2470
        %4136 = vmatprep.subr.bf16.mxu0 %v2479
        %4137 = vmatpush1.bf16.msra.mxu0 %v2478
        %4138 = vmatprep.subr.bf16.mxu0 %v2487
        %4139 = vmatpush1.bf16.msra.mxu0 %v2486
        %4140 = vmatprep.subr.bf16.mxu0 %v2495
        %4141 = vmatpush1.bf16.msra.mxu0 %v2494
        %4142 = vmatprep.subr.bf16.mxu0 %v2503
        %4143 = vmatpush1.bf16.msra.mxu0 %v2502
        %4144 = vmatprep.mubr.bf16.mxu0 %v533
        %4145 = vmatmul.mubr.bf16.gmra.mrb[0].mxu0 %v532
        %v4146 = vpop.f32.mrb[0].mxu0
        %v4147 = vadd.f32 %v3874, %v4146
        %v4148 = vpop.f32.mrb[0].mxu0
        %v4149 = vadd.f32 %v3876, %v4148
        %v4150 = vpop.f32.mrb[0].mxu0
        %v4151 = vadd.f32 %v3878, %v4150
        %v4152 = vpop.f32.mrb[0].mxu0
        %v4153 = vadd.f32 %v3880, %v4152
        %4154 = vmatprep.mubr.bf16.mxu0 %v539
        %4155 = vmatmul.mubr.bf16.gmra.mrb[0].mxu0 %v538
        %v4156 = vpop.f32.mrb[0].mxu0
        %v4157 = vadd.f32 %v3884, %v4156
        %v4158 = vpop.f32.mrb[0].mxu0
        %v4159 = vadd.f32 %v3886, %v4158
        %v4160 = vpop.f32.mrb[0].mxu0
        %v4161 = vadd.f32 %v3888, %v4160
        %v4162 = vpop.f32.mrb[0].mxu0
        %v4163 = vadd.f32 %v3890, %v4162
        %4164 = vmatprep.mubr.bf16.mxu0 %v545
        %4165 = vmatmul.mubr.bf16.gmra.mrb[0].mxu0 %v544
        %v4166 = vpop.f32.mrb[0].mxu0
        %v4167 = vadd.f32 %v3894, %v4166
        %v4168 = vpop.f32.mrb[0].mxu0
        %v4169 = vadd.f32 %v3896, %v4168
        %v4170 = vpop.f32.mrb[0].mxu0
        %v4171 = vadd.f32 %v3898, %v4170
        %v4172 = vpop.f32.mrb[0].mxu0
        %v4173 = vadd.f32 %v3900, %v4172
        %4174 = vmatprep.mubr.bf16.mxu0 %v551
        %4175 = vmatmul.mubr.bf16.gmra.mrb[0].mxu0 %v550
        %v4176 = vpop.f32.mrb[0].mxu0
        %v4177 = vadd.f32 %v3904, %v4176
        %v4178 = vpop.f32.mrb[0].mxu0
        %v4179 = vadd.f32 %v3906, %v4178
        %v4180 = vpop.f32.mrb[0].mxu0
        %v4181 = vadd.f32 %v3908, %v4180
        %v4182 = vpop.f32.mrb[0].mxu0
        %v4183 = vadd.f32 %v3910, %v4182
        %4184 = vmatprep.mubr.bf16.mxu0 %v557
        %4185 = vmatmul.mubr.bf16.gmra.mrb[0].mxu0 %v556
        %v4186 = vpop.f32.mrb[0].mxu0
        %v4187 = vadd.f32 %v3914, %v4186
        %v4188 = vpop.f32.mrb[0].mxu0
        %v4189 = vadd.f32 %v3916, %v4188
        %v4190 = vpop.f32.mrb[0].mxu0
        %v4191 = vadd.f32 %v3918, %v4190
        %v4192 = vpop.f32.mrb[0].mxu0
        %v4193 = vadd.f32 %v3920, %v4192
        %4194 = vmatprep.mubr.bf16.mxu0 %v563
        %4195 = vmatmul.mubr.bf16.gmra.mrb[0].mxu0 %v562
        %v4196 = vpop.f32.mrb[0].mxu0
        %v4197 = vadd.f32 %v3924, %v4196
        %v4198 = vpop.f32.mrb[0].mxu0
        %v4199 = vadd.f32 %v3926, %v4198
        %v4200 = vpop.f32.mrb[0].mxu0
        %v4201 = vadd.f32 %v3928, %v4200
        %v4202 = vpop.f32.mrb[0].mxu0
        %v4203 = vadd.f32 %v3930, %v4202
        %4204 = vmatprep.mubr.bf16.mxu0 %v569
        %4205 = vmatmul.mubr.bf16.gmra.mrb[0].mxu0 %v568
        %v4206 = vpop.f32.mrb[0].mxu0
        %v4207 = vadd.f32 %v3934, %v4206
        %v4208 = vpop.f32.mrb[0].mxu0
        %v4209 = vadd.f32 %v3936, %v4208
        %v4210 = vpop.f32.mrb[0].mxu0
        %v4211 = vadd.f32 %v3938, %v4210
        %v4212 = vpop.f32.mrb[0].mxu0
        %v4213 = vadd.f32 %v3940, %v4212
        %4214 = vmatprep.mubr.bf16.mxu0 %v575
        %4215 = vmatmul.mubr.bf16.gmra.mrb[0].mxu0 %v574
        %v4216 = vpop.f32.mrb[0].mxu0
        %v4217 = vadd.f32 %v3944, %v4216
        %v4218 = vpop.f32.mrb[0].mxu0
        %v4219 = vadd.f32 %v3946, %v4218
        %v4220 = vpop.f32.mrb[0].mxu0
        %v4221 = vadd.f32 %v3948, %v4220
        %v4222 = vpop.f32.mrb[0].mxu0
        %v4223 = vadd.f32 %v3950, %v4222
        %4224 = vmatprep.mubr.bf16.mxu0 %v581
        %4225 = vmatmul.mubr.bf16.gmra.mrb[0].mxu0 %v580
        %v4226 = vpop.f32.mrb[0].mxu0
        %v4227 = vadd.f32 %v3954, %v4226
        %v4228 = vpop.f32.mrb[0].mxu0
        %v4229 = vadd.f32 %v3956, %v4228
        %v4230 = vpop.f32.mrb[0].mxu0
        %v4231 = vadd.f32 %v3958, %v4230
        %v4232 = vpop.f32.mrb[0].mxu0
        %v4233 = vadd.f32 %v3960, %v4232
        %4234 = vmatprep.mubr.bf16.mxu0 %v587
        %4235 = vmatmul.mubr.bf16.gmra.mrb[0].mxu0 %v586
        %v4236 = vpop.f32.mrb[0].mxu0
        %v4237 = vadd.f32 %v3964, %v4236
        %v4238 = vpop.f32.mrb[0].mxu0
        %v4239 = vadd.f32 %v3966, %v4238
        %v4240 = vpop.f32.mrb[0].mxu0
        %v4241 = vadd.f32 %v3968, %v4240
        %v4242 = vpop.f32.mrb[0].mxu0
        %v4243 = vadd.f32 %v3970, %v4242
        %4244 = vmatprep.mubr.bf16.mxu0 %v593
        %4245 = vmatmul.mubr.bf16.gmra.mrb[0].mxu0 %v592
        %v4246 = vpop.f32.mrb[0].mxu0
        %v4247 = vadd.f32 %v3974, %v4246
        %v4248 = vpop.f32.mrb[0].mxu0
        %v4249 = vadd.f32 %v3976, %v4248
        %v4250 = vpop.f32.mrb[0].mxu0
        %v4251 = vadd.f32 %v3978, %v4250
        %v4252 = vpop.f32.mrb[0].mxu0
        %v4253 = vadd.f32 %v3980, %v4252
        %4254 = vmatprep.mubr.bf16.mxu0 %v599
        %4255 = vmatmul.mubr.bf16.gmra.mrb[0].mxu0 %v598
        %v4256 = vpop.f32.mrb[0].mxu0
        %v4257 = vadd.f32 %v3984, %v4256
        %v4258 = vpop.f32.mrb[0].mxu0
        %v4259 = vadd.f32 %v3986, %v4258
        %v4260 = vpop.f32.mrb[0].mxu0
        %v4261 = vadd.f32 %v3988, %v4260
        %v4262 = vpop.f32.mrb[0].mxu0
        %v4263 = vadd.f32 %v3990, %v4262
        %4264 = vmatprep.mubr.bf16.mxu0 %v605
        %4265 = vmatmul.mubr.bf16.gmra.mrb[0].mxu0 %v604
        %v4266 = vpop.f32.mrb[0].mxu0
        %v4267 = vadd.f32 %v3994, %v4266
        %v4268 = vpop.f32.mrb[0].mxu0
        %v4269 = vadd.f32 %v3996, %v4268
        %v4270 = vpop.f32.mrb[0].mxu0
        %v4271 = vadd.f32 %v3998, %v4270
        %v4272 = vpop.f32.mrb[0].mxu0
        %v4273 = vadd.f32 %v4000, %v4272
        %4274 = vmatprep.mubr.bf16.mxu0 %v611
        %4275 = vmatmul.mubr.bf16.gmra.mrb[0].mxu0 %v610
        %v4276 = vpop.f32.mrb[0].mxu0
        %v4277 = vadd.f32 %v4004, %v4276
        %v4278 = vpop.f32.mrb[0].mxu0
        %v4279 = vadd.f32 %v4006, %v4278
        %v4280 = vpop.f32.mrb[0].mxu0
        %v4281 = vadd.f32 %v4008, %v4280
        %v4282 = vpop.f32.mrb[0].mxu0
        %v4283 = vadd.f32 %v4010, %v4282
        %4284 = vmatprep.mubr.bf16.mxu0 %v617
        %4285 = vmatmul.mubr.bf16.gmra.mrb[0].mxu0 %v616
        %v4286 = vpop.f32.mrb[0].mxu0
        %v4287 = vadd.f32 %v4014, %v4286
        %v4288 = vpop.f32.mrb[0].mxu0
        %v4289 = vadd.f32 %v4016, %v4288
        %v4290 = vpop.f32.mrb[0].mxu0
        %v4291 = vadd.f32 %v4018, %v4290
        %v4292 = vpop.f32.mrb[0].mxu0
        %v4293 = vadd.f32 %v4020, %v4292
        %4294 = vmatprep.mubr.bf16.mxu0 %v623
        %4295 = vmatmul.mubr.bf16.gmra.mrb[0].mxu0 %v622
        %v4296 = vpop.f32.mrb[0].mxu0
        %v4297 = vadd.f32 %v4024, %v4296
        %v4298 = vpop.f32.mrb[0].mxu0
        %v4299 = vadd.f32 %v4026, %v4298
        %v4300 = vpop.f32.mrb[0].mxu0
        %v4301 = vadd.f32 %v4028, %v4300
        %v4302 = vpop.f32.mrb[0].mxu0
        %v4303 = vadd.f32 %v4030, %v4302
        %4304 = vmatprep.mubr.bf16.mxu0 %v629
        %4305 = vmatmul.mubr.bf16.gmra.mrb[0].mxu0 %v628
        %v4306 = vpop.f32.mrb[0].mxu0
        %v4307 = vadd.f32 %v4034, %v4306
        %v4308 = vpop.f32.mrb[0].mxu0
        %v4309 = vadd.f32 %v4036, %v4308
        %v4310 = vpop.f32.mrb[0].mxu0
        %v4311 = vadd.f32 %v4038, %v4310
        %v4312 = vpop.f32.mrb[0].mxu0
        %v4313 = vadd.f32 %v4040, %v4312
        %4314 = vmatprep.mubr.bf16.mxu0 %v635
        %4315 = vmatmul.mubr.bf16.gmra.mrb[0].mxu0 %v634
        %v4316 = vpop.f32.mrb[0].mxu0
        %v4317 = vadd.f32 %v4044, %v4316
        %v4318 = vpop.f32.mrb[0].mxu0
        %v4319 = vadd.f32 %v4046, %v4318
        %v4320 = vpop.f32.mrb[0].mxu0
        %v4321 = vadd.f32 %v4048, %v4320
        %v4322 = vpop.f32.mrb[0].mxu0
        %v4323 = vadd.f32 %v4050, %v4322
        %4324 = vmatprep.mubr.bf16.mxu0 %v641
        %4325 = vmatmul.mubr.bf16.gmra.mrb[0].mxu0 %v640
        %v4326 = vpop.f32.mrb[0].mxu0
        %v4327 = vadd.f32 %v4054, %v4326
        %v4328 = vpop.f32.mrb[0].mxu0
        %v4329 = vadd.f32 %v4056, %v4328
        %v4330 = vpop.f32.mrb[0].mxu0
        %v4331 = vadd.f32 %v4058, %v4330
        %v4332 = vpop.f32.mrb[0].mxu0
        %v4333 = vadd.f32 %v4060, %v4332
        %4334 = vmatprep.mubr.bf16.mxu0 %v647
        %4335 = vmatmul.mubr.bf16.gmra.mrb[0].mxu0 %v646
        %v4336 = vpop.f32.mrb[0].mxu0
        %v4337 = vadd.f32 %v4064, %v4336
        %v4338 = vpop.f32.mrb[0].mxu0
        %v4339 = vadd.f32 %v4066, %v4338
        %v4340 = vpop.f32.mrb[0].mxu0
        %v4341 = vadd.f32 %v4068, %v4340
        %v4342 = vpop.f32.mrb[0].mxu0
        %v4343 = vadd.f32 %v4070, %v4342
        %4344 = vmatprep.mubr.bf16.mxu0 %v653
        %4345 = vmatmul.mubr.bf16.gmra.mrb[0].mxu0 %v652
        %v4346 = vpop.f32.mrb[0].mxu0
        %v4347 = vadd.f32 %v4074, %v4346
        %v4348 = vpop.f32.mrb[0].mxu0
        %v4349 = vadd.f32 %v4076, %v4348
        %v4350 = vpop.f32.mrb[0].mxu0
        %v4351 = vadd.f32 %v4078, %v4350
        %v4352 = vpop.f32.mrb[0].mxu0
        %v4353 = vadd.f32 %v4080, %v4352
        %4354 = vmatprep.mubr.bf16.mxu0 %v659
        %4355 = vmatmul.mubr.bf16.gmra.mrb[0].mxu0 %v658
        %v4356 = vpop.f32.mrb[0].mxu0
        %v4357 = vadd.f32 %v4084, %v4356
        %v4358 = vpop.f32.mrb[0].mxu0
        %v4359 = vadd.f32 %v4086, %v4358
        %v4360 = vpop.f32.mrb[0].mxu0
        %v4361 = vadd.f32 %v4088, %v4360
        %v4362 = vpop.f32.mrb[0].mxu0
        %v4363 = vadd.f32 %v4090, %v4362
        %4364 = vmatprep.mubr.bf16.mxu0 %v665
        %4365 = vmatmul.mubr.bf16.gmra.mrb[0].mxu0 %v664
        %v4366 = vpop.f32.mrb[0].mxu0
        %v4367 = vadd.f32 %v4094, %v4366
        %v4368 = vpop.f32.mrb[0].mxu0
        %v4369 = vadd.f32 %v4096, %v4368
        %v4370 = vpop.f32.mrb[0].mxu0
        %v4371 = vadd.f32 %v4098, %v4370
        %v4372 = vpop.f32.mrb[0].mxu0
        %v4373 = vadd.f32 %v4100, %v4372
        %4374 = vmatprep.mubr.bf16.mxu0 %v671
        %4375 = vmatmul.mubr.bf16.gmra.mrb[0].mxu0 %v670
        %v4376 = vpop.f32.mrb[0].mxu0
        %v4377 = vadd.f32 %v4104, %v4376
        %v4378 = vpop.f32.mrb[0].mxu0
        %v4379 = vadd.f32 %v4106, %v4378
        %v4380 = vpop.f32.mrb[0].mxu0
        %v4381 = vadd.f32 %v4108, %v4380
        %v4382 = vpop.f32.mrb[0].mxu0
        %v4383 = vadd.f32 %v4110, %v4382
        %4384 = vdwg.mxu0
        %4385 = vmatprep.subr.bf16.mxu0 %v2511
        %4386 = vmatpush1.bf16.msra.mxu0 %v2510
        %4387 = vmatprep.subr.bf16.mxu0 %v2519
        %4388 = vmatpush1.bf16.msra.mxu0 %v2518
        %4389 = vmatprep.subr.bf16.mxu0 %v2527
        %4390 = vmatpush1.bf16.msra.mxu0 %v2526
        %4391 = vmatprep.subr.bf16.mxu0 %v2535
        %4392 = vmatpush1.bf16.msra.mxu0 %v2534
        %4393 = vmatprep.subr.bf16.mxu0 %v2543
        %4394 = vmatpush1.bf16.msra.mxu0 %v2542
        %4395 = vmatprep.subr.bf16.mxu0 %v2551
        %4396 = vmatpush1.bf16.msra.mxu0 %v2550
        %4397 = vmatprep.subr.bf16.mxu0 %v2559
        %4398 = vmatpush1.bf16.msra.mxu0 %v2558
        %4399 = vmatprep.subr.bf16.mxu0 %v2567
        %4400 = vmatpush1.bf16.msra.mxu0 %v2566
        %4401 = vmatprep.subr.bf16.mxu0 %v2575
        %4402 = vmatpush1.bf16.msra.mxu0 %v2574
        %4403 = vmatprep.subr.bf16.mxu0 %v2583
        %4404 = vmatpush1.bf16.msra.mxu0 %v2582
        %4405 = vmatprep.subr.bf16.mxu0 %v2591
        %4406 = vmatpush1.bf16.msra.mxu0 %v2590
        %4407 = vmatprep.subr.bf16.mxu0 %v2599
        %4408 = vmatpush1.bf16.msra.mxu0 %v2598
        %4409 = vmatprep.subr.bf16.mxu0 %v2607
        %4410 = vmatpush1.bf16.msra.mxu0 %v2606
        %4411 = vmatprep.subr.bf16.mxu0 %v2615
        %4412 = vmatpush1.bf16.msra.mxu0 %v2614
        %4413 = vmatprep.subr.bf16.mxu0 %v2623
        %4414 = vmatpush1.bf16.msra.mxu0 %v2622
        %4415 = vmatprep.subr.bf16.mxu0 %v2631
        %4416 = vmatpush1.bf16.msra.mxu0 %v2630
        %4417 = vmatprep.mubr.bf16.mxu0 %v535
        %4418 = vmatmul.mubr.bf16.gmra.mrb[0].mxu0 %v534
        %v4419 = vpop.f32.mrb[0].mxu0
        %v4420 = vadd.f32 %v4147, %v4419
        %v4421 = vpop.f32.mrb[0].mxu0
        %v4422 = vadd.f32 %v4149, %v4421
        %v4423 = vpop.f32.mrb[0].mxu0
        %v4424 = vadd.f32 %v4151, %v4423
        %v4425 = vpop.f32.mrb[0].mxu0
        %v4426 = vadd.f32 %v4153, %v4425
        %4427 = vmatprep.mubr.bf16.mxu0 %v541
        %4428 = vmatmul.mubr.bf16.gmra.mrb[0].mxu0 %v540
        %v4429 = vpop.f32.mrb[0].mxu0
        %v4430 = vadd.f32 %v4157, %v4429
        %v4431 = vpop.f32.mrb[0].mxu0
        %v4432 = vadd.f32 %v4159, %v4431
        %v4433 = vpop.f32.mrb[0].mxu0
        %v4434 = vadd.f32 %v4161, %v4433
        %v4435 = vpop.f32.mrb[0].mxu0
        %v4436 = vadd.f32 %v4163, %v4435
        %4437 = vmatprep.mubr.bf16.mxu0 %v547
        %4438 = vmatmul.mubr.bf16.gmra.mrb[0].mxu0 %v546
        %v4439 = vpop.f32.mrb[0].mxu0
        %v4440 = vadd.f32 %v4167, %v4439
        %v4441 = vpop.f32.mrb[0].mxu0
        %v4442 = vadd.f32 %v4169, %v4441
        %v4443 = vpop.f32.mrb[0].mxu0
        %v4444 = vadd.f32 %v4171, %v4443
        %v4445 = vpop.f32.mrb[0].mxu0
        %v4446 = vadd.f32 %v4173, %v4445
        %4447 = vmatprep.mubr.bf16.mxu0 %v553
        %4448 = vmatmul.mubr.bf16.gmra.mrb[0].mxu0 %v552
        %v4449 = vpop.f32.mrb[0].mxu0
        %v4450 = vadd.f32 %v4177, %v4449
        %v4451 = vpop.f32.mrb[0].mxu0
        %v4452 = vadd.f32 %v4179, %v4451
        %v4453 = vpop.f32.mrb[0].mxu0
        %v4454 = vadd.f32 %v4181, %v4453
        %v4455 = vpop.f32.mrb[0].mxu0
        %v4456 = vadd.f32 %v4183, %v4455
        %4457 = vmatprep.mubr.bf16.mxu0 %v559
        %4458 = vmatmul.mubr.bf16.gmra.mrb[0].mxu0 %v558
        %v4459 = vpop.f32.mrb[0].mxu0
        %v4460 = vadd.f32 %v4187, %v4459
        %v4461 = vpop.f32.mrb[0].mxu0
        %v4462 = vadd.f32 %v4189, %v4461
        %v4463 = vpop.f32.mrb[0].mxu0
        %v4464 = vadd.f32 %v4191, %v4463
        %v4465 = vpop.f32.mrb[0].mxu0
        %v4466 = vadd.f32 %v4193, %v4465
        %4467 = vmatprep.mubr.bf16.mxu0 %v565
        %4468 = vmatmul.mubr.bf16.gmra.mrb[0].mxu0 %v564
        %v4469 = vpop.f32.mrb[0].mxu0
        %v4470 = vadd.f32 %v4197, %v4469
        %v4471 = vpop.f32.mrb[0].mxu0
        %v4472 = vadd.f32 %v4199, %v4471
        %v4473 = vpop.f32.mrb[0].mxu0
        %v4474 = vadd.f32 %v4201, %v4473
        %v4475 = vpop.f32.mrb[0].mxu0
        %v4476 = vadd.f32 %v4203, %v4475
        %4477 = vmatprep.mubr.bf16.mxu0 %v571
        %4478 = vmatmul.mubr.bf16.gmra.mrb[0].mxu0 %v570
        %v4479 = vpop.f32.mrb[0].mxu0
        %v4480 = vadd.f32 %v4207, %v4479
        %v4481 = vpop.f32.mrb[0].mxu0
        %v4482 = vadd.f32 %v4209, %v4481
        %v4483 = vpop.f32.mrb[0].mxu0
        %v4484 = vadd.f32 %v4211, %v4483
        %v4485 = vpop.f32.mrb[0].mxu0
        %v4486 = vadd.f32 %v4213, %v4485
        %4487 = vmatprep.mubr.bf16.mxu0 %v577
        %4488 = vmatmul.mubr.bf16.gmra.mrb[0].mxu0 %v576
        %v4489 = vpop.f32.mrb[0].mxu0
        %v4490 = vadd.f32 %v4217, %v4489
        %v4491 = vpop.f32.mrb[0].mxu0
        %v4492 = vadd.f32 %v4219, %v4491
        %v4493 = vpop.f32.mrb[0].mxu0
        %v4494 = vadd.f32 %v4221, %v4493
        %v4495 = vpop.f32.mrb[0].mxu0
        %v4496 = vadd.f32 %v4223, %v4495
        %4497 = vmatprep.mubr.bf16.mxu0 %v583
        %4498 = vmatmul.mubr.bf16.gmra.mrb[0].mxu0 %v582
        %v4499 = vpop.f32.mrb[0].mxu0
        %v4500 = vadd.f32 %v4227, %v4499
        %v4501 = vpop.f32.mrb[0].mxu0
        %v4502 = vadd.f32 %v4229, %v4501
        %v4503 = vpop.f32.mrb[0].mxu0
        %v4504 = vadd.f32 %v4231, %v4503
        %v4505 = vpop.f32.mrb[0].mxu0
        %v4506 = vadd.f32 %v4233, %v4505
        %4507 = vmatprep.mubr.bf16.mxu0 %v589
        %4508 = vmatmul.mubr.bf16.gmra.mrb[0].mxu0 %v588
        %v4509 = vpop.f32.mrb[0].mxu0
        %v4510 = vadd.f32 %v4237, %v4509
        %v4511 = vpop.f32.mrb[0].mxu0
        %v4512 = vadd.f32 %v4239, %v4511
        %v4513 = vpop.f32.mrb[0].mxu0
        %v4514 = vadd.f32 %v4241, %v4513
        %v4515 = vpop.f32.mrb[0].mxu0
        %v4516 = vadd.f32 %v4243, %v4515
        %4517 = vmatprep.mubr.bf16.mxu0 %v595
        %4518 = vmatmul.mubr.bf16.gmra.mrb[0].mxu0 %v594
        %v4519 = vpop.f32.mrb[0].mxu0
        %v4520 = vadd.f32 %v4247, %v4519
        %v4521 = vpop.f32.mrb[0].mxu0
        %v4522 = vadd.f32 %v4249, %v4521
        %v4523 = vpop.f32.mrb[0].mxu0
        %v4524 = vadd.f32 %v4251, %v4523
        %v4525 = vpop.f32.mrb[0].mxu0
        %v4526 = vadd.f32 %v4253, %v4525
        %4527 = vmatprep.mubr.bf16.mxu0 %v601
        %4528 = vmatmul.mubr.bf16.gmra.mrb[0].mxu0 %v600
        %v4529 = vpop.f32.mrb[0].mxu0
        %v4530 = vadd.f32 %v4257, %v4529
        %v4531 = vpop.f32.mrb[0].mxu0
        %v4532 = vadd.f32 %v4259, %v4531
        %v4533 = vpop.f32.mrb[0].mxu0
        %v4534 = vadd.f32 %v4261, %v4533
        %v4535 = vpop.f32.mrb[0].mxu0
        %v4536 = vadd.f32 %v4263, %v4535
        %4537 = vmatprep.mubr.bf16.mxu0 %v607
        %4538 = vmatmul.mubr.bf16.gmra.mrb[0].mxu0 %v606
        %v4539 = vpop.f32.mrb[0].mxu0
        %v4540 = vadd.f32 %v4267, %v4539
        %v4541 = vpop.f32.mrb[0].mxu0
        %v4542 = vadd.f32 %v4269, %v4541
        %v4543 = vpop.f32.mrb[0].mxu0
        %v4544 = vadd.f32 %v4271, %v4543
        %v4545 = vpop.f32.mrb[0].mxu0
        %v4546 = vadd.f32 %v4273, %v4545
        %4547 = vmatprep.mubr.bf16.mxu0 %v613
        %4548 = vmatmul.mubr.bf16.gmra.mrb[0].mxu0 %v612
        %v4549 = vpop.f32.mrb[0].mxu0
        %v4550 = vadd.f32 %v4277, %v4549
        %v4551 = vpop.f32.mrb[0].mxu0
        %v4552 = vadd.f32 %v4279, %v4551
        %v4553 = vpop.f32.mrb[0].mxu0
        %v4554 = vadd.f32 %v4281, %v4553
        %v4555 = vpop.f32.mrb[0].mxu0
        %v4556 = vadd.f32 %v4283, %v4555
        %4557 = vmatprep.mubr.bf16.mxu0 %v619
        %4558 = vmatmul.mubr.bf16.gmra.mrb[0].mxu0 %v618
        %v4559 = vpop.f32.mrb[0].mxu0
        %v4560 = vadd.f32 %v4287, %v4559
        %v4561 = vpop.f32.mrb[0].mxu0
        %v4562 = vadd.f32 %v4289, %v4561
        %v4563 = vpop.f32.mrb[0].mxu0
        %v4564 = vadd.f32 %v4291, %v4563
        %v4565 = vpop.f32.mrb[0].mxu0
        %v4566 = vadd.f32 %v4293, %v4565
        %4567 = vmatprep.mubr.bf16.mxu0 %v625
        %4568 = vmatmul.mubr.bf16.gmra.mrb[0].mxu0 %v624
        %v4569 = vpop.f32.mrb[0].mxu0
        %v4570 = vadd.f32 %v4297, %v4569
        %v4571 = vpop.f32.mrb[0].mxu0
        %v4572 = vadd.f32 %v4299, %v4571
        %v4573 = vpop.f32.mrb[0].mxu0
        %v4574 = vadd.f32 %v4301, %v4573
        %v4575 = vpop.f32.mrb[0].mxu0
        %v4576 = vadd.f32 %v4303, %v4575
        %4577 = vmatprep.mubr.bf16.mxu0 %v631
        %4578 = vmatmul.mubr.bf16.gmra.mrb[0].mxu0 %v630
        %v4579 = vpop.f32.mrb[0].mxu0
        %v4580 = vadd.f32 %v4307, %v4579
        %v4581 = vpop.f32.mrb[0].mxu0
        %v4582 = vadd.f32 %v4309, %v4581
        %v4583 = vpop.f32.mrb[0].mxu0
        %v4584 = vadd.f32 %v4311, %v4583
        %v4585 = vpop.f32.mrb[0].mxu0
        %v4586 = vadd.f32 %v4313, %v4585
        %4587 = vmatprep.mubr.bf16.mxu0 %v637
        %4588 = vmatmul.mubr.bf16.gmra.mrb[0].mxu0 %v636
        %v4589 = vpop.f32.mrb[0].mxu0
        %v4590 = vadd.f32 %v4317, %v4589
        %v4591 = vpop.f32.mrb[0].mxu0
        %v4592 = vadd.f32 %v4319, %v4591
        %v4593 = vpop.f32.mrb[0].mxu0
        %v4594 = vadd.f32 %v4321, %v4593
        %v4595 = vpop.f32.mrb[0].mxu0
        %v4596 = vadd.f32 %v4323, %v4595
        %4597 = vmatprep.mubr.bf16.mxu0 %v643
        %4598 = vmatmul.mubr.bf16.gmra.mrb[0].mxu0 %v642
        %v4599 = vpop.f32.mrb[0].mxu0
        %v4600 = vadd.f32 %v4327, %v4599
        %v4601 = vpop.f32.mrb[0].mxu0
        %v4602 = vadd.f32 %v4329, %v4601
        %v4603 = vpop.f32.mrb[0].mxu0
        %v4604 = vadd.f32 %v4331, %v4603
        %v4605 = vpop.f32.mrb[0].mxu0
        %v4606 = vadd.f32 %v4333, %v4605
        %4607 = vmatprep.mubr.bf16.mxu0 %v649
        %4608 = vmatmul.mubr.bf16.gmra.mrb[0].mxu0 %v648
        %v4609 = vpop.f32.mrb[0].mxu0
        %v4610 = vadd.f32 %v4337, %v4609
        %v4611 = vpop.f32.mrb[0].mxu0
        %v4612 = vadd.f32 %v4339, %v4611
        %v4613 = vpop.f32.mrb[0].mxu0
        %v4614 = vadd.f32 %v4341, %v4613
        %v4615 = vpop.f32.mrb[0].mxu0
        %v4616 = vadd.f32 %v4343, %v4615
        %4617 = vmatprep.mubr.bf16.mxu0 %v655
        %4618 = vmatmul.mubr.bf16.gmra.mrb[0].mxu0 %v654
        %v4619 = vpop.f32.mrb[0].mxu0
        %v4620 = vadd.f32 %v4347, %v4619
        %v4621 = vpop.f32.mrb[0].mxu0
        %v4622 = vadd.f32 %v4349, %v4621
        %v4623 = vpop.f32.mrb[0].mxu0
        %v4624 = vadd.f32 %v4351, %v4623
        %v4625 = vpop.f32.mrb[0].mxu0
        %v4626 = vadd.f32 %v4353, %v4625
        %4627 = vmatprep.mubr.bf16.mxu0 %v661
        %4628 = vmatmul.mubr.bf16.gmra.mrb[0].mxu0 %v660
        %v4629 = vpop.f32.mrb[0].mxu0
        %v4630 = vadd.f32 %v4357, %v4629
        %v4631 = vpop.f32.mrb[0].mxu0
        %v4632 = vadd.f32 %v4359, %v4631
        %v4633 = vpop.f32.mrb[0].mxu0
        %v4634 = vadd.f32 %v4361, %v4633
        %v4635 = vpop.f32.mrb[0].mxu0
        %v4636 = vadd.f32 %v4363, %v4635
        %4637 = vmatprep.mubr.bf16.mxu0 %v667
        %4638 = vmatmul.mubr.bf16.gmra.mrb[0].mxu0 %v666
        %v4639 = vpop.f32.mrb[0].mxu0
        %v4640 = vadd.f32 %v4367, %v4639
        %v4641 = vpop.f32.mrb[0].mxu0
        %v4642 = vadd.f32 %v4369, %v4641
        %v4643 = vpop.f32.mrb[0].mxu0
        %v4644 = vadd.f32 %v4371, %v4643
        %v4645 = vpop.f32.mrb[0].mxu0
        %v4646 = vadd.f32 %v4373, %v4645
        %4647 = vmatprep.mubr.bf16.mxu0 %v673
        %4648 = vmatmul.mubr.bf16.gmra.mrb[0].mxu0 %v672
        %v4649 = vpop.f32.mrb[0].mxu0
        %v4650 = vadd.f32 %v4377, %v4649
        %v4651 = vpop.f32.mrb[0].mxu0
        %v4652 = vadd.f32 %v4379, %v4651
        %v4653 = vpop.f32.mrb[0].mxu0
        %v4654 = vadd.f32 %v4381, %v4653
        %v4655 = vpop.f32.mrb[0].mxu0
        %v4656 = vadd.f32 %v4383, %v4655
        %4657 = vdwg.mxu0
        %4658 = vmatprep.subr.bf16.mxu0 %v2257
        %4659 = vmatpush1.bf16.msra.mxu0 %v2256
        %4660 = vmatprep.subr.bf16.mxu0 %v2265
        %4661 = vmatpush1.bf16.msra.mxu0 %v2264
        %4662 = vmatprep.subr.bf16.mxu0 %v2273
        %4663 = vmatpush1.bf16.msra.mxu0 %v2272
        %4664 = vmatprep.subr.bf16.mxu0 %v2281
        %4665 = vmatpush1.bf16.msra.mxu0 %v2280
        %4666 = vmatprep.subr.bf16.mxu0 %v2289
        %4667 = vmatpush1.bf16.msra.mxu0 %v2288
        %4668 = vmatprep.subr.bf16.mxu0 %v2297
        %4669 = vmatpush1.bf16.msra.mxu0 %v2296
        %4670 = vmatprep.subr.bf16.mxu0 %v2305
        %4671 = vmatpush1.bf16.msra.mxu0 %v2304
        %4672 = vmatprep.subr.bf16.mxu0 %v2313
        %4673 = vmatpush1.bf16.msra.mxu0 %v2312
        %4674 = vmatprep.subr.bf16.mxu0 %v2321
        %4675 = vmatpush1.bf16.msra.mxu0 %v2320
        %4676 = vmatprep.subr.bf16.mxu0 %v2329
        %4677 = vmatpush1.bf16.msra.mxu0 %v2328
        %4678 = vmatprep.subr.bf16.mxu0 %v2337
        %4679 = vmatpush1.bf16.msra.mxu0 %v2336
        %4680 = vmatprep.subr.bf16.mxu0 %v2345
        %4681 = vmatpush1.bf16.msra.mxu0 %v2344
        %4682 = vmatprep.subr.bf16.mxu0 %v2353
        %4683 = vmatpush1.bf16.msra.mxu0 %v2352
        %4684 = vmatprep.subr.bf16.mxu0 %v2361
        %4685 = vmatpush1.bf16.msra.mxu0 %v2360
        %4686 = vmatprep.subr.bf16.mxu0 %v2369
        %4687 = vmatpush1.bf16.msra.mxu0 %v2368
        %4688 = vmatprep.subr.bf16.mxu0 %v2377
        %4689 = vmatpush1.bf16.msra.mxu0 %v2376
        %4690 = vmatprep.mubr.bf16.mxu0 %v531
        %4691 = vmatmul.mubr.bf16.gmra.mrb[0].mxu0 %v530
        %v4692 = vpop.f32.mrb[0].mxu0
        %v4693 = vadd.f32 %v1079, %v4692
        %v4694 = vpop.f32.mrb[0].mxu0
        %v4695 = vadd.f32 %v1083, %v4694
        %v4696 = vpop.f32.mrb[0].mxu0
        %v4697 = vadd.f32 %v1079, %v4696
        %v4698 = vpop.f32.mrb[0].mxu0
        %v4699 = vadd.f32 %v1083, %v4698
        %4700 = vmatprep.mubr.bf16.mxu0 %v537
        %4701 = vmatmul.mubr.bf16.gmra.mrb[0].mxu0 %v536
        %v4702 = vpop.f32.mrb[0].mxu0
        %v4703 = vadd.f32 %v1079, %v4702
        %v4704 = vpop.f32.mrb[0].mxu0
        %v4705 = vadd.f32 %v1083, %v4704
        %v4706 = vpop.f32.mrb[0].mxu0
        %v4707 = vadd.f32 %v1079, %v4706
        %v4708 = vpop.f32.mrb[0].mxu0
        %v4709 = vadd.f32 %v1083, %v4708
        %4710 = vmatprep.mubr.bf16.mxu0 %v543
        %4711 = vmatmul.mubr.bf16.gmra.mrb[0].mxu0 %v542
        %v4712 = vpop.f32.mrb[0].mxu0
        %v4713 = vadd.f32 %v1079, %v4712
        %v4714 = vpop.f32.mrb[0].mxu0
        %v4715 = vadd.f32 %v1083, %v4714
        %v4716 = vpop.f32.mrb[0].mxu0
        %v4717 = vadd.f32 %v1079, %v4716
        %v4718 = vpop.f32.mrb[0].mxu0
        %v4719 = vadd.f32 %v1083, %v4718
        %4720 = vmatprep.mubr.bf16.mxu0 %v549
        %4721 = vmatmul.mubr.bf16.gmra.mrb[0].mxu0 %v548
        %v4722 = vpop.f32.mrb[0].mxu0
        %v4723 = vadd.f32 %v1079, %v4722
        %v4724 = vpop.f32.mrb[0].mxu0
        %v4725 = vadd.f32 %v1083, %v4724
        %v4726 = vpop.f32.mrb[0].mxu0
        %v4727 = vadd.f32 %v1079, %v4726
        %v4728 = vpop.f32.mrb[0].mxu0
        %v4729 = vadd.f32 %v1083, %v4728
        %4730 = vmatprep.mubr.bf16.mxu0 %v555
        %4731 = vmatmul.mubr.bf16.gmra.mrb[0].mxu0 %v554
        %v4732 = vpop.f32.mrb[0].mxu0
        %v4733 = vadd.f32 %v1079, %v4732
        %v4734 = vpop.f32.mrb[0].mxu0
        %v4735 = vadd.f32 %v1083, %v4734
        %v4736 = vpop.f32.mrb[0].mxu0
        %v4737 = vadd.f32 %v1079, %v4736
        %v4738 = vpop.f32.mrb[0].mxu0
        %v4739 = vadd.f32 %v1083, %v4738
        %4740 = vmatprep.mubr.bf16.mxu0 %v561
        %4741 = vmatmul.mubr.bf16.gmra.mrb[0].mxu0 %v560
        %v4742 = vpop.f32.mrb[0].mxu0
        %v4743 = vadd.f32 %v1079, %v4742
        %v4744 = vpop.f32.mrb[0].mxu0
        %v4745 = vadd.f32 %v1083, %v4744
        %v4746 = vpop.f32.mrb[0].mxu0
        %v4747 = vadd.f32 %v1079, %v4746
        %v4748 = vpop.f32.mrb[0].mxu0
        %v4749 = vadd.f32 %v1083, %v4748
        %4750 = vmatprep.mubr.bf16.mxu0 %v567
        %4751 = vmatmul.mubr.bf16.gmra.mrb[0].mxu0 %v566
        %v4752 = vpop.f32.mrb[0].mxu0
        %v4753 = vadd.f32 %v1079, %v4752
        %v4754 = vpop.f32.mrb[0].mxu0
        %v4755 = vadd.f32 %v1083, %v4754
        %v4756 = vpop.f32.mrb[0].mxu0
        %v4757 = vadd.f32 %v1079, %v4756
        %v4758 = vpop.f32.mrb[0].mxu0
        %v4759 = vadd.f32 %v1083, %v4758
        %4760 = vmatprep.mubr.bf16.mxu0 %v573
        %4761 = vmatmul.mubr.bf16.gmra.mrb[0].mxu0 %v572
        %v4762 = vpop.f32.mrb[0].mxu0
        %v4763 = vadd.f32 %v1079, %v4762
        %v4764 = vpop.f32.mrb[0].mxu0
        %v4765 = vadd.f32 %v1083, %v4764
        %v4766 = vpop.f32.mrb[0].mxu0
        %v4767 = vadd.f32 %v1079, %v4766
        %v4768 = vpop.f32.mrb[0].mxu0
        %v4769 = vadd.f32 %v1083, %v4768
        %4770 = vmatprep.mubr.bf16.mxu0 %v579
        %4771 = vmatmul.mubr.bf16.gmra.mrb[0].mxu0 %v578
        %v4772 = vpop.f32.mrb[0].mxu0
        %v4773 = vadd.f32 %v1079, %v4772
        %v4774 = vpop.f32.mrb[0].mxu0
        %v4775 = vadd.f32 %v1083, %v4774
        %v4776 = vpop.f32.mrb[0].mxu0
        %v4777 = vadd.f32 %v1079, %v4776
        %v4778 = vpop.f32.mrb[0].mxu0
        %v4779 = vadd.f32 %v1083, %v4778
        %4780 = vmatprep.mubr.bf16.mxu0 %v585
        %4781 = vmatmul.mubr.bf16.gmra.mrb[0].mxu0 %v584
        %v4782 = vpop.f32.mrb[0].mxu0
        %v4783 = vadd.f32 %v1079, %v4782
        %v4784 = vpop.f32.mrb[0].mxu0
        %v4785 = vadd.f32 %v1083, %v4784
        %v4786 = vpop.f32.mrb[0].mxu0
        %v4787 = vadd.f32 %v1079, %v4786
        %v4788 = vpop.f32.mrb[0].mxu0
        %v4789 = vadd.f32 %v1083, %v4788
        %4790 = vmatprep.mubr.bf16.mxu0 %v591
        %4791 = vmatmul.mubr.bf16.gmra.mrb[0].mxu0 %v590
        %v4792 = vpop.f32.mrb[0].mxu0
        %v4793 = vadd.f32 %v1079, %v4792
        %v4794 = vpop.f32.mrb[0].mxu0
        %v4795 = vadd.f32 %v1083, %v4794
        %v4796 = vpop.f32.mrb[0].mxu0
        %v4797 = vadd.f32 %v1079, %v4796
        %v4798 = vpop.f32.mrb[0].mxu0
        %v4799 = vadd.f32 %v1083, %v4798
        %4800 = vmatprep.mubr.bf16.mxu0 %v597
        %4801 = vmatmul.mubr.bf16.gmra.mrb[0].mxu0 %v596
        %v4802 = vpop.f32.mrb[0].mxu0
        %v4803 = vadd.f32 %v1079, %v4802
        %v4804 = vpop.f32.mrb[0].mxu0
        %v4805 = vadd.f32 %v1083, %v4804
        %v4806 = vpop.f32.mrb[0].mxu0
        %v4807 = vadd.f32 %v1079, %v4806
        %v4808 = vpop.f32.mrb[0].mxu0
        %v4809 = vadd.f32 %v1083, %v4808
        %4810 = vmatprep.mubr.bf16.mxu0 %v603
        %4811 = vmatmul.mubr.bf16.gmra.mrb[0].mxu0 %v602
        %v4812 = vpop.f32.mrb[0].mxu0
        %v4813 = vadd.f32 %v1079, %v4812
        %v4814 = vpop.f32.mrb[0].mxu0
        %v4815 = vadd.f32 %v1083, %v4814
        %v4816 = vpop.f32.mrb[0].mxu0
        %v4817 = vadd.f32 %v1079, %v4816
        %v4818 = vpop.f32.mrb[0].mxu0
        %v4819 = vadd.f32 %v1083, %v4818
        %4820 = vmatprep.mubr.bf16.mxu0 %v609
        %4821 = vmatmul.mubr.bf16.gmra.mrb[0].mxu0 %v608
        %v4822 = vpop.f32.mrb[0].mxu0
        %v4823 = vadd.f32 %v1079, %v4822
        %v4824 = vpop.f32.mrb[0].mxu0
        %v4825 = vadd.f32 %v1083, %v4824
        %v4826 = vpop.f32.mrb[0].mxu0
        %v4827 = vadd.f32 %v1079, %v4826
        %v4828 = vpop.f32.mrb[0].mxu0
        %v4829 = vadd.f32 %v1083, %v4828
        %4830 = vmatprep.mubr.bf16.mxu0 %v615
        %4831 = vmatmul.mubr.bf16.gmra.mrb[0].mxu0 %v614
        %v4832 = vpop.f32.mrb[0].mxu0
        %v4833 = vadd.f32 %v1079, %v4832
        %v4834 = vpop.f32.mrb[0].mxu0
        %v4835 = vadd.f32 %v1083, %v4834
        %v4836 = vpop.f32.mrb[0].mxu0
        %v4837 = vadd.f32 %v1079, %v4836
        %v4838 = vpop.f32.mrb[0].mxu0
        %v4839 = vadd.f32 %v1083, %v4838
        %4840 = vmatprep.mubr.bf16.mxu0 %v621
        %4841 = vmatmul.mubr.bf16.gmra.mrb[0].mxu0 %v620
        %v4842 = vpop.f32.mrb[0].mxu0
        %v4843 = vadd.f32 %v1079, %v4842
        %v4844 = vpop.f32.mrb[0].mxu0
        %v4845 = vadd.f32 %v1083, %v4844
        %v4846 = vpop.f32.mrb[0].mxu0
        %v4847 = vadd.f32 %v1079, %v4846
        %v4848 = vpop.f32.mrb[0].mxu0
        %v4849 = vadd.f32 %v1083, %v4848
        %4850 = vmatprep.mubr.bf16.mxu0 %v627
        %4851 = vmatmul.mubr.bf16.gmra.mrb[0].mxu0 %v626
        %v4852 = vpop.f32.mrb[0].mxu0
        %v4853 = vadd.f32 %v1079, %v4852
        %v4854 = vpop.f32.mrb[0].mxu0
        %v4855 = vadd.f32 %v1083, %v4854
        %v4856 = vpop.f32.mrb[0].mxu0
        %v4857 = vadd.f32 %v1079, %v4856
        %v4858 = vpop.f32.mrb[0].mxu0
        %v4859 = vadd.f32 %v1083, %v4858
        %4860 = vmatprep.mubr.bf16.mxu0 %v633
        %4861 = vmatmul.mubr.bf16.gmra.mrb[0].mxu0 %v632
        %v4862 = vpop.f32.mrb[0].mxu0
        %v4863 = vadd.f32 %v1079, %v4862
        %v4864 = vpop.f32.mrb[0].mxu0
        %v4865 = vadd.f32 %v1083, %v4864
        %v4866 = vpop.f32.mrb[0].mxu0
        %v4867 = vadd.f32 %v1079, %v4866
        %v4868 = vpop.f32.mrb[0].mxu0
        %v4869 = vadd.f32 %v1083, %v4868
        %4870 = vmatprep.mubr.bf16.mxu0 %v639
        %4871 = vmatmul.mubr.bf16.gmra.mrb[0].mxu0 %v638
        %v4872 = vpop.f32.mrb[0].mxu0
        %v4873 = vadd.f32 %v1079, %v4872
        %v4874 = vpop.f32.mrb[0].mxu0
        %v4875 = vadd.f32 %v1083, %v4874
        %v4876 = vpop.f32.mrb[0].mxu0
        %v4877 = vadd.f32 %v1079, %v4876
        %v4878 = vpop.f32.mrb[0].mxu0
        %v4879 = vadd.f32 %v1083, %v4878
        %4880 = vmatprep.mubr.bf16.mxu0 %v645
        %4881 = vmatmul.mubr.bf16.gmra.mrb[0].mxu0 %v644
        %v4882 = vpop.f32.mrb[0].mxu0
        %v4883 = vadd.f32 %v1079, %v4882
        %v4884 = vpop.f32.mrb[0].mxu0
        %v4885 = vadd.f32 %v1083, %v4884
        %v4886 = vpop.f32.mrb[0].mxu0
        %v4887 = vadd.f32 %v1079, %v4886
        %v4888 = vpop.f32.mrb[0].mxu0
        %v4889 = vadd.f32 %v1083, %v4888
        %4890 = vmatprep.mubr.bf16.mxu0 %v651
        %4891 = vmatmul.mubr.bf16.gmra.mrb[0].mxu0 %v650
        %v4892 = vpop.f32.mrb[0].mxu0
        %v4893 = vadd.f32 %v1079, %v4892
        %v4894 = vpop.f32.mrb[0].mxu0
        %v4895 = vadd.f32 %v1083, %v4894
        %v4896 = vpop.f32.mrb[0].mxu0
        %v4897 = vadd.f32 %v1079, %v4896
        %v4898 = vpop.f32.mrb[0].mxu0
        %v4899 = vadd.f32 %v1083, %v4898
        %4900 = vmatprep.mubr.bf16.mxu0 %v657
        %4901 = vmatmul.mubr.bf16.gmra.mrb[0].mxu0 %v656
        %v4902 = vpop.f32.mrb[0].mxu0
        %v4903 = vadd.f32 %v1079, %v4902
        %v4904 = vpop.f32.mrb[0].mxu0
        %v4905 = vadd.f32 %v1083, %v4904
        %v4906 = vpop.f32.mrb[0].mxu0
        %v4907 = vadd.f32 %v1079, %v4906
        %v4908 = vpop.f32.mrb[0].mxu0
        %v4909 = vadd.f32 %v1083, %v4908
        %4910 = vmatprep.mubr.bf16.mxu0 %v663
        %4911 = vmatmul.mubr.bf16.gmra.mrb[0].mxu0 %v662
        %v4912 = vpop.f32.mrb[0].mxu0
        %v4913 = vadd.f32 %v1079, %v4912
        %v4914 = vpop.f32.mrb[0].mxu0
        %v4915 = vadd.f32 %v1083, %v4914
        %v4916 = vpop.f32.mrb[0].mxu0
        %v4917 = vadd.f32 %v1079, %v4916
        %v4918 = vpop.f32.mrb[0].mxu0
        %v4919 = vadd.f32 %v1083, %v4918
        %4920 = vmatprep.mubr.bf16.mxu0 %v669
        %4921 = vmatmul.mubr.bf16.gmra.mrb[0].mxu0 %v668
        %v4922 = vpop.f32.mrb[0].mxu0
        %v4923 = vadd.f32 %v1079, %v4922
        %v4924 = vpop.f32.mrb[0].mxu0
        %v4925 = vadd.f32 %v1083, %v4924
        %v4926 = vpop.f32.mrb[0].mxu0
        %v4927 = vadd.f32 %v1079, %v4926
        %v4928 = vpop.f32.mrb[0].mxu0
        %v4929 = vadd.f32 %v1083, %v4928
        %4930 = vdwg.mxu0
        %4931 = vmatprep.subr.bf16.mxu0 %v2385
        %4932 = vmatpush1.bf16.msra.mxu0 %v2384
        %4933 = vmatprep.subr.bf16.mxu0 %v2393
        %4934 = vmatpush1.bf16.msra.mxu0 %v2392
        %4935 = vmatprep.subr.bf16.mxu0 %v2401
        %4936 = vmatpush1.bf16.msra.mxu0 %v2400
        %4937 = vmatprep.subr.bf16.mxu0 %v2409
        %4938 = vmatpush1.bf16.msra.mxu0 %v2408
        %4939 = vmatprep.subr.bf16.mxu0 %v2417
        %4940 = vmatpush1.bf16.msra.mxu0 %v2416
        %4941 = vmatprep.subr.bf16.mxu0 %v2425
        %4942 = vmatpush1.bf16.msra.mxu0 %v2424
        %4943 = vmatprep.subr.bf16.mxu0 %v2433
        %4944 = vmatpush1.bf16.msra.mxu0 %v2432
        %4945 = vmatprep.subr.bf16.mxu0 %v2441
        %4946 = vmatpush1.bf16.msra.mxu0 %v2440
        %4947 = vmatprep.subr.bf16.mxu0 %v2449
        %4948 = vmatpush1.bf16.msra.mxu0 %v2448
        %4949 = vmatprep.subr.bf16.mxu0 %v2457
        %4950 = vmatpush1.bf16.msra.mxu0 %v2456
        %4951 = vmatprep.subr.bf16.mxu0 %v2465
        %4952 = vmatpush1.bf16.msra.mxu0 %v2464
        %4953 = vmatprep.subr.bf16.mxu0 %v2473
        %4954 = vmatpush1.bf16.msra.mxu0 %v2472
        %4955 = vmatprep.subr.bf16.mxu0 %v2481
        %4956 = vmatpush1.bf16.msra.mxu0 %v2480
        %4957 = vmatprep.subr.bf16.mxu0 %v2489
        %4958 = vmatpush1.bf16.msra.mxu0 %v2488
        %4959 = vmatprep.subr.bf16.mxu0 %v2497
        %4960 = vmatpush1.bf16.msra.mxu0 %v2496
        %4961 = vmatprep.subr.bf16.mxu0 %v2505
        %4962 = vmatpush1.bf16.msra.mxu0 %v2504
        %4963 = vmatprep.mubr.bf16.mxu0 %v533
        %4964 = vmatmul.mubr.bf16.gmra.mrb[0].mxu0 %v532
        %v4965 = vpop.f32.mrb[0].mxu0
        %v4966 = vadd.f32 %v4693, %v4965
        %v4967 = vpop.f32.mrb[0].mxu0
        %v4968 = vadd.f32 %v4695, %v4967
        %v4969 = vpop.f32.mrb[0].mxu0
        %v4970 = vadd.f32 %v4697, %v4969
        %v4971 = vpop.f32.mrb[0].mxu0
        %v4972 = vadd.f32 %v4699, %v4971
        %4973 = vmatprep.mubr.bf16.mxu0 %v539
        %4974 = vmatmul.mubr.bf16.gmra.mrb[0].mxu0 %v538
        %v4975 = vpop.f32.mrb[0].mxu0
        %v4976 = vadd.f32 %v4703, %v4975
        %v4977 = vpop.f32.mrb[0].mxu0
        %v4978 = vadd.f32 %v4705, %v4977
        %v4979 = vpop.f32.mrb[0].mxu0
        %v4980 = vadd.f32 %v4707, %v4979
        %v4981 = vpop.f32.mrb[0].mxu0
        %v4982 = vadd.f32 %v4709, %v4981
        %4983 = vmatprep.mubr.bf16.mxu0 %v545
        %4984 = vmatmul.mubr.bf16.gmra.mrb[0].mxu0 %v544
        %v4985 = vpop.f32.mrb[0].mxu0
        %v4986 = vadd.f32 %v4713, %v4985
        %v4987 = vpop.f32.mrb[0].mxu0
        %v4988 = vadd.f32 %v4715, %v4987
        %v4989 = vpop.f32.mrb[0].mxu0
        %v4990 = vadd.f32 %v4717, %v4989
        %v4991 = vpop.f32.mrb[0].mxu0
        %v4992 = vadd.f32 %v4719, %v4991
        %4993 = vmatprep.mubr.bf16.mxu0 %v551
        %4994 = vmatmul.mubr.bf16.gmra.mrb[0].mxu0 %v550
        %v4995 = vpop.f32.mrb[0].mxu0
        %v4996 = vadd.f32 %v4723, %v4995
        %v4997 = vpop.f32.mrb[0].mxu0
        %v4998 = vadd.f32 %v4725, %v4997
        %v4999 = vpop.f32.mrb[0].mxu0
        %v5000 = vadd.f32 %v4727, %v4999
        %v5001 = vpop.f32.mrb[0].mxu0
        %v5002 = vadd.f32 %v4729, %v5001
        %5003 = vmatprep.mubr.bf16.mxu0 %v557
        %5004 = vmatmul.mubr.bf16.gmra.mrb[0].mxu0 %v556
        %v5005 = vpop.f32.mrb[0].mxu0
        %v5006 = vadd.f32 %v4733, %v5005
        %v5007 = vpop.f32.mrb[0].mxu0
        %v5008 = vadd.f32 %v4735, %v5007
        %v5009 = vpop.f32.mrb[0].mxu0
        %v5010 = vadd.f32 %v4737, %v5009
        %v5011 = vpop.f32.mrb[0].mxu0
        %v5012 = vadd.f32 %v4739, %v5011
        %5013 = vmatprep.mubr.bf16.mxu0 %v563
        %5014 = vmatmul.mubr.bf16.gmra.mrb[0].mxu0 %v562
        %v5015 = vpop.f32.mrb[0].mxu0
        %v5016 = vadd.f32 %v4743, %v5015
        %v5017 = vpop.f32.mrb[0].mxu0
        %v5018 = vadd.f32 %v4745, %v5017
        %v5019 = vpop.f32.mrb[0].mxu0
        %v5020 = vadd.f32 %v4747, %v5019
        %v5021 = vpop.f32.mrb[0].mxu0
        %v5022 = vadd.f32 %v4749, %v5021
        %5023 = vmatprep.mubr.bf16.mxu0 %v569
        %5024 = vmatmul.mubr.bf16.gmra.mrb[0].mxu0 %v568
        %v5025 = vpop.f32.mrb[0].mxu0
        %v5026 = vadd.f32 %v4753, %v5025
        %v5027 = vpop.f32.mrb[0].mxu0
        %v5028 = vadd.f32 %v4755, %v5027
        %v5029 = vpop.f32.mrb[0].mxu0
        %v5030 = vadd.f32 %v4757, %v5029
        %v5031 = vpop.f32.mrb[0].mxu0
        %v5032 = vadd.f32 %v4759, %v5031
        %5033 = vmatprep.mubr.bf16.mxu0 %v575
        %5034 = vmatmul.mubr.bf16.gmra.mrb[0].mxu0 %v574
        %v5035 = vpop.f32.mrb[0].mxu0
        %v5036 = vadd.f32 %v4763, %v5035
        %v5037 = vpop.f32.mrb[0].mxu0
        %v5038 = vadd.f32 %v4765, %v5037
        %v5039 = vpop.f32.mrb[0].mxu0
        %v5040 = vadd.f32 %v4767, %v5039
        %v5041 = vpop.f32.mrb[0].mxu0
        %v5042 = vadd.f32 %v4769, %v5041
        %5043 = vmatprep.mubr.bf16.mxu0 %v581
        %5044 = vmatmul.mubr.bf16.gmra.mrb[0].mxu0 %v580
        %v5045 = vpop.f32.mrb[0].mxu0
        %v5046 = vadd.f32 %v4773, %v5045
        %v5047 = vpop.f32.mrb[0].mxu0
        %v5048 = vadd.f32 %v4775, %v5047
        %v5049 = vpop.f32.mrb[0].mxu0
        %v5050 = vadd.f32 %v4777, %v5049
        %v5051 = vpop.f32.mrb[0].mxu0
        %v5052 = vadd.f32 %v4779, %v5051
        %5053 = vmatprep.mubr.bf16.mxu0 %v587
        %5054 = vmatmul.mubr.bf16.gmra.mrb[0].mxu0 %v586
        %v5055 = vpop.f32.mrb[0].mxu0
        %v5056 = vadd.f32 %v4783, %v5055
        %v5057 = vpop.f32.mrb[0].mxu0
        %v5058 = vadd.f32 %v4785, %v5057
        %v5059 = vpop.f32.mrb[0].mxu0
        %v5060 = vadd.f32 %v4787, %v5059
        %v5061 = vpop.f32.mrb[0].mxu0
        %v5062 = vadd.f32 %v4789, %v5061
        %5063 = vmatprep.mubr.bf16.mxu0 %v593
        %5064 = vmatmul.mubr.bf16.gmra.mrb[0].mxu0 %v592
        %v5065 = vpop.f32.mrb[0].mxu0
        %v5066 = vadd.f32 %v4793, %v5065
        %v5067 = vpop.f32.mrb[0].mxu0
        %v5068 = vadd.f32 %v4795, %v5067
        %v5069 = vpop.f32.mrb[0].mxu0
        %v5070 = vadd.f32 %v4797, %v5069
        %v5071 = vpop.f32.mrb[0].mxu0
        %v5072 = vadd.f32 %v4799, %v5071
        %5073 = vmatprep.mubr.bf16.mxu0 %v599
        %5074 = vmatmul.mubr.bf16.gmra.mrb[0].mxu0 %v598
        %v5075 = vpop.f32.mrb[0].mxu0
        %v5076 = vadd.f32 %v4803, %v5075
        %v5077 = vpop.f32.mrb[0].mxu0
        %v5078 = vadd.f32 %v4805, %v5077
        %v5079 = vpop.f32.mrb[0].mxu0
        %v5080 = vadd.f32 %v4807, %v5079
        %v5081 = vpop.f32.mrb[0].mxu0
        %v5082 = vadd.f32 %v4809, %v5081
        %5083 = vmatprep.mubr.bf16.mxu0 %v605
        %5084 = vmatmul.mubr.bf16.gmra.mrb[0].mxu0 %v604
        %v5085 = vpop.f32.mrb[0].mxu0
        %v5086 = vadd.f32 %v4813, %v5085
        %v5087 = vpop.f32.mrb[0].mxu0
        %v5088 = vadd.f32 %v4815, %v5087
        %v5089 = vpop.f32.mrb[0].mxu0
        %v5090 = vadd.f32 %v4817, %v5089
        %v5091 = vpop.f32.mrb[0].mxu0
        %v5092 = vadd.f32 %v4819, %v5091
        %5093 = vmatprep.mubr.bf16.mxu0 %v611
        %5094 = vmatmul.mubr.bf16.gmra.mrb[0].mxu0 %v610
        %v5095 = vpop.f32.mrb[0].mxu0
        %v5096 = vadd.f32 %v4823, %v5095
        %v5097 = vpop.f32.mrb[0].mxu0
        %v5098 = vadd.f32 %v4825, %v5097
        %v5099 = vpop.f32.mrb[0].mxu0
        %v5100 = vadd.f32 %v4827, %v5099
        %v5101 = vpop.f32.mrb[0].mxu0
        %v5102 = vadd.f32 %v4829, %v5101
        %5103 = vmatprep.mubr.bf16.mxu0 %v617
        %5104 = vmatmul.mubr.bf16.gmra.mrb[0].mxu0 %v616
        %v5105 = vpop.f32.mrb[0].mxu0
        %v5106 = vadd.f32 %v4833, %v5105
        %v5107 = vpop.f32.mrb[0].mxu0
        %v5108 = vadd.f32 %v4835, %v5107
        %v5109 = vpop.f32.mrb[0].mxu0
        %v5110 = vadd.f32 %v4837, %v5109
        %v5111 = vpop.f32.mrb[0].mxu0
        %v5112 = vadd.f32 %v4839, %v5111
        %5113 = vmatprep.mubr.bf16.mxu0 %v623
        %5114 = vmatmul.mubr.bf16.gmra.mrb[0].mxu0 %v622
        %v5115 = vpop.f32.mrb[0].mxu0
        %v5116 = vadd.f32 %v4843, %v5115
        %v5117 = vpop.f32.mrb[0].mxu0
        %v5118 = vadd.f32 %v4845, %v5117
        %v5119 = vpop.f32.mrb[0].mxu0
        %v5120 = vadd.f32 %v4847, %v5119
        %v5121 = vpop.f32.mrb[0].mxu0
        %v5122 = vadd.f32 %v4849, %v5121
        %5123 = vmatprep.mubr.bf16.mxu0 %v629
        %5124 = vmatmul.mubr.bf16.gmra.mrb[0].mxu0 %v628
        %v5125 = vpop.f32.mrb[0].mxu0
        %v5126 = vadd.f32 %v4853, %v5125
        %v5127 = vpop.f32.mrb[0].mxu0
        %v5128 = vadd.f32 %v4855, %v5127
        %v5129 = vpop.f32.mrb[0].mxu0
        %v5130 = vadd.f32 %v4857, %v5129
        %v5131 = vpop.f32.mrb[0].mxu0
        %v5132 = vadd.f32 %v4859, %v5131
        %5133 = vmatprep.mubr.bf16.mxu0 %v635
        %5134 = vmatmul.mubr.bf16.gmra.mrb[0].mxu0 %v634
        %v5135 = vpop.f32.mrb[0].mxu0
        %v5136 = vadd.f32 %v4863, %v5135
        %v5137 = vpop.f32.mrb[0].mxu0
        %v5138 = vadd.f32 %v4865, %v5137
        %v5139 = vpop.f32.mrb[0].mxu0
        %v5140 = vadd.f32 %v4867, %v5139
        %v5141 = vpop.f32.mrb[0].mxu0
        %v5142 = vadd.f32 %v4869, %v5141
        %5143 = vmatprep.mubr.bf16.mxu0 %v641
        %5144 = vmatmul.mubr.bf16.gmra.mrb[0].mxu0 %v640
        %v5145 = vpop.f32.mrb[0].mxu0
        %v5146 = vadd.f32 %v4873, %v5145
        %v5147 = vpop.f32.mrb[0].mxu0
        %v5148 = vadd.f32 %v4875, %v5147
        %v5149 = vpop.f32.mrb[0].mxu0
        %v5150 = vadd.f32 %v4877, %v5149
        %v5151 = vpop.f32.mrb[0].mxu0
        %v5152 = vadd.f32 %v4879, %v5151
        %5153 = vmatprep.mubr.bf16.mxu0 %v647
        %5154 = vmatmul.mubr.bf16.gmra.mrb[0].mxu0 %v646
        %v5155 = vpop.f32.mrb[0].mxu0
        %v5156 = vadd.f32 %v4883, %v5155
        %v5157 = vpop.f32.mrb[0].mxu0
        %v5158 = vadd.f32 %v4885, %v5157
        %v5159 = vpop.f32.mrb[0].mxu0
        %v5160 = vadd.f32 %v4887, %v5159
        %v5161 = vpop.f32.mrb[0].mxu0
        %v5162 = vadd.f32 %v4889, %v5161
        %5163 = vmatprep.mubr.bf16.mxu0 %v653
        %5164 = vmatmul.mubr.bf16.gmra.mrb[0].mxu0 %v652
        %v5165 = vpop.f32.mrb[0].mxu0
        %v5166 = vadd.f32 %v4893, %v5165
        %v5167 = vpop.f32.mrb[0].mxu0
        %v5168 = vadd.f32 %v4895, %v5167
        %v5169 = vpop.f32.mrb[0].mxu0
        %v5170 = vadd.f32 %v4897, %v5169
        %v5171 = vpop.f32.mrb[0].mxu0
        %v5172 = vadd.f32 %v4899, %v5171
        %5173 = vmatprep.mubr.bf16.mxu0 %v659
        %5174 = vmatmul.mubr.bf16.gmra.mrb[0].mxu0 %v658
        %v5175 = vpop.f32.mrb[0].mxu0
        %v5176 = vadd.f32 %v4903, %v5175
        %v5177 = vpop.f32.mrb[0].mxu0
        %v5178 = vadd.f32 %v4905, %v5177
        %v5179 = vpop.f32.mrb[0].mxu0
        %v5180 = vadd.f32 %v4907, %v5179
        %v5181 = vpop.f32.mrb[0].mxu0
        %v5182 = vadd.f32 %v4909, %v5181
        %5183 = vmatprep.mubr.bf16.mxu0 %v665
        %5184 = vmatmul.mubr.bf16.gmra.mrb[0].mxu0 %v664
        %v5185 = vpop.f32.mrb[0].mxu0
        %v5186 = vadd.f32 %v4913, %v5185
        %v5187 = vpop.f32.mrb[0].mxu0
        %v5188 = vadd.f32 %v4915, %v5187
        %v5189 = vpop.f32.mrb[0].mxu0
        %v5190 = vadd.f32 %v4917, %v5189
        %v5191 = vpop.f32.mrb[0].mxu0
        %v5192 = vadd.f32 %v4919, %v5191
        %5193 = vmatprep.mubr.bf16.mxu0 %v671
        %5194 = vmatmul.mubr.bf16.gmra.mrb[0].mxu0 %v670
        %v5195 = vpop.f32.mrb[0].mxu0
        %v5196 = vadd.f32 %v4923, %v5195
        %v5197 = vpop.f32.mrb[0].mxu0
        %v5198 = vadd.f32 %v4925, %v5197
        %v5199 = vpop.f32.mrb[0].mxu0
        %v5200 = vadd.f32 %v4927, %v5199
        %v5201 = vpop.f32.mrb[0].mxu0
        %v5202 = vadd.f32 %v4929, %v5201
        %5203 = vdwg.mxu0
        %5204 = vmatprep.subr.bf16.mxu0 %v2513
        %5205 = vmatpush1.bf16.msra.mxu0 %v2512
        %5206 = vmatprep.subr.bf16.mxu0 %v2521
        %5207 = vmatpush1.bf16.msra.mxu0 %v2520
        %5208 = vmatprep.subr.bf16.mxu0 %v2529
        %5209 = vmatpush1.bf16.msra.mxu0 %v2528
        %5210 = vmatprep.subr.bf16.mxu0 %v2537
        %5211 = vmatpush1.bf16.msra.mxu0 %v2536
        %5212 = vmatprep.subr.bf16.mxu0 %v2545
        %5213 = vmatpush1.bf16.msra.mxu0 %v2544
        %5214 = vmatprep.subr.bf16.mxu0 %v2553
        %5215 = vmatpush1.bf16.msra.mxu0 %v2552
        %5216 = vmatprep.subr.bf16.mxu0 %v2561
        %5217 = vmatpush1.bf16.msra.mxu0 %v2560
        %5218 = vmatprep.subr.bf16.mxu0 %v2569
        %5219 = vmatpush1.bf16.msra.mxu0 %v2568
        %5220 = vmatprep.subr.bf16.mxu0 %v2577
        %5221 = vmatpush1.bf16.msra.mxu0 %v2576
        %5222 = vmatprep.subr.bf16.mxu0 %v2585
        %5223 = vmatpush1.bf16.msra.mxu0 %v2584
        %5224 = vmatprep.subr.bf16.mxu0 %v2593
        %5225 = vmatpush1.bf16.msra.mxu0 %v2592
        %5226 = vmatprep.subr.bf16.mxu0 %v2601
        %5227 = vmatpush1.bf16.msra.mxu0 %v2600
        %5228 = vmatprep.subr.bf16.mxu0 %v2609
        %5229 = vmatpush1.bf16.msra.mxu0 %v2608
        %5230 = vmatprep.subr.bf16.mxu0 %v2617
        %5231 = vmatpush1.bf16.msra.mxu0 %v2616
        %5232 = vmatprep.subr.bf16.mxu0 %v2625
        %5233 = vmatpush1.bf16.msra.mxu0 %v2624
        %5234 = vmatprep.subr.bf16.mxu0 %v2633
        %5235 = vmatpush1.bf16.msra.mxu0 %v2632
        %5236 = vmatprep.mubr.bf16.mxu0 %v535
        %5237 = vmatmul.mubr.bf16.gmra.mrb[0].mxu0 %v534
        %v5238 = vpop.f32.mrb[0].mxu0
        %v5239 = vadd.f32 %v4966, %v5238
        %v5240 = vpop.f32.mrb[0].mxu0
        %v5241 = vadd.f32 %v4968, %v5240
        %v5242 = vpop.f32.mrb[0].mxu0
        %v5243 = vadd.f32 %v4970, %v5242
        %v5244 = vpop.f32.mrb[0].mxu0
        %v5245 = vadd.f32 %v4972, %v5244
        %5246 = vmatprep.mubr.bf16.mxu0 %v541
        %5247 = vmatmul.mubr.bf16.gmra.mrb[0].mxu0 %v540
        %v5248 = vpop.f32.mrb[0].mxu0
        %v5249 = vadd.f32 %v4976, %v5248
        %v5250 = vpop.f32.mrb[0].mxu0
        %v5251 = vadd.f32 %v4978, %v5250
        %v5252 = vpop.f32.mrb[0].mxu0
        %v5253 = vadd.f32 %v4980, %v5252
        %v5254 = vpop.f32.mrb[0].mxu0
        %v5255 = vadd.f32 %v4982, %v5254
        %5256 = vmatprep.mubr.bf16.mxu0 %v547
        %5257 = vmatmul.mubr.bf16.gmra.mrb[0].mxu0 %v546
        %v5258 = vpop.f32.mrb[0].mxu0
        %v5259 = vadd.f32 %v4986, %v5258
        %v5260 = vpop.f32.mrb[0].mxu0
        %v5261 = vadd.f32 %v4988, %v5260
        %v5262 = vpop.f32.mrb[0].mxu0
        %v5263 = vadd.f32 %v4990, %v5262
        %v5264 = vpop.f32.mrb[0].mxu0
        %v5265 = vadd.f32 %v4992, %v5264
        %5266 = vmatprep.mubr.bf16.mxu0 %v553
        %5267 = vmatmul.mubr.bf16.gmra.mrb[0].mxu0 %v552
        %v5268 = vpop.f32.mrb[0].mxu0
        %v5269 = vadd.f32 %v4996, %v5268
        %v5270 = vpop.f32.mrb[0].mxu0
        %v5271 = vadd.f32 %v4998, %v5270
        %v5272 = vpop.f32.mrb[0].mxu0
        %v5273 = vadd.f32 %v5000, %v5272
        %v5274 = vpop.f32.mrb[0].mxu0
        %v5275 = vadd.f32 %v5002, %v5274
        %5276 = vmatprep.mubr.bf16.mxu0 %v559
        %5277 = vmatmul.mubr.bf16.gmra.mrb[0].mxu0 %v558
        %v5278 = vpop.f32.mrb[0].mxu0
        %v5279 = vadd.f32 %v5006, %v5278
        %v5280 = vpop.f32.mrb[0].mxu0
        %v5281 = vadd.f32 %v5008, %v5280
        %v5282 = vpop.f32.mrb[0].mxu0
        %v5283 = vadd.f32 %v5010, %v5282
        %v5284 = vpop.f32.mrb[0].mxu0
        %v5285 = vadd.f32 %v5012, %v5284
        %5286 = vmatprep.mubr.bf16.mxu0 %v565
        %5287 = vmatmul.mubr.bf16.gmra.mrb[0].mxu0 %v564
        %v5288 = vpop.f32.mrb[0].mxu0
        %v5289 = vadd.f32 %v5016, %v5288
        %v5290 = vpop.f32.mrb[0].mxu0
        %v5291 = vadd.f32 %v5018, %v5290
        %v5292 = vpop.f32.mrb[0].mxu0
        %v5293 = vadd.f32 %v5020, %v5292
        %v5294 = vpop.f32.mrb[0].mxu0
        %v5295 = vadd.f32 %v5022, %v5294
        %5296 = vmatprep.mubr.bf16.mxu0 %v571
        %5297 = vmatmul.mubr.bf16.gmra.mrb[0].mxu0 %v570
        %v5298 = vpop.f32.mrb[0].mxu0
        %v5299 = vadd.f32 %v5026, %v5298
        %v5300 = vpop.f32.mrb[0].mxu0
        %v5301 = vadd.f32 %v5028, %v5300
        %v5302 = vpop.f32.mrb[0].mxu0
        %v5303 = vadd.f32 %v5030, %v5302
        %v5304 = vpop.f32.mrb[0].mxu0
        %v5305 = vadd.f32 %v5032, %v5304
        %5306 = vmatprep.mubr.bf16.mxu0 %v577
        %5307 = vmatmul.mubr.bf16.gmra.mrb[0].mxu0 %v576
        %v5308 = vpop.f32.mrb[0].mxu0
        %v5309 = vadd.f32 %v5036, %v5308
        %v5310 = vpop.f32.mrb[0].mxu0
        %v5311 = vadd.f32 %v5038, %v5310
        %v5312 = vpop.f32.mrb[0].mxu0
        %v5313 = vadd.f32 %v5040, %v5312
        %v5314 = vpop.f32.mrb[0].mxu0
        %v5315 = vadd.f32 %v5042, %v5314
        %5316 = vmatprep.mubr.bf16.mxu0 %v583
        %5317 = vmatmul.mubr.bf16.gmra.mrb[0].mxu0 %v582
        %v5318 = vpop.f32.mrb[0].mxu0
        %v5319 = vadd.f32 %v5046, %v5318
        %v5320 = vpop.f32.mrb[0].mxu0
        %v5321 = vadd.f32 %v5048, %v5320
        %v5322 = vpop.f32.mrb[0].mxu0
        %v5323 = vadd.f32 %v5050, %v5322
        %v5324 = vpop.f32.mrb[0].mxu0
        %v5325 = vadd.f32 %v5052, %v5324
        %5326 = vmatprep.mubr.bf16.mxu0 %v589
        %5327 = vmatmul.mubr.bf16.gmra.mrb[0].mxu0 %v588
        %v5328 = vpop.f32.mrb[0].mxu0
        %v5329 = vadd.f32 %v5056, %v5328
        %v5330 = vpop.f32.mrb[0].mxu0
        %v5331 = vadd.f32 %v5058, %v5330
        %v5332 = vpop.f32.mrb[0].mxu0
        %v5333 = vadd.f32 %v5060, %v5332
        %v5334 = vpop.f32.mrb[0].mxu0
        %v5335 = vadd.f32 %v5062, %v5334
        %5336 = vmatprep.mubr.bf16.mxu0 %v595
        %5337 = vmatmul.mubr.bf16.gmra.mrb[0].mxu0 %v594
        %v5338 = vpop.f32.mrb[0].mxu0
        %v5339 = vadd.f32 %v5066, %v5338
        %v5340 = vpop.f32.mrb[0].mxu0
        %v5341 = vadd.f32 %v5068, %v5340
        %v5342 = vpop.f32.mrb[0].mxu0
        %v5343 = vadd.f32 %v5070, %v5342
        %v5344 = vpop.f32.mrb[0].mxu0
        %v5345 = vadd.f32 %v5072, %v5344
        %5346 = vmatprep.mubr.bf16.mxu0 %v601
        %5347 = vmatmul.mubr.bf16.gmra.mrb[0].mxu0 %v600
        %v5348 = vpop.f32.mrb[0].mxu0
        %v5349 = vadd.f32 %v5076, %v5348
        %v5350 = vpop.f32.mrb[0].mxu0
        %v5351 = vadd.f32 %v5078, %v5350
        %v5352 = vpop.f32.mrb[0].mxu0
        %v5353 = vadd.f32 %v5080, %v5352
        %v5354 = vpop.f32.mrb[0].mxu0
        %v5355 = vadd.f32 %v5082, %v5354
        %5356 = vmatprep.mubr.bf16.mxu0 %v607
        %5357 = vmatmul.mubr.bf16.gmra.mrb[0].mxu0 %v606
        %v5358 = vpop.f32.mrb[0].mxu0
        %v5359 = vadd.f32 %v5086, %v5358
        %v5360 = vpop.f32.mrb[0].mxu0
        %v5361 = vadd.f32 %v5088, %v5360
        %v5362 = vpop.f32.mrb[0].mxu0
        %v5363 = vadd.f32 %v5090, %v5362
        %v5364 = vpop.f32.mrb[0].mxu0
        %v5365 = vadd.f32 %v5092, %v5364
        %5366 = vmatprep.mubr.bf16.mxu0 %v613
        %5367 = vmatmul.mubr.bf16.gmra.mrb[0].mxu0 %v612
        %v5368 = vpop.f32.mrb[0].mxu0
        %v5369 = vadd.f32 %v5096, %v5368
        %v5370 = vpop.f32.mrb[0].mxu0
        %v5371 = vadd.f32 %v5098, %v5370
        %v5372 = vpop.f32.mrb[0].mxu0
        %v5373 = vadd.f32 %v5100, %v5372
        %v5374 = vpop.f32.mrb[0].mxu0
        %v5375 = vadd.f32 %v5102, %v5374
        %5376 = vmatprep.mubr.bf16.mxu0 %v619
        %5377 = vmatmul.mubr.bf16.gmra.mrb[0].mxu0 %v618
        %v5378 = vpop.f32.mrb[0].mxu0
        %v5379 = vadd.f32 %v5106, %v5378
        %v5380 = vpop.f32.mrb[0].mxu0
        %v5381 = vadd.f32 %v5108, %v5380
        %v5382 = vpop.f32.mrb[0].mxu0
        %v5383 = vadd.f32 %v5110, %v5382
        %v5384 = vpop.f32.mrb[0].mxu0
        %v5385 = vadd.f32 %v5112, %v5384
        %5386 = vmatprep.mubr.bf16.mxu0 %v625
        %5387 = vmatmul.mubr.bf16.gmra.mrb[0].mxu0 %v624
        %v5388 = vpop.f32.mrb[0].mxu0
        %v5389 = vadd.f32 %v5116, %v5388
        %v5390 = vpop.f32.mrb[0].mxu0
        %v5391 = vadd.f32 %v5118, %v5390
        %v5392 = vpop.f32.mrb[0].mxu0
        %v5393 = vadd.f32 %v5120, %v5392
        %v5394 = vpop.f32.mrb[0].mxu0
        %v5395 = vadd.f32 %v5122, %v5394
        %5396 = vmatprep.mubr.bf16.mxu0 %v631
        %5397 = vmatmul.mubr.bf16.gmra.mrb[0].mxu0 %v630
        %v5398 = vpop.f32.mrb[0].mxu0
        %v5399 = vadd.f32 %v5126, %v5398
        %v5400 = vpop.f32.mrb[0].mxu0
        %v5401 = vadd.f32 %v5128, %v5400
        %v5402 = vpop.f32.mrb[0].mxu0
        %v5403 = vadd.f32 %v5130, %v5402
        %v5404 = vpop.f32.mrb[0].mxu0
        %v5405 = vadd.f32 %v5132, %v5404
        %5406 = vmatprep.mubr.bf16.mxu0 %v637
        %5407 = vmatmul.mubr.bf16.gmra.mrb[0].mxu0 %v636
        %v5408 = vpop.f32.mrb[0].mxu0
        %v5409 = vadd.f32 %v5136, %v5408
        %v5410 = vpop.f32.mrb[0].mxu0
        %v5411 = vadd.f32 %v5138, %v5410
        %v5412 = vpop.f32.mrb[0].mxu0
        %v5413 = vadd.f32 %v5140, %v5412
        %v5414 = vpop.f32.mrb[0].mxu0
        %v5415 = vadd.f32 %v5142, %v5414
        %5416 = vmatprep.mubr.bf16.mxu0 %v643
        %5417 = vmatmul.mubr.bf16.gmra.mrb[0].mxu0 %v642
        %v5418 = vpop.f32.mrb[0].mxu0
        %v5419 = vadd.f32 %v5146, %v5418
        %v5420 = vpop.f32.mrb[0].mxu0
        %v5421 = vadd.f32 %v5148, %v5420
        %v5422 = vpop.f32.mrb[0].mxu0
        %v5423 = vadd.f32 %v5150, %v5422
        %v5424 = vpop.f32.mrb[0].mxu0
        %v5425 = vadd.f32 %v5152, %v5424
        %5426 = vmatprep.mubr.bf16.mxu0 %v649
        %5427 = vmatmul.mubr.bf16.gmra.mrb[0].mxu0 %v648
        %v5428 = vpop.f32.mrb[0].mxu0
        %v5429 = vadd.f32 %v5156, %v5428
        %v5430 = vpop.f32.mrb[0].mxu0
        %v5431 = vadd.f32 %v5158, %v5430
        %v5432 = vpop.f32.mrb[0].mxu0
        %v5433 = vadd.f32 %v5160, %v5432
        %v5434 = vpop.f32.mrb[0].mxu0
        %v5435 = vadd.f32 %v5162, %v5434
        %5436 = vmatprep.mubr.bf16.mxu0 %v655
        %5437 = vmatmul.mubr.bf16.gmra.mrb[0].mxu0 %v654
        %v5438 = vpop.f32.mrb[0].mxu0
        %v5439 = vadd.f32 %v5166, %v5438
        %v5440 = vpop.f32.mrb[0].mxu0
        %v5441 = vadd.f32 %v5168, %v5440
        %v5442 = vpop.f32.mrb[0].mxu0
        %v5443 = vadd.f32 %v5170, %v5442
        %v5444 = vpop.f32.mrb[0].mxu0
        %v5445 = vadd.f32 %v5172, %v5444
        %5446 = vmatprep.mubr.bf16.mxu0 %v661
        %5447 = vmatmul.mubr.bf16.gmra.mrb[0].mxu0 %v660
        %v5448 = vpop.f32.mrb[0].mxu0
        %v5449 = vadd.f32 %v5176, %v5448
        %v5450 = vpop.f32.mrb[0].mxu0
        %v5451 = vadd.f32 %v5178, %v5450
        %v5452 = vpop.f32.mrb[0].mxu0
        %v5453 = vadd.f32 %v5180, %v5452
        %v5454 = vpop.f32.mrb[0].mxu0
        %v5455 = vadd.f32 %v5182, %v5454
        %5456 = vmatprep.mubr.bf16.mxu0 %v667
        %5457 = vmatmul.mubr.bf16.gmra.mrb[0].mxu0 %v666
        %v5458 = vpop.f32.mrb[0].mxu0
        %v5459 = vadd.f32 %v5186, %v5458
        %v5460 = vpop.f32.mrb[0].mxu0
        %v5461 = vadd.f32 %v5188, %v5460
        %v5462 = vpop.f32.mrb[0].mxu0
        %v5463 = vadd.f32 %v5190, %v5462
        %v5464 = vpop.f32.mrb[0].mxu0
        %v5465 = vadd.f32 %v5192, %v5464
        %5466 = vmatprep.mubr.bf16.mxu0 %v673
        %5467 = vmatmul.mubr.bf16.gmra.mrb[0].mxu0 %v672
        %v5468 = vpop.f32.mrb[0].mxu0
        %v5469 = vadd.f32 %v5196, %v5468
        %v5470 = vpop.f32.mrb[0].mxu0
        %v5471 = vadd.f32 %v5198, %v5470
        %v5472 = vpop.f32.mrb[0].mxu0
        %v5473 = vadd.f32 %v5200, %v5472
        %v5474 = vpop.f32.mrb[0].mxu0
        %v5475 = vadd.f32 %v5202, %v5474
        %5476 = vdwg.mxu0
        %5477 = vmatprep.subr.bf16.mxu0 %v2259
        %5478 = vmatpush1.bf16.msra.mxu0 %v2258
        %5479 = vmatprep.subr.bf16.mxu0 %v2267
        %5480 = vmatpush1.bf16.msra.mxu0 %v2266
        %5481 = vmatprep.subr.bf16.mxu0 %v2275
        %5482 = vmatpush1.bf16.msra.mxu0 %v2274
        %5483 = vmatprep.subr.bf16.mxu0 %v2283
        %5484 = vmatpush1.bf16.msra.mxu0 %v2282
        %5485 = vmatprep.subr.bf16.mxu0 %v2291
        %5486 = vmatpush1.bf16.msra.mxu0 %v2290
        %5487 = vmatprep.subr.bf16.mxu0 %v2299
        %5488 = vmatpush1.bf16.msra.mxu0 %v2298
        %5489 = vmatprep.subr.bf16.mxu0 %v2307
        %5490 = vmatpush1.bf16.msra.mxu0 %v2306
        %5491 = vmatprep.subr.bf16.mxu0 %v2315
        %5492 = vmatpush1.bf16.msra.mxu0 %v2314
        %5493 = vmatprep.subr.bf16.mxu0 %v2323
        %5494 = vmatpush1.bf16.msra.mxu0 %v2322
        %5495 = vmatprep.subr.bf16.mxu0 %v2331
        %5496 = vmatpush1.bf16.msra.mxu0 %v2330
        %5497 = vmatprep.subr.bf16.mxu0 %v2339
        %5498 = vmatpush1.bf16.msra.mxu0 %v2338
        %5499 = vmatprep.subr.bf16.mxu0 %v2347
        %5500 = vmatpush1.bf16.msra.mxu0 %v2346
        %5501 = vmatprep.subr.bf16.mxu0 %v2355
        %5502 = vmatpush1.bf16.msra.mxu0 %v2354
        %5503 = vmatprep.subr.bf16.mxu0 %v2363
        %5504 = vmatpush1.bf16.msra.mxu0 %v2362
        %5505 = vmatprep.subr.bf16.mxu0 %v2371
        %5506 = vmatpush1.bf16.msra.mxu0 %v2370
        %5507 = vmatprep.subr.bf16.mxu0 %v2379
        %5508 = vmatpush1.bf16.msra.mxu0 %v2378
        %5509 = vmatprep.mubr.bf16.mxu0 %v531
        %5510 = vmatmul.mubr.bf16.gmra.mrb[0].mxu0 %v530
        %v5511 = vpop.f32.mrb[0].mxu0
        %v5512 = vadd.f32 %v1087, %v5511
        %v5513 = vpop.f32.mrb[0].mxu0
        %v5514 = vadd.f32 %v1091, %v5513
        %v5515 = vpop.f32.mrb[0].mxu0
        %v5516 = vadd.f32 %v1087, %v5515
        %v5517 = vpop.f32.mrb[0].mxu0
        %v5518 = vadd.f32 %v1091, %v5517
        %5519 = vmatprep.mubr.bf16.mxu0 %v537
        %5520 = vmatmul.mubr.bf16.gmra.mrb[0].mxu0 %v536
        %v5521 = vpop.f32.mrb[0].mxu0
        %v5522 = vadd.f32 %v1087, %v5521
        %v5523 = vpop.f32.mrb[0].mxu0
        %v5524 = vadd.f32 %v1091, %v5523
        %v5525 = vpop.f32.mrb[0].mxu0
        %v5526 = vadd.f32 %v1087, %v5525
        %v5527 = vpop.f32.mrb[0].mxu0
        %v5528 = vadd.f32 %v1091, %v5527
        %5529 = vmatprep.mubr.bf16.mxu0 %v543
        %5530 = vmatmul.mubr.bf16.gmra.mrb[0].mxu0 %v542
        %v5531 = vpop.f32.mrb[0].mxu0
        %v5532 = vadd.f32 %v1087, %v5531
        %v5533 = vpop.f32.mrb[0].mxu0
        %v5534 = vadd.f32 %v1091, %v5533
        %v5535 = vpop.f32.mrb[0].mxu0
        %v5536 = vadd.f32 %v1087, %v5535
        %v5537 = vpop.f32.mrb[0].mxu0
        %v5538 = vadd.f32 %v1091, %v5537
        %5539 = vmatprep.mubr.bf16.mxu0 %v549
        %5540 = vmatmul.mubr.bf16.gmra.mrb[0].mxu0 %v548
        %v5541 = vpop.f32.mrb[0].mxu0
        %v5542 = vadd.f32 %v1087, %v5541
        %v5543 = vpop.f32.mrb[0].mxu0
        %v5544 = vadd.f32 %v1091, %v5543
        %v5545 = vpop.f32.mrb[0].mxu0
        %v5546 = vadd.f32 %v1087, %v5545
        %v5547 = vpop.f32.mrb[0].mxu0
        %v5548 = vadd.f32 %v1091, %v5547
        %5549 = vmatprep.mubr.bf16.mxu0 %v555
        %5550 = vmatmul.mubr.bf16.gmra.mrb[0].mxu0 %v554
        %v5551 = vpop.f32.mrb[0].mxu0
        %v5552 = vadd.f32 %v1087, %v5551
        %v5553 = vpop.f32.mrb[0].mxu0
        %v5554 = vadd.f32 %v1091, %v5553
        %v5555 = vpop.f32.mrb[0].mxu0
        %v5556 = vadd.f32 %v1087, %v5555
        %v5557 = vpop.f32.mrb[0].mxu0
        %v5558 = vadd.f32 %v1091, %v5557
        %5559 = vmatprep.mubr.bf16.mxu0 %v561
        %5560 = vmatmul.mubr.bf16.gmra.mrb[0].mxu0 %v560
        %v5561 = vpop.f32.mrb[0].mxu0
        %v5562 = vadd.f32 %v1087, %v5561
        %v5563 = vpop.f32.mrb[0].mxu0
        %v5564 = vadd.f32 %v1091, %v5563
        %v5565 = vpop.f32.mrb[0].mxu0
        %v5566 = vadd.f32 %v1087, %v5565
        %v5567 = vpop.f32.mrb[0].mxu0
        %v5568 = vadd.f32 %v1091, %v5567
        %5569 = vmatprep.mubr.bf16.mxu0 %v567
        %5570 = vmatmul.mubr.bf16.gmra.mrb[0].mxu0 %v566
        %v5571 = vpop.f32.mrb[0].mxu0
        %v5572 = vadd.f32 %v1087, %v5571
        %v5573 = vpop.f32.mrb[0].mxu0
        %v5574 = vadd.f32 %v1091, %v5573
        %v5575 = vpop.f32.mrb[0].mxu0
        %v5576 = vadd.f32 %v1087, %v5575
        %v5577 = vpop.f32.mrb[0].mxu0
        %v5578 = vadd.f32 %v1091, %v5577
        %5579 = vmatprep.mubr.bf16.mxu0 %v573
        %5580 = vmatmul.mubr.bf16.gmra.mrb[0].mxu0 %v572
        %v5581 = vpop.f32.mrb[0].mxu0
        %v5582 = vadd.f32 %v1087, %v5581
        %v5583 = vpop.f32.mrb[0].mxu0
        %v5584 = vadd.f32 %v1091, %v5583
        %v5585 = vpop.f32.mrb[0].mxu0
        %v5586 = vadd.f32 %v1087, %v5585
        %v5587 = vpop.f32.mrb[0].mxu0
        %v5588 = vadd.f32 %v1091, %v5587
        %5589 = vmatprep.mubr.bf16.mxu0 %v579
        %5590 = vmatmul.mubr.bf16.gmra.mrb[0].mxu0 %v578
        %v5591 = vpop.f32.mrb[0].mxu0
        %v5592 = vadd.f32 %v1087, %v5591
        %v5593 = vpop.f32.mrb[0].mxu0
        %v5594 = vadd.f32 %v1091, %v5593
        %v5595 = vpop.f32.mrb[0].mxu0
        %v5596 = vadd.f32 %v1087, %v5595
        %v5597 = vpop.f32.mrb[0].mxu0
        %v5598 = vadd.f32 %v1091, %v5597
        %5599 = vmatprep.mubr.bf16.mxu0 %v585
        %5600 = vmatmul.mubr.bf16.gmra.mrb[0].mxu0 %v584
        %v5601 = vpop.f32.mrb[0].mxu0
        %v5602 = vadd.f32 %v1087, %v5601
        %v5603 = vpop.f32.mrb[0].mxu0
        %v5604 = vadd.f32 %v1091, %v5603
        %v5605 = vpop.f32.mrb[0].mxu0
        %v5606 = vadd.f32 %v1087, %v5605
        %v5607 = vpop.f32.mrb[0].mxu0
        %v5608 = vadd.f32 %v1091, %v5607
        %5609 = vmatprep.mubr.bf16.mxu0 %v591
        %5610 = vmatmul.mubr.bf16.gmra.mrb[0].mxu0 %v590
        %v5611 = vpop.f32.mrb[0].mxu0
        %v5612 = vadd.f32 %v1087, %v5611
        %v5613 = vpop.f32.mrb[0].mxu0
        %v5614 = vadd.f32 %v1091, %v5613
        %v5615 = vpop.f32.mrb[0].mxu0
        %v5616 = vadd.f32 %v1087, %v5615
        %v5617 = vpop.f32.mrb[0].mxu0
        %v5618 = vadd.f32 %v1091, %v5617
        %5619 = vmatprep.mubr.bf16.mxu0 %v597
        %5620 = vmatmul.mubr.bf16.gmra.mrb[0].mxu0 %v596
        %v5621 = vpop.f32.mrb[0].mxu0
        %v5622 = vadd.f32 %v1087, %v5621
        %v5623 = vpop.f32.mrb[0].mxu0
        %v5624 = vadd.f32 %v1091, %v5623
        %v5625 = vpop.f32.mrb[0].mxu0
        %v5626 = vadd.f32 %v1087, %v5625
        %v5627 = vpop.f32.mrb[0].mxu0
        %v5628 = vadd.f32 %v1091, %v5627
        %5629 = vmatprep.mubr.bf16.mxu0 %v603
        %5630 = vmatmul.mubr.bf16.gmra.mrb[0].mxu0 %v602
        %v5631 = vpop.f32.mrb[0].mxu0
        %v5632 = vadd.f32 %v1087, %v5631
        %v5633 = vpop.f32.mrb[0].mxu0
        %v5634 = vadd.f32 %v1091, %v5633
        %v5635 = vpop.f32.mrb[0].mxu0
        %v5636 = vadd.f32 %v1087, %v5635
        %v5637 = vpop.f32.mrb[0].mxu0
        %v5638 = vadd.f32 %v1091, %v5637
        %5639 = vmatprep.mubr.bf16.mxu0 %v609
        %5640 = vmatmul.mubr.bf16.gmra.mrb[0].mxu0 %v608
        %v5641 = vpop.f32.mrb[0].mxu0
        %v5642 = vadd.f32 %v1087, %v5641
        %v5643 = vpop.f32.mrb[0].mxu0
        %v5644 = vadd.f32 %v1091, %v5643
        %v5645 = vpop.f32.mrb[0].mxu0
        %v5646 = vadd.f32 %v1087, %v5645
        %v5647 = vpop.f32.mrb[0].mxu0
        %v5648 = vadd.f32 %v1091, %v5647
        %5649 = vmatprep.mubr.bf16.mxu0 %v615
        %5650 = vmatmul.mubr.bf16.gmra.mrb[0].mxu0 %v614
        %v5651 = vpop.f32.mrb[0].mxu0
        %v5652 = vadd.f32 %v1087, %v5651
        %v5653 = vpop.f32.mrb[0].mxu0
        %v5654 = vadd.f32 %v1091, %v5653
        %v5655 = vpop.f32.mrb[0].mxu0
        %v5656 = vadd.f32 %v1087, %v5655
        %v5657 = vpop.f32.mrb[0].mxu0
        %v5658 = vadd.f32 %v1091, %v5657
        %5659 = vmatprep.mubr.bf16.mxu0 %v621
        %5660 = vmatmul.mubr.bf16.gmra.mrb[0].mxu0 %v620
        %v5661 = vpop.f32.mrb[0].mxu0
        %v5662 = vadd.f32 %v1087, %v5661
        %v5663 = vpop.f32.mrb[0].mxu0
        %v5664 = vadd.f32 %v1091, %v5663
        %v5665 = vpop.f32.mrb[0].mxu0
        %v5666 = vadd.f32 %v1087, %v5665
        %v5667 = vpop.f32.mrb[0].mxu0
        %v5668 = vadd.f32 %v1091, %v5667
        %5669 = vmatprep.mubr.bf16.mxu0 %v627
        %5670 = vmatmul.mubr.bf16.gmra.mrb[0].mxu0 %v626
        %v5671 = vpop.f32.mrb[0].mxu0
        %v5672 = vadd.f32 %v1087, %v5671
        %v5673 = vpop.f32.mrb[0].mxu0
        %v5674 = vadd.f32 %v1091, %v5673
        %v5675 = vpop.f32.mrb[0].mxu0
        %v5676 = vadd.f32 %v1087, %v5675
        %v5677 = vpop.f32.mrb[0].mxu0
        %v5678 = vadd.f32 %v1091, %v5677
        %5679 = vmatprep.mubr.bf16.mxu0 %v633
        %5680 = vmatmul.mubr.bf16.gmra.mrb[0].mxu0 %v632
        %v5681 = vpop.f32.mrb[0].mxu0
        %v5682 = vadd.f32 %v1087, %v5681
        %v5683 = vpop.f32.mrb[0].mxu0
        %v5684 = vadd.f32 %v1091, %v5683
        %v5685 = vpop.f32.mrb[0].mxu0
        %v5686 = vadd.f32 %v1087, %v5685
        %v5687 = vpop.f32.mrb[0].mxu0
        %v5688 = vadd.f32 %v1091, %v5687
        %5689 = vmatprep.mubr.bf16.mxu0 %v639
        %5690 = vmatmul.mubr.bf16.gmra.mrb[0].mxu0 %v638
        %v5691 = vpop.f32.mrb[0].mxu0
        %v5692 = vadd.f32 %v1087, %v5691
        %v5693 = vpop.f32.mrb[0].mxu0
        %v5694 = vadd.f32 %v1091, %v5693
        %v5695 = vpop.f32.mrb[0].mxu0
        %v5696 = vadd.f32 %v1087, %v5695
        %v5697 = vpop.f32.mrb[0].mxu0
        %v5698 = vadd.f32 %v1091, %v5697
        %5699 = vmatprep.mubr.bf16.mxu0 %v645
        %5700 = vmatmul.mubr.bf16.gmra.mrb[0].mxu0 %v644
        %v5701 = vpop.f32.mrb[0].mxu0
        %v5702 = vadd.f32 %v1087, %v5701
        %v5703 = vpop.f32.mrb[0].mxu0
        %v5704 = vadd.f32 %v1091, %v5703
        %v5705 = vpop.f32.mrb[0].mxu0
        %v5706 = vadd.f32 %v1087, %v5705
        %v5707 = vpop.f32.mrb[0].mxu0
        %v5708 = vadd.f32 %v1091, %v5707
        %5709 = vmatprep.mubr.bf16.mxu0 %v651
        %5710 = vmatmul.mubr.bf16.gmra.mrb[0].mxu0 %v650
        %v5711 = vpop.f32.mrb[0].mxu0
        %v5712 = vadd.f32 %v1087, %v5711
        %v5713 = vpop.f32.mrb[0].mxu0
        %v5714 = vadd.f32 %v1091, %v5713
        %v5715 = vpop.f32.mrb[0].mxu0
        %v5716 = vadd.f32 %v1087, %v5715
        %v5717 = vpop.f32.mrb[0].mxu0
        %v5718 = vadd.f32 %v1091, %v5717
        %5719 = vmatprep.mubr.bf16.mxu0 %v657
        %5720 = vmatmul.mubr.bf16.gmra.mrb[0].mxu0 %v656
        %v5721 = vpop.f32.mrb[0].mxu0
        %v5722 = vadd.f32 %v1087, %v5721
        %v5723 = vpop.f32.mrb[0].mxu0
        %v5724 = vadd.f32 %v1091, %v5723
        %v5725 = vpop.f32.mrb[0].mxu0
        %v5726 = vadd.f32 %v1087, %v5725
        %v5727 = vpop.f32.mrb[0].mxu0
        %v5728 = vadd.f32 %v1091, %v5727
        %5729 = vmatprep.mubr.bf16.mxu0 %v663
        %5730 = vmatmul.mubr.bf16.gmra.mrb[0].mxu0 %v662
        %v5731 = vpop.f32.mrb[0].mxu0
        %v5732 = vadd.f32 %v1087, %v5731
        %v5733 = vpop.f32.mrb[0].mxu0
        %v5734 = vadd.f32 %v1091, %v5733
        %v5735 = vpop.f32.mrb[0].mxu0
        %v5736 = vadd.f32 %v1087, %v5735
        %v5737 = vpop.f32.mrb[0].mxu0
        %v5738 = vadd.f32 %v1091, %v5737
        %5739 = vmatprep.mubr.bf16.mxu0 %v669
        %5740 = vmatmul.mubr.bf16.gmra.mrb[0].mxu0 %v668
        %v5741 = vpop.f32.mrb[0].mxu0
        %v5742 = vadd.f32 %v1087, %v5741
        %v5743 = vpop.f32.mrb[0].mxu0
        %v5744 = vadd.f32 %v1091, %v5743
        %v5745 = vpop.f32.mrb[0].mxu0
        %v5746 = vadd.f32 %v1087, %v5745
        %v5747 = vpop.f32.mrb[0].mxu0
        %v5748 = vadd.f32 %v1091, %v5747
        %5749 = vdwg.mxu0
        %5750 = vmatprep.subr.bf16.mxu0 %v2387
        %5751 = vmatpush1.bf16.msra.mxu0 %v2386
        %5752 = vmatprep.subr.bf16.mxu0 %v2395
        %5753 = vmatpush1.bf16.msra.mxu0 %v2394
        %5754 = vmatprep.subr.bf16.mxu0 %v2403
        %5755 = vmatpush1.bf16.msra.mxu0 %v2402
        %5756 = vmatprep.subr.bf16.mxu0 %v2411
        %5757 = vmatpush1.bf16.msra.mxu0 %v2410
        %5758 = vmatprep.subr.bf16.mxu0 %v2419
        %5759 = vmatpush1.bf16.msra.mxu0 %v2418
        %5760 = vmatprep.subr.bf16.mxu0 %v2427
        %5761 = vmatpush1.bf16.msra.mxu0 %v2426
        %5762 = vmatprep.subr.bf16.mxu0 %v2435
        %5763 = vmatpush1.bf16.msra.mxu0 %v2434
        %5764 = vmatprep.subr.bf16.mxu0 %v2443
        %5765 = vmatpush1.bf16.msra.mxu0 %v2442
        %5766 = vmatprep.subr.bf16.mxu0 %v2451
        %5767 = vmatpush1.bf16.msra.mxu0 %v2450
        %5768 = vmatprep.subr.bf16.mxu0 %v2459
        %5769 = vmatpush1.bf16.msra.mxu0 %v2458
        %5770 = vmatprep.subr.bf16.mxu0 %v2467
        %5771 = vmatpush1.bf16.msra.mxu0 %v2466
        %5772 = vmatprep.subr.bf16.mxu0 %v2475
        %5773 = vmatpush1.bf16.msra.mxu0 %v2474
        %5774 = vmatprep.subr.bf16.mxu0 %v2483
        %5775 = vmatpush1.bf16.msra.mxu0 %v2482
        %5776 = vmatprep.subr.bf16.mxu0 %v2491
        %5777 = vmatpush1.bf16.msra.mxu0 %v2490
        %5778 = vmatprep.subr.bf16.mxu0 %v2499
        %5779 = vmatpush1.bf16.msra.mxu0 %v2498
        %5780 = vmatprep.subr.bf16.mxu0 %v2507
        %5781 = vmatpush1.bf16.msra.mxu0 %v2506
        %5782 = vmatprep.mubr.bf16.mxu0 %v533
        %5783 = vmatmul.mubr.bf16.gmra.mrb[0].mxu0 %v532
        %v5784 = vpop.f32.mrb[0].mxu0
        %v5785 = vadd.f32 %v5512, %v5784
        %v5786 = vpop.f32.mrb[0].mxu0
        %v5787 = vadd.f32 %v5514, %v5786
        %v5788 = vpop.f32.mrb[0].mxu0
        %v5789 = vadd.f32 %v5516, %v5788
        %v5790 = vpop.f32.mrb[0].mxu0
        %v5791 = vadd.f32 %v5518, %v5790
        %5792 = vmatprep.mubr.bf16.mxu0 %v539
        %5793 = vmatmul.mubr.bf16.gmra.mrb[0].mxu0 %v538
        %v5794 = vpop.f32.mrb[0].mxu0
        %v5795 = vadd.f32 %v5522, %v5794
        %v5796 = vpop.f32.mrb[0].mxu0
        %v5797 = vadd.f32 %v5524, %v5796
        %v5798 = vpop.f32.mrb[0].mxu0
        %v5799 = vadd.f32 %v5526, %v5798
        %v5800 = vpop.f32.mrb[0].mxu0
        %v5801 = vadd.f32 %v5528, %v5800
        %5802 = vmatprep.mubr.bf16.mxu0 %v545
        %5803 = vmatmul.mubr.bf16.gmra.mrb[0].mxu0 %v544
        %v5804 = vpop.f32.mrb[0].mxu0
        %v5805 = vadd.f32 %v5532, %v5804
        %v5806 = vpop.f32.mrb[0].mxu0
        %v5807 = vadd.f32 %v5534, %v5806
        %v5808 = vpop.f32.mrb[0].mxu0
        %v5809 = vadd.f32 %v5536, %v5808
        %v5810 = vpop.f32.mrb[0].mxu0
        %v5811 = vadd.f32 %v5538, %v5810
        %5812 = vmatprep.mubr.bf16.mxu0 %v551
        %5813 = vmatmul.mubr.bf16.gmra.mrb[0].mxu0 %v550
        %v5814 = vpop.f32.mrb[0].mxu0
        %v5815 = vadd.f32 %v5542, %v5814
        %v5816 = vpop.f32.mrb[0].mxu0
        %v5817 = vadd.f32 %v5544, %v5816
        %v5818 = vpop.f32.mrb[0].mxu0
        %v5819 = vadd.f32 %v5546, %v5818
        %v5820 = vpop.f32.mrb[0].mxu0
        %v5821 = vadd.f32 %v5548, %v5820
        %5822 = vmatprep.mubr.bf16.mxu0 %v557
        %5823 = vmatmul.mubr.bf16.gmra.mrb[0].mxu0 %v556
        %v5824 = vpop.f32.mrb[0].mxu0
        %v5825 = vadd.f32 %v5552, %v5824
        %v5826 = vpop.f32.mrb[0].mxu0
        %v5827 = vadd.f32 %v5554, %v5826
        %v5828 = vpop.f32.mrb[0].mxu0
        %v5829 = vadd.f32 %v5556, %v5828
        %v5830 = vpop.f32.mrb[0].mxu0
        %v5831 = vadd.f32 %v5558, %v5830
        %5832 = vmatprep.mubr.bf16.mxu0 %v563
        %5833 = vmatmul.mubr.bf16.gmra.mrb[0].mxu0 %v562
        %v5834 = vpop.f32.mrb[0].mxu0
        %v5835 = vadd.f32 %v5562, %v5834
        %v5836 = vpop.f32.mrb[0].mxu0
        %v5837 = vadd.f32 %v5564, %v5836
        %v5838 = vpop.f32.mrb[0].mxu0
        %v5839 = vadd.f32 %v5566, %v5838
        %v5840 = vpop.f32.mrb[0].mxu0
        %v5841 = vadd.f32 %v5568, %v5840
        %5842 = vmatprep.mubr.bf16.mxu0 %v569
        %5843 = vmatmul.mubr.bf16.gmra.mrb[0].mxu0 %v568
        %v5844 = vpop.f32.mrb[0].mxu0
        %v5845 = vadd.f32 %v5572, %v5844
        %v5846 = vpop.f32.mrb[0].mxu0
        %v5847 = vadd.f32 %v5574, %v5846
        %v5848 = vpop.f32.mrb[0].mxu0
        %v5849 = vadd.f32 %v5576, %v5848
        %v5850 = vpop.f32.mrb[0].mxu0
        %v5851 = vadd.f32 %v5578, %v5850
        %5852 = vmatprep.mubr.bf16.mxu0 %v575
        %5853 = vmatmul.mubr.bf16.gmra.mrb[0].mxu0 %v574
        %v5854 = vpop.f32.mrb[0].mxu0
        %v5855 = vadd.f32 %v5582, %v5854
        %v5856 = vpop.f32.mrb[0].mxu0
        %v5857 = vadd.f32 %v5584, %v5856
        %v5858 = vpop.f32.mrb[0].mxu0
        %v5859 = vadd.f32 %v5586, %v5858
        %v5860 = vpop.f32.mrb[0].mxu0
        %v5861 = vadd.f32 %v5588, %v5860
        %5862 = vmatprep.mubr.bf16.mxu0 %v581
        %5863 = vmatmul.mubr.bf16.gmra.mrb[0].mxu0 %v580
        %v5864 = vpop.f32.mrb[0].mxu0
        %v5865 = vadd.f32 %v5592, %v5864
        %v5866 = vpop.f32.mrb[0].mxu0
        %v5867 = vadd.f32 %v5594, %v5866
        %v5868 = vpop.f32.mrb[0].mxu0
        %v5869 = vadd.f32 %v5596, %v5868
        %v5870 = vpop.f32.mrb[0].mxu0
        %v5871 = vadd.f32 %v5598, %v5870
        %5872 = vmatprep.mubr.bf16.mxu0 %v587
        %5873 = vmatmul.mubr.bf16.gmra.mrb[0].mxu0 %v586
        %v5874 = vpop.f32.mrb[0].mxu0
        %v5875 = vadd.f32 %v5602, %v5874
        %v5876 = vpop.f32.mrb[0].mxu0
        %v5877 = vadd.f32 %v5604, %v5876
        %v5878 = vpop.f32.mrb[0].mxu0
        %v5879 = vadd.f32 %v5606, %v5878
        %v5880 = vpop.f32.mrb[0].mxu0
        %v5881 = vadd.f32 %v5608, %v5880
        %5882 = vmatprep.mubr.bf16.mxu0 %v593
        %5883 = vmatmul.mubr.bf16.gmra.mrb[0].mxu0 %v592
        %v5884 = vpop.f32.mrb[0].mxu0
        %v5885 = vadd.f32 %v5612, %v5884
        %v5886 = vpop.f32.mrb[0].mxu0
        %v5887 = vadd.f32 %v5614, %v5886
        %v5888 = vpop.f32.mrb[0].mxu0
        %v5889 = vadd.f32 %v5616, %v5888
        %v5890 = vpop.f32.mrb[0].mxu0
        %v5891 = vadd.f32 %v5618, %v5890
        %5892 = vmatprep.mubr.bf16.mxu0 %v599
        %5893 = vmatmul.mubr.bf16.gmra.mrb[0].mxu0 %v598
        %v5894 = vpop.f32.mrb[0].mxu0
        %v5895 = vadd.f32 %v5622, %v5894
        %v5896 = vpop.f32.mrb[0].mxu0
        %v5897 = vadd.f32 %v5624, %v5896
        %v5898 = vpop.f32.mrb[0].mxu0
        %v5899 = vadd.f32 %v5626, %v5898
        %v5900 = vpop.f32.mrb[0].mxu0
        %v5901 = vadd.f32 %v5628, %v5900
        %5902 = vmatprep.mubr.bf16.mxu0 %v605
        %5903 = vmatmul.mubr.bf16.gmra.mrb[0].mxu0 %v604
        %v5904 = vpop.f32.mrb[0].mxu0
        %v5905 = vadd.f32 %v5632, %v5904
        %v5906 = vpop.f32.mrb[0].mxu0
        %v5907 = vadd.f32 %v5634, %v5906
        %v5908 = vpop.f32.mrb[0].mxu0
        %v5909 = vadd.f32 %v5636, %v5908
        %v5910 = vpop.f32.mrb[0].mxu0
        %v5911 = vadd.f32 %v5638, %v5910
        %5912 = vmatprep.mubr.bf16.mxu0 %v611
        %5913 = vmatmul.mubr.bf16.gmra.mrb[0].mxu0 %v610
        %v5914 = vpop.f32.mrb[0].mxu0
        %v5915 = vadd.f32 %v5642, %v5914
        %v5916 = vpop.f32.mrb[0].mxu0
        %v5917 = vadd.f32 %v5644, %v5916
        %v5918 = vpop.f32.mrb[0].mxu0
        %v5919 = vadd.f32 %v5646, %v5918
        %v5920 = vpop.f32.mrb[0].mxu0
        %v5921 = vadd.f32 %v5648, %v5920
        %5922 = vmatprep.mubr.bf16.mxu0 %v617
        %5923 = vmatmul.mubr.bf16.gmra.mrb[0].mxu0 %v616
        %v5924 = vpop.f32.mrb[0].mxu0
        %v5925 = vadd.f32 %v5652, %v5924
        %v5926 = vpop.f32.mrb[0].mxu0
        %v5927 = vadd.f32 %v5654, %v5926
        %v5928 = vpop.f32.mrb[0].mxu0
        %v5929 = vadd.f32 %v5656, %v5928
        %v5930 = vpop.f32.mrb[0].mxu0
        %v5931 = vadd.f32 %v5658, %v5930
        %5932 = vmatprep.mubr.bf16.mxu0 %v623
        %5933 = vmatmul.mubr.bf16.gmra.mrb[0].mxu0 %v622
        %v5934 = vpop.f32.mrb[0].mxu0
        %v5935 = vadd.f32 %v5662, %v5934
        %v5936 = vpop.f32.mrb[0].mxu0
        %v5937 = vadd.f32 %v5664, %v5936
        %v5938 = vpop.f32.mrb[0].mxu0
        %v5939 = vadd.f32 %v5666, %v5938
        %v5940 = vpop.f32.mrb[0].mxu0
        %v5941 = vadd.f32 %v5668, %v5940
        %5942 = vmatprep.mubr.bf16.mxu0 %v629
        %5943 = vmatmul.mubr.bf16.gmra.mrb[0].mxu0 %v628
        %v5944 = vpop.f32.mrb[0].mxu0
        %v5945 = vadd.f32 %v5672, %v5944
        %v5946 = vpop.f32.mrb[0].mxu0
        %v5947 = vadd.f32 %v5674, %v5946
        %v5948 = vpop.f32.mrb[0].mxu0
        %v5949 = vadd.f32 %v5676, %v5948
        %v5950 = vpop.f32.mrb[0].mxu0
        %v5951 = vadd.f32 %v5678, %v5950
        %5952 = vmatprep.mubr.bf16.mxu0 %v635
        %5953 = vmatmul.mubr.bf16.gmra.mrb[0].mxu0 %v634
        %v5954 = vpop.f32.mrb[0].mxu0
        %v5955 = vadd.f32 %v5682, %v5954
        %v5956 = vpop.f32.mrb[0].mxu0
        %v5957 = vadd.f32 %v5684, %v5956
        %v5958 = vpop.f32.mrb[0].mxu0
        %v5959 = vadd.f32 %v5686, %v5958
        %v5960 = vpop.f32.mrb[0].mxu0
        %v5961 = vadd.f32 %v5688, %v5960
        %5962 = vmatprep.mubr.bf16.mxu0 %v641
        %5963 = vmatmul.mubr.bf16.gmra.mrb[0].mxu0 %v640
        %v5964 = vpop.f32.mrb[0].mxu0
        %v5965 = vadd.f32 %v5692, %v5964
        %v5966 = vpop.f32.mrb[0].mxu0
        %v5967 = vadd.f32 %v5694, %v5966
        %v5968 = vpop.f32.mrb[0].mxu0
        %v5969 = vadd.f32 %v5696, %v5968
        %v5970 = vpop.f32.mrb[0].mxu0
        %v5971 = vadd.f32 %v5698, %v5970
        %5972 = vmatprep.mubr.bf16.mxu0 %v647
        %5973 = vmatmul.mubr.bf16.gmra.mrb[0].mxu0 %v646
        %v5974 = vpop.f32.mrb[0].mxu0
        %v5975 = vadd.f32 %v5702, %v5974
        %v5976 = vpop.f32.mrb[0].mxu0
        %v5977 = vadd.f32 %v5704, %v5976
        %v5978 = vpop.f32.mrb[0].mxu0
        %v5979 = vadd.f32 %v5706, %v5978
        %v5980 = vpop.f32.mrb[0].mxu0
        %v5981 = vadd.f32 %v5708, %v5980
        %5982 = vmatprep.mubr.bf16.mxu0 %v653
        %5983 = vmatmul.mubr.bf16.gmra.mrb[0].mxu0 %v652
        %v5984 = vpop.f32.mrb[0].mxu0
        %v5985 = vadd.f32 %v5712, %v5984
        %v5986 = vpop.f32.mrb[0].mxu0
        %v5987 = vadd.f32 %v5714, %v5986
        %v5988 = vpop.f32.mrb[0].mxu0
        %v5989 = vadd.f32 %v5716, %v5988
        %v5990 = vpop.f32.mrb[0].mxu0
        %v5991 = vadd.f32 %v5718, %v5990
        %5992 = vmatprep.mubr.bf16.mxu0 %v659
        %5993 = vmatmul.mubr.bf16.gmra.mrb[0].mxu0 %v658
        %v5994 = vpop.f32.mrb[0].mxu0
        %v5995 = vadd.f32 %v5722, %v5994
        %v5996 = vpop.f32.mrb[0].mxu0
        %v5997 = vadd.f32 %v5724, %v5996
        %v5998 = vpop.f32.mrb[0].mxu0
        %v5999 = vadd.f32 %v5726, %v5998
        %v6000 = vpop.f32.mrb[0].mxu0
        %v6001 = vadd.f32 %v5728, %v6000
        %6002 = vmatprep.mubr.bf16.mxu0 %v665
        %6003 = vmatmul.mubr.bf16.gmra.mrb[0].mxu0 %v664
        %v6004 = vpop.f32.mrb[0].mxu0
        %v6005 = vadd.f32 %v5732, %v6004
        %v6006 = vpop.f32.mrb[0].mxu0
        %v6007 = vadd.f32 %v5734, %v6006
        %v6008 = vpop.f32.mrb[0].mxu0
        %v6009 = vadd.f32 %v5736, %v6008
        %v6010 = vpop.f32.mrb[0].mxu0
        %v6011 = vadd.f32 %v5738, %v6010
        %6012 = vmatprep.mubr.bf16.mxu0 %v671
        %6013 = vmatmul.mubr.bf16.gmra.mrb[0].mxu0 %v670
        %v6014 = vpop.f32.mrb[0].mxu0
        %v6015 = vadd.f32 %v5742, %v6014
        %v6016 = vpop.f32.mrb[0].mxu0
        %v6017 = vadd.f32 %v5744, %v6016
        %v6018 = vpop.f32.mrb[0].mxu0
        %v6019 = vadd.f32 %v5746, %v6018
        %v6020 = vpop.f32.mrb[0].mxu0
        %v6021 = vadd.f32 %v5748, %v6020
        %6022 = vdwg.mxu0
        %6023 = vmatprep.subr.bf16.mxu0 %v2515
        %6024 = vmatpush1.bf16.msra.mxu0 %v2514
        %6025 = vmatprep.subr.bf16.mxu0 %v2523
        %6026 = vmatpush1.bf16.msra.mxu0 %v2522
        %6027 = vmatprep.subr.bf16.mxu0 %v2531
        %6028 = vmatpush1.bf16.msra.mxu0 %v2530
        %6029 = vmatprep.subr.bf16.mxu0 %v2539
        %6030 = vmatpush1.bf16.msra.mxu0 %v2538
        %6031 = vmatprep.subr.bf16.mxu0 %v2547
        %6032 = vmatpush1.bf16.msra.mxu0 %v2546
        %6033 = vmatprep.subr.bf16.mxu0 %v2555
        %6034 = vmatpush1.bf16.msra.mxu0 %v2554
        %6035 = vmatprep.subr.bf16.mxu0 %v2563
        %6036 = vmatpush1.bf16.msra.mxu0 %v2562
        %6037 = vmatprep.subr.bf16.mxu0 %v2571
        %6038 = vmatpush1.bf16.msra.mxu0 %v2570
        %6039 = vmatprep.subr.bf16.mxu0 %v2579
        %6040 = vmatpush1.bf16.msra.mxu0 %v2578
        %6041 = vmatprep.subr.bf16.mxu0 %v2587
        %6042 = vmatpush1.bf16.msra.mxu0 %v2586
        %6043 = vmatprep.subr.bf16.mxu0 %v2595
        %6044 = vmatpush1.bf16.msra.mxu0 %v2594
        %6045 = vmatprep.subr.bf16.mxu0 %v2603
        %6046 = vmatpush1.bf16.msra.mxu0 %v2602
        %6047 = vmatprep.subr.bf16.mxu0 %v2611
        %6048 = vmatpush1.bf16.msra.mxu0 %v2610
        %6049 = vmatprep.subr.bf16.mxu0 %v2619
        %6050 = vmatpush1.bf16.msra.mxu0 %v2618
        %6051 = vmatprep.subr.bf16.mxu0 %v2627
        %6052 = vmatpush1.bf16.msra.mxu0 %v2626
        %6053 = vmatprep.subr.bf16.mxu0 %v2635
        %6054 = vmatpush1.bf16.msra.mxu0 %v2634
        %6055 = vmatprep.mubr.bf16.mxu0 %v535
        %6056 = vmatmul.mubr.bf16.gmra.mrb[0].mxu0 %v534
        %v6057 = vpop.f32.mrb[0].mxu0
        %v6058 = vadd.f32 %v5785, %v6057
        %v6059 = vpop.f32.mrb[0].mxu0
        %v6060 = vadd.f32 %v5787, %v6059
        %v6061 = vpop.f32.mrb[0].mxu0
        %v6062 = vadd.f32 %v5789, %v6061
        %v6063 = vpop.f32.mrb[0].mxu0
        %v6064 = vadd.f32 %v5791, %v6063
        %6065 = vmatprep.mubr.bf16.mxu0 %v541
        %6066 = vmatmul.mubr.bf16.gmra.mrb[0].mxu0 %v540
        %v6067 = vpop.f32.mrb[0].mxu0
        %v6068 = vadd.f32 %v5795, %v6067
        %v6069 = vpop.f32.mrb[0].mxu0
        %v6070 = vadd.f32 %v5797, %v6069
        %v6071 = vpop.f32.mrb[0].mxu0
        %v6072 = vadd.f32 %v5799, %v6071
        %v6073 = vpop.f32.mrb[0].mxu0
        %v6074 = vadd.f32 %v5801, %v6073
        %6075 = vmatprep.mubr.bf16.mxu0 %v547
        %6076 = vmatmul.mubr.bf16.gmra.mrb[0].mxu0 %v546
        %v6077 = vpop.f32.mrb[0].mxu0
        %v6078 = vadd.f32 %v5805, %v6077
        %v6079 = vpop.f32.mrb[0].mxu0
        %v6080 = vadd.f32 %v5807, %v6079
        %v6081 = vpop.f32.mrb[0].mxu0
        %v6082 = vadd.f32 %v5809, %v6081
        %v6083 = vpop.f32.mrb[0].mxu0
        %v6084 = vadd.f32 %v5811, %v6083
        %6085 = vmatprep.mubr.bf16.mxu0 %v553
        %6086 = vmatmul.mubr.bf16.gmra.mrb[0].mxu0 %v552
        %v6087 = vpop.f32.mrb[0].mxu0
        %v6088 = vadd.f32 %v5815, %v6087
        %v6089 = vpop.f32.mrb[0].mxu0
        %v6090 = vadd.f32 %v5817, %v6089
        %v6091 = vpop.f32.mrb[0].mxu0
        %v6092 = vadd.f32 %v5819, %v6091
        %v6093 = vpop.f32.mrb[0].mxu0
        %v6094 = vadd.f32 %v5821, %v6093
        %6095 = vmatprep.mubr.bf16.mxu0 %v559
        %6096 = vmatmul.mubr.bf16.gmra.mrb[0].mxu0 %v558
        %v6097 = vpop.f32.mrb[0].mxu0
        %v6098 = vadd.f32 %v5825, %v6097
        %v6099 = vpop.f32.mrb[0].mxu0
        %v6100 = vadd.f32 %v5827, %v6099
        %v6101 = vpop.f32.mrb[0].mxu0
        %v6102 = vadd.f32 %v5829, %v6101
        %v6103 = vpop.f32.mrb[0].mxu0
        %v6104 = vadd.f32 %v5831, %v6103
        %6105 = vmatprep.mubr.bf16.mxu0 %v565
        %6106 = vmatmul.mubr.bf16.gmra.mrb[0].mxu0 %v564
        %v6107 = vpop.f32.mrb[0].mxu0
        %v6108 = vadd.f32 %v5835, %v6107
        %v6109 = vpop.f32.mrb[0].mxu0
        %v6110 = vadd.f32 %v5837, %v6109
        %v6111 = vpop.f32.mrb[0].mxu0
        %v6112 = vadd.f32 %v5839, %v6111
        %v6113 = vpop.f32.mrb[0].mxu0
        %v6114 = vadd.f32 %v5841, %v6113
        %6115 = vmatprep.mubr.bf16.mxu0 %v571
        %6116 = vmatmul.mubr.bf16.gmra.mrb[0].mxu0 %v570
        %v6117 = vpop.f32.mrb[0].mxu0
        %v6118 = vadd.f32 %v5845, %v6117
        %v6119 = vpop.f32.mrb[0].mxu0
        %v6120 = vadd.f32 %v5847, %v6119
        %v6121 = vpop.f32.mrb[0].mxu0
        %v6122 = vadd.f32 %v5849, %v6121
        %v6123 = vpop.f32.mrb[0].mxu0
        %v6124 = vadd.f32 %v5851, %v6123
        %6125 = vmatprep.mubr.bf16.mxu0 %v577
        %6126 = vmatmul.mubr.bf16.gmra.mrb[0].mxu0 %v576
        %v6127 = vpop.f32.mrb[0].mxu0
        %v6128 = vadd.f32 %v5855, %v6127
        %v6129 = vpop.f32.mrb[0].mxu0
        %v6130 = vadd.f32 %v5857, %v6129
        %v6131 = vpop.f32.mrb[0].mxu0
        %v6132 = vadd.f32 %v5859, %v6131
        %v6133 = vpop.f32.mrb[0].mxu0
        %v6134 = vadd.f32 %v5861, %v6133
        %6135 = vmatprep.mubr.bf16.mxu0 %v583
        %6136 = vmatmul.mubr.bf16.gmra.mrb[0].mxu0 %v582
        %v6137 = vpop.f32.mrb[0].mxu0
        %v6138 = vadd.f32 %v5865, %v6137
        %v6139 = vpop.f32.mrb[0].mxu0
        %v6140 = vadd.f32 %v5867, %v6139
        %v6141 = vpop.f32.mrb[0].mxu0
        %v6142 = vadd.f32 %v5869, %v6141
        %v6143 = vpop.f32.mrb[0].mxu0
        %v6144 = vadd.f32 %v5871, %v6143
        %6145 = vmatprep.mubr.bf16.mxu0 %v589
        %6146 = vmatmul.mubr.bf16.gmra.mrb[0].mxu0 %v588
        %v6147 = vpop.f32.mrb[0].mxu0
        %v6148 = vadd.f32 %v5875, %v6147
        %v6149 = vpop.f32.mrb[0].mxu0
        %v6150 = vadd.f32 %v5877, %v6149
        %v6151 = vpop.f32.mrb[0].mxu0
        %v6152 = vadd.f32 %v5879, %v6151
        %v6153 = vpop.f32.mrb[0].mxu0
        %v6154 = vadd.f32 %v5881, %v6153
        %6155 = vmatprep.mubr.bf16.mxu0 %v595
        %6156 = vmatmul.mubr.bf16.gmra.mrb[0].mxu0 %v594
        %v6157 = vpop.f32.mrb[0].mxu0
        %v6158 = vadd.f32 %v5885, %v6157
        %v6159 = vpop.f32.mrb[0].mxu0
        %v6160 = vadd.f32 %v5887, %v6159
        %v6161 = vpop.f32.mrb[0].mxu0
        %v6162 = vadd.f32 %v5889, %v6161
        %v6163 = vpop.f32.mrb[0].mxu0
        %v6164 = vadd.f32 %v5891, %v6163
        %6165 = vmatprep.mubr.bf16.mxu0 %v601
        %6166 = vmatmul.mubr.bf16.gmra.mrb[0].mxu0 %v600
        %v6167 = vpop.f32.mrb[0].mxu0
        %v6168 = vadd.f32 %v5895, %v6167
        %v6169 = vpop.f32.mrb[0].mxu0
        %v6170 = vadd.f32 %v5897, %v6169
        %v6171 = vpop.f32.mrb[0].mxu0
        %v6172 = vadd.f32 %v5899, %v6171
        %v6173 = vpop.f32.mrb[0].mxu0
        %v6174 = vadd.f32 %v5901, %v6173
        %6175 = vmatprep.mubr.bf16.mxu0 %v607
        %6176 = vmatmul.mubr.bf16.gmra.mrb[0].mxu0 %v606
        %v6177 = vpop.f32.mrb[0].mxu0
        %v6178 = vadd.f32 %v5905, %v6177
        %v6179 = vpop.f32.mrb[0].mxu0
        %v6180 = vadd.f32 %v5907, %v6179
        %v6181 = vpop.f32.mrb[0].mxu0
        %v6182 = vadd.f32 %v5909, %v6181
        %v6183 = vpop.f32.mrb[0].mxu0
        %v6184 = vadd.f32 %v5911, %v6183
        %6185 = vmatprep.mubr.bf16.mxu0 %v613
        %6186 = vmatmul.mubr.bf16.gmra.mrb[0].mxu0 %v612
        %v6187 = vpop.f32.mrb[0].mxu0
        %v6188 = vadd.f32 %v5915, %v6187
        %v6189 = vpop.f32.mrb[0].mxu0
        %v6190 = vadd.f32 %v5917, %v6189
        %v6191 = vpop.f32.mrb[0].mxu0
        %v6192 = vadd.f32 %v5919, %v6191
        %v6193 = vpop.f32.mrb[0].mxu0
        %v6194 = vadd.f32 %v5921, %v6193
        %6195 = vmatprep.mubr.bf16.mxu0 %v619
        %6196 = vmatmul.mubr.bf16.gmra.mrb[0].mxu0 %v618
        %v6197 = vpop.f32.mrb[0].mxu0
        %v6198 = vadd.f32 %v5925, %v6197
        %v6199 = vpop.f32.mrb[0].mxu0
        %v6200 = vadd.f32 %v5927, %v6199
        %v6201 = vpop.f32.mrb[0].mxu0
        %v6202 = vadd.f32 %v5929, %v6201
        %v6203 = vpop.f32.mrb[0].mxu0
        %v6204 = vadd.f32 %v5931, %v6203
        %6205 = vmatprep.mubr.bf16.mxu0 %v625
        %6206 = vmatmul.mubr.bf16.gmra.mrb[0].mxu0 %v624
        %v6207 = vpop.f32.mrb[0].mxu0
        %v6208 = vadd.f32 %v5935, %v6207
        %v6209 = vpop.f32.mrb[0].mxu0
        %v6210 = vadd.f32 %v5937, %v6209
        %v6211 = vpop.f32.mrb[0].mxu0
        %v6212 = vadd.f32 %v5939, %v6211
        %v6213 = vpop.f32.mrb[0].mxu0
        %v6214 = vadd.f32 %v5941, %v6213
        %6215 = vmatprep.mubr.bf16.mxu0 %v631
        %6216 = vmatmul.mubr.bf16.gmra.mrb[0].mxu0 %v630
        %v6217 = vpop.f32.mrb[0].mxu0
        %v6218 = vadd.f32 %v5945, %v6217
        %v6219 = vpop.f32.mrb[0].mxu0
        %v6220 = vadd.f32 %v5947, %v6219
        %v6221 = vpop.f32.mrb[0].mxu0
        %v6222 = vadd.f32 %v5949, %v6221
        %v6223 = vpop.f32.mrb[0].mxu0
        %v6224 = vadd.f32 %v5951, %v6223
        %6225 = vmatprep.mubr.bf16.mxu0 %v637
        %6226 = vmatmul.mubr.bf16.gmra.mrb[0].mxu0 %v636
        %v6227 = vpop.f32.mrb[0].mxu0
        %v6228 = vadd.f32 %v5955, %v6227
        %v6229 = vpop.f32.mrb[0].mxu0
        %v6230 = vadd.f32 %v5957, %v6229
        %v6231 = vpop.f32.mrb[0].mxu0
        %v6232 = vadd.f32 %v5959, %v6231
        %v6233 = vpop.f32.mrb[0].mxu0
        %v6234 = vadd.f32 %v5961, %v6233
        %6235 = vmatprep.mubr.bf16.mxu0 %v643
        %6236 = vmatmul.mubr.bf16.gmra.mrb[0].mxu0 %v642
        %v6237 = vpop.f32.mrb[0].mxu0
        %v6238 = vadd.f32 %v5965, %v6237
        %v6239 = vpop.f32.mrb[0].mxu0
        %v6240 = vadd.f32 %v5967, %v6239
        %v6241 = vpop.f32.mrb[0].mxu0
        %v6242 = vadd.f32 %v5969, %v6241
        %v6243 = vpop.f32.mrb[0].mxu0
        %v6244 = vadd.f32 %v5971, %v6243
        %6245 = vmatprep.mubr.bf16.mxu0 %v649
        %6246 = vmatmul.mubr.bf16.gmra.mrb[0].mxu0 %v648
        %v6247 = vpop.f32.mrb[0].mxu0
        %v6248 = vadd.f32 %v5975, %v6247
        %v6249 = vpop.f32.mrb[0].mxu0
        %v6250 = vadd.f32 %v5977, %v6249
        %v6251 = vpop.f32.mrb[0].mxu0
        %v6252 = vadd.f32 %v5979, %v6251
        %v6253 = vpop.f32.mrb[0].mxu0
        %v6254 = vadd.f32 %v5981, %v6253
        %6255 = vmatprep.mubr.bf16.mxu0 %v655
        %6256 = vmatmul.mubr.bf16.gmra.mrb[0].mxu0 %v654
        %v6257 = vpop.f32.mrb[0].mxu0
        %v6258 = vadd.f32 %v5985, %v6257
        %v6259 = vpop.f32.mrb[0].mxu0
        %v6260 = vadd.f32 %v5987, %v6259
        %v6261 = vpop.f32.mrb[0].mxu0
        %v6262 = vadd.f32 %v5989, %v6261
        %v6263 = vpop.f32.mrb[0].mxu0
        %v6264 = vadd.f32 %v5991, %v6263
        %6265 = vmatprep.mubr.bf16.mxu0 %v661
        %6266 = vmatmul.mubr.bf16.gmra.mrb[0].mxu0 %v660
        %v6267 = vpop.f32.mrb[0].mxu0
        %v6268 = vadd.f32 %v5995, %v6267
        %v6269 = vpop.f32.mrb[0].mxu0
        %v6270 = vadd.f32 %v5997, %v6269
        %v6271 = vpop.f32.mrb[0].mxu0
        %v6272 = vadd.f32 %v5999, %v6271
        %v6273 = vpop.f32.mrb[0].mxu0
        %v6274 = vadd.f32 %v6001, %v6273
        %6275 = vmatprep.mubr.bf16.mxu0 %v667
        %6276 = vmatmul.mubr.bf16.gmra.mrb[0].mxu0 %v666
        %v6277 = vpop.f32.mrb[0].mxu0
        %v6278 = vadd.f32 %v6005, %v6277
        %v6279 = vpop.f32.mrb[0].mxu0
        %v6280 = vadd.f32 %v6007, %v6279
        %v6281 = vpop.f32.mrb[0].mxu0
        %v6282 = vadd.f32 %v6009, %v6281
        %v6283 = vpop.f32.mrb[0].mxu0
        %v6284 = vadd.f32 %v6011, %v6283
        %6285 = vmatprep.mubr.bf16.mxu0 %v673
        %6286 = vmatmul.mubr.bf16.gmra.mrb[0].mxu0 %v672
        %v6287 = vpop.f32.mrb[0].mxu0
        %v6288 = vadd.f32 %v6015, %v6287
        %v6289 = vpop.f32.mrb[0].mxu0
        %v6290 = vadd.f32 %v6017, %v6289
        %v6291 = vpop.f32.mrb[0].mxu0
        %v6292 = vadd.f32 %v6019, %v6291
        %v6293 = vpop.f32.mrb[0].mxu0
        %v6294 = vadd.f32 %v6021, %v6293
        %6295 = vdwg.mxu0
        %6296 = vst [vmem:[%s238] sm:$0xff] %v3601
        %6297 = vst [vmem:[%s238 + $0x8] sm:$0xff] %v3603
        %6298 = vst [vmem:[%s238 + $0x10] sm:$0xff] %v4420
        %6299 = vst [vmem:[%s238 + $0x18] sm:$0xff] %v4422
        %6300 = vst [vmem:[%s238 + $0x20] sm:$0xff] %v5239
        %6301 = vst [vmem:[%s238 + $0x28] sm:$0xff] %v5241
        %6302 = vst [vmem:[%s238 + $0x30] sm:$0xff] %v6058
        %6303 = vst [vmem:[%s238 + $0x38] sm:$0xff] %v6060
        %6304 = vst [vmem:[%s238 + $0x40] sm:$0xff] %v3605
        %6305 = vst [vmem:[%s238 + $0x48] sm:$0xff] %v3607
        %6306 = vst [vmem:[%s238 + $0x50] sm:$0xff] %v4424
        %6307 = vst [vmem:[%s238 + $0x58] sm:$0xff] %v4426
        %6308 = vst [vmem:[%s238 + $0x60] sm:$0xff] %v5243
        %6309 = vst [vmem:[%s238 + $0x68] sm:$0xff] %v5245
        %6310 = vst [vmem:[%s238 + $0x70] sm:$0xff] %v6062
        %6311 = vst [vmem:[%s238 + $0x78] sm:$0xff] %v6064
        %6312 = vst [vmem:[%s238 + $0x80] sm:$0xff] %v3611
        %6313 = vst [vmem:[%s238 + $0x88] sm:$0xff] %v3613
        %6314 = vst [vmem:[%s238 + $0x90] sm:$0xff] %v4430
        %6315 = vst [vmem:[%s238 + $0x98] sm:$0xff] %v4432
        %6316 = vst [vmem:[%s238 + $0xa0] sm:$0xff] %v5249
        %6317 = vst [vmem:[%s238 + $0xa8] sm:$0xff] %v5251
        %6318 = vst [vmem:[%s238 + $0xb0] sm:$0xff] %v6068
        %6319 = vst [vmem:[%s238 + $0xb8] sm:$0xff] %v6070
        %6320 = vst [vmem:[%s238 + $0xc0] sm:$0xff] %v3615
        %6321 = vst [vmem:[%s238 + $0xc8] sm:$0xff] %v3617
        %6322 = vst [vmem:[%s238 + $0xd0] sm:$0xff] %v4434
        %6323 = vst [vmem:[%s238 + $0xd8] sm:$0xff] %v4436
        %6324 = vst [vmem:[%s238 + $0xe0] sm:$0xff] %v5253
        %6325 = vst [vmem:[%s238 + $0xe8] sm:$0xff] %v5255
        %6326 = vst [vmem:[%s238 + $0xf0] sm:$0xff] %v6072
        %6327 = vst [vmem:[%s238 + $0xf8] sm:$0xff] %v6074
        %6328 = vst [vmem:[%s238 + $0x100] sm:$0xff] %v3621
        %6329 = vst [vmem:[%s238 + $0x108] sm:$0xff] %v3623
        %6330 = vst [vmem:[%s238 + $0x110] sm:$0xff] %v4440
        %6331 = vst [vmem:[%s238 + $0x118] sm:$0xff] %v4442
        %6332 = vst [vmem:[%s238 + $0x120] sm:$0xff] %v5259
        %6333 = vst [vmem:[%s238 + $0x128] sm:$0xff] %v5261
        %6334 = vst [vmem:[%s238 + $0x130] sm:$0xff] %v6078
        %6335 = vst [vmem:[%s238 + $0x138] sm:$0xff] %v6080
        %6336 = vst [vmem:[%s238 + $0x140] sm:$0xff] %v3625
        %6337 = vst [vmem:[%s238 + $0x148] sm:$0xff] %v3627
        %6338 = vst [vmem:[%s238 + $0x150] sm:$0xff] %v4444
        %6339 = vst [vmem:[%s238 + $0x158] sm:$0xff] %v4446
        %6340 = vst [vmem:[%s238 + $0x160] sm:$0xff] %v5263
        %6341 = vst [vmem:[%s238 + $0x168] sm:$0xff] %v5265
        %6342 = vst [vmem:[%s238 + $0x170] sm:$0xff] %v6082
        %6343 = vst [vmem:[%s238 + $0x178] sm:$0xff] %v6084
        %6344 = vst [vmem:[%s238 + $0x180] sm:$0xff] %v3631
        %6345 = vst [vmem:[%s238 + $0x188] sm:$0xff] %v3633
        %6346 = vst [vmem:[%s238 + $0x190] sm:$0xff] %v4450
        %6347 = vst [vmem:[%s238 + $0x198] sm:$0xff] %v4452
        %6348 = vst [vmem:[%s238 + $0x1a0] sm:$0xff] %v5269
        %6349 = vst [vmem:[%s238 + $0x1a8] sm:$0xff] %v5271
        %6350 = vst [vmem:[%s238 + $0x1b0] sm:$0xff] %v6088
        %6351 = vst [vmem:[%s238 + $0x1b8] sm:$0xff] %v6090
        %6352 = vst [vmem:[%s238 + $0x1c0] sm:$0xff] %v3635
        %6353 = vst [vmem:[%s238 + $0x1c8] sm:$0xff] %v3637
        %6354 = vst [vmem:[%s238 + $0x1d0] sm:$0xff] %v4454
        %6355 = vst [vmem:[%s238 + $0x1d8] sm:$0xff] %v4456
        %6356 = vst [vmem:[%s238 + $0x1e0] sm:$0xff] %v5273
        %6357 = vst [vmem:[%s238 + $0x1e8] sm:$0xff] %v5275
        %6358 = vst [vmem:[%s238 + $0x1f0] sm:$0xff] %v6092
        %6359 = vst [vmem:[%s238 + $0x1f8] sm:$0xff] %v6094
        %6360 = vst [vmem:[%s238 + $0x200] sm:$0xff] %v3641
        %6361 = vst [vmem:[%s238 + $0x208] sm:$0xff] %v3643
        %6362 = vst [vmem:[%s238 + $0x210] sm:$0xff] %v4460
        %6363 = vst [vmem:[%s238 + $0x218] sm:$0xff] %v4462
        %6364 = vst [vmem:[%s238 + $0x220] sm:$0xff] %v5279
        %6365 = vst [vmem:[%s238 + $0x228] sm:$0xff] %v5281
        %6366 = vst [vmem:[%s238 + $0x230] sm:$0xff] %v6098
        %6367 = vst [vmem:[%s238 + $0x238] sm:$0xff] %v6100
        %6368 = vst [vmem:[%s238 + $0x240] sm:$0xff] %v3645
        %6369 = vst [vmem:[%s238 + $0x248] sm:$0xff] %v3647
        %6370 = vst [vmem:[%s238 + $0x250] sm:$0xff] %v4464
        %6371 = vst [vmem:[%s238 + $0x258] sm:$0xff] %v4466
        %6372 = vst [vmem:[%s238 + $0x260] sm:$0xff] %v5283
        %6373 = vst [vmem:[%s238 + $0x268] sm:$0xff] %v5285
        %6374 = vst [vmem:[%s238 + $0x270] sm:$0xff] %v6102
        %6375 = vst [vmem:[%s238 + $0x278] sm:$0xff] %v6104
        %6376 = vst [vmem:[%s238 + $0x280] sm:$0xff] %v3651
        %6377 = vst [vmem:[%s238 + $0x288] sm:$0xff] %v3653
        %6378 = vst [vmem:[%s238 + $0x290] sm:$0xff] %v4470
        %6379 = vst [vmem:[%s238 + $0x298] sm:$0xff] %v4472
        %6380 = vst [vmem:[%s238 + $0x2a0] sm:$0xff] %v5289
        %6381 = vst [vmem:[%s238 + $0x2a8] sm:$0xff] %v5291
        %6382 = vst [vmem:[%s238 + $0x2b0] sm:$0xff] %v6108
        %6383 = vst [vmem:[%s238 + $0x2b8] sm:$0xff] %v6110
        %6384 = vst [vmem:[%s238 + $0x2c0] sm:$0xff] %v3655
        %6385 = vst [vmem:[%s238 + $0x2c8] sm:$0xff] %v3657
        %6386 = vst [vmem:[%s238 + $0x2d0] sm:$0xff] %v4474
        %6387 = vst [vmem:[%s238 + $0x2d8] sm:$0xff] %v4476
        %6388 = vst [vmem:[%s238 + $0x2e0] sm:$0xff] %v5293
        %6389 = vst [vmem:[%s238 + $0x2e8] sm:$0xff] %v5295
        %6390 = vst [vmem:[%s238 + $0x2f0] sm:$0xff] %v6112
        %6391 = vst [vmem:[%s238 + $0x2f8] sm:$0xff] %v6114
        %6392 = vst [vmem:[%s238 + $0x300] sm:$0xff] %v3661
        %6393 = vst [vmem:[%s238 + $0x308] sm:$0xff] %v3663
        %6394 = vst [vmem:[%s238 + $0x310] sm:$0xff] %v4480
        %6395 = vst [vmem:[%s238 + $0x318] sm:$0xff] %v4482
        %6396 = vst [vmem:[%s238 + $0x320] sm:$0xff] %v5299
        %6397 = vst [vmem:[%s238 + $0x328] sm:$0xff] %v5301
        %6398 = vst [vmem:[%s238 + $0x330] sm:$0xff] %v6118
        %6399 = vst [vmem:[%s238 + $0x338] sm:$0xff] %v6120
        %6400 = vst [vmem:[%s238 + $0x340] sm:$0xff] %v3665
        %6401 = vst [vmem:[%s238 + $0x348] sm:$0xff] %v3667
        %6402 = vst [vmem:[%s238 + $0x350] sm:$0xff] %v4484
        %6403 = vst [vmem:[%s238 + $0x358] sm:$0xff] %v4486
        %6404 = vst [vmem:[%s238 + $0x360] sm:$0xff] %v5303
        %6405 = vst [vmem:[%s238 + $0x368] sm:$0xff] %v5305
        %6406 = vst [vmem:[%s238 + $0x370] sm:$0xff] %v6122
        %6407 = vst [vmem:[%s238 + $0x378] sm:$0xff] %v6124
        %6408 = vst [vmem:[%s238 + $0x380] sm:$0xff] %v3671
        %6409 = vst [vmem:[%s238 + $0x388] sm:$0xff] %v3673
        %6410 = vst [vmem:[%s238 + $0x390] sm:$0xff] %v4490
        %6411 = vst [vmem:[%s238 + $0x398] sm:$0xff] %v4492
        %6412 = vst [vmem:[%s238 + $0x3a0] sm:$0xff] %v5309
        %6413 = vst [vmem:[%s238 + $0x3a8] sm:$0xff] %v5311
        %6414 = vst [vmem:[%s238 + $0x3b0] sm:$0xff] %v6128
        %6415 = vst [vmem:[%s238 + $0x3b8] sm:$0xff] %v6130
        %6416 = vst [vmem:[%s238 + $0x3c0] sm:$0xff] %v3675
        %6417 = vst [vmem:[%s238 + $0x3c8] sm:$0xff] %v3677
        %6418 = vst [vmem:[%s238 + $0x3d0] sm:$0xff] %v4494
        %6419 = vst [vmem:[%s238 + $0x3d8] sm:$0xff] %v4496
        %6420 = vst [vmem:[%s238 + $0x3e0] sm:$0xff] %v5313
        %6421 = vst [vmem:[%s238 + $0x3e8] sm:$0xff] %v5315
        %6422 = vst [vmem:[%s238 + $0x3f0] sm:$0xff] %v6132
        %6423 = vst [vmem:[%s238 + $0x3f8] sm:$0xff] %v6134
        %6424 = vst [vmem:[%s238 + $0x400] sm:$0xff] %v3681
        %6425 = vst [vmem:[%s238 + $0x408] sm:$0xff] %v3683
        %6426 = vst [vmem:[%s238 + $0x410] sm:$0xff] %v4500
        %6427 = vst [vmem:[%s238 + $0x418] sm:$0xff] %v4502
        %6428 = vst [vmem:[%s238 + $0x420] sm:$0xff] %v5319
        %6429 = vst [vmem:[%s238 + $0x428] sm:$0xff] %v5321
        %6430 = vst [vmem:[%s238 + $0x430] sm:$0xff] %v6138
        %6431 = vst [vmem:[%s238 + $0x438] sm:$0xff] %v6140
        %6432 = vst [vmem:[%s238 + $0x440] sm:$0xff] %v3685
        %6433 = vst [vmem:[%s238 + $0x448] sm:$0xff] %v3687
        %6434 = vst [vmem:[%s238 + $0x450] sm:$0xff] %v4504
        %6435 = vst [vmem:[%s238 + $0x458] sm:$0xff] %v4506
        %6436 = vst [vmem:[%s238 + $0x460] sm:$0xff] %v5323
        %6437 = vst [vmem:[%s238 + $0x468] sm:$0xff] %v5325
        %6438 = vst [vmem:[%s238 + $0x470] sm:$0xff] %v6142
        %6439 = vst [vmem:[%s238 + $0x478] sm:$0xff] %v6144
        %6440 = vst [vmem:[%s238 + $0x480] sm:$0xff] %v3691
        %6441 = vst [vmem:[%s238 + $0x488] sm:$0xff] %v3693
        %6442 = vst [vmem:[%s238 + $0x490] sm:$0xff] %v4510
        %6443 = vst [vmem:[%s238 + $0x498] sm:$0xff] %v4512
        %6444 = vst [vmem:[%s238 + $0x4a0] sm:$0xff] %v5329
        %6445 = vst [vmem:[%s238 + $0x4a8] sm:$0xff] %v5331
        %6446 = vst [vmem:[%s238 + $0x4b0] sm:$0xff] %v6148
        %6447 = vst [vmem:[%s238 + $0x4b8] sm:$0xff] %v6150
        %6448 = vst [vmem:[%s238 + $0x4c0] sm:$0xff] %v3695
        %6449 = vst [vmem:[%s238 + $0x4c8] sm:$0xff] %v3697
        %6450 = vst [vmem:[%s238 + $0x4d0] sm:$0xff] %v4514
        %6451 = vst [vmem:[%s238 + $0x4d8] sm:$0xff] %v4516
        %6452 = vst [vmem:[%s238 + $0x4e0] sm:$0xff] %v5333
        %6453 = vst [vmem:[%s238 + $0x4e8] sm:$0xff] %v5335
        %6454 = vst [vmem:[%s238 + $0x4f0] sm:$0xff] %v6152
        %6455 = vst [vmem:[%s238 + $0x4f8] sm:$0xff] %v6154
        %6456 = vst [vmem:[%s238 + $0x500] sm:$0xff] %v3701
        %6457 = vst [vmem:[%s238 + $0x508] sm:$0xff] %v3703
        %6458 = vst [vmem:[%s238 + $0x510] sm:$0xff] %v4520
        %6459 = vst [vmem:[%s238 + $0x518] sm:$0xff] %v4522
        %6460 = vst [vmem:[%s238 + $0x520] sm:$0xff] %v5339
        %6461 = vst [vmem:[%s238 + $0x528] sm:$0xff] %v5341
        %6462 = vst [vmem:[%s238 + $0x530] sm:$0xff] %v6158
        %6463 = vst [vmem:[%s238 + $0x538] sm:$0xff] %v6160
        %6464 = vst [vmem:[%s238 + $0x540] sm:$0xff] %v3705
        %6465 = vst [vmem:[%s238 + $0x548] sm:$0xff] %v3707
        %6466 = vst [vmem:[%s238 + $0x550] sm:$0xff] %v4524
        %6467 = vst [vmem:[%s238 + $0x558] sm:$0xff] %v4526
        %6468 = vst [vmem:[%s238 + $0x560] sm:$0xff] %v5343
        %6469 = vst [vmem:[%s238 + $0x568] sm:$0xff] %v5345
        %6470 = vst [vmem:[%s238 + $0x570] sm:$0xff] %v6162
        %6471 = vst [vmem:[%s238 + $0x578] sm:$0xff] %v6164
        %6472 = vst [vmem:[%s238 + $0x580] sm:$0xff] %v3711
        %6473 = vst [vmem:[%s238 + $0x588] sm:$0xff] %v3713
        %6474 = vst [vmem:[%s238 + $0x590] sm:$0xff] %v4530
        %6475 = vst [vmem:[%s238 + $0x598] sm:$0xff] %v4532
        %6476 = vst [vmem:[%s238 + $0x5a0] sm:$0xff] %v5349
        %6477 = vst [vmem:[%s238 + $0x5a8] sm:$0xff] %v5351
        %6478 = vst [vmem:[%s238 + $0x5b0] sm:$0xff] %v6168
        %6479 = vst [vmem:[%s238 + $0x5b8] sm:$0xff] %v6170
        %6480 = vst [vmem:[%s238 + $0x5c0] sm:$0xff] %v3715
        %6481 = vst [vmem:[%s238 + $0x5c8] sm:$0xff] %v3717
        %6482 = vst [vmem:[%s238 + $0x5d0] sm:$0xff] %v4534
        %6483 = vst [vmem:[%s238 + $0x5d8] sm:$0xff] %v4536
        %6484 = vst [vmem:[%s238 + $0x5e0] sm:$0xff] %v5353
        %6485 = vst [vmem:[%s238 + $0x5e8] sm:$0xff] %v5355
        %6486 = vst [vmem:[%s238 + $0x5f0] sm:$0xff] %v6172
        %6487 = vst [vmem:[%s238 + $0x5f8] sm:$0xff] %v6174
        %6488 = vst [vmem:[%s238 + $0x600] sm:$0xff] %v3721
        %6489 = vst [vmem:[%s238 + $0x608] sm:$0xff] %v3723
        %6490 = vst [vmem:[%s238 + $0x610] sm:$0xff] %v4540
        %6491 = vst [vmem:[%s238 + $0x618] sm:$0xff] %v4542
        %6492 = vst [vmem:[%s238 + $0x620] sm:$0xff] %v5359
        %6493 = vst [vmem:[%s238 + $0x628] sm:$0xff] %v5361
        %6494 = vst [vmem:[%s238 + $0x630] sm:$0xff] %v6178
        %6495 = vst [vmem:[%s238 + $0x638] sm:$0xff] %v6180
        %6496 = vst [vmem:[%s238 + $0x640] sm:$0xff] %v3725
        %6497 = vst [vmem:[%s238 + $0x648] sm:$0xff] %v3727
        %6498 = vst [vmem:[%s238 + $0x650] sm:$0xff] %v4544
        %6499 = vst [vmem:[%s238 + $0x658] sm:$0xff] %v4546
        %6500 = vst [vmem:[%s238 + $0x660] sm:$0xff] %v5363
        %6501 = vst [vmem:[%s238 + $0x668] sm:$0xff] %v5365
        %6502 = vst [vmem:[%s238 + $0x670] sm:$0xff] %v6182
        %6503 = vst [vmem:[%s238 + $0x678] sm:$0xff] %v6184
        %6504 = vst [vmem:[%s238 + $0x680] sm:$0xff] %v3731
        %6505 = vst [vmem:[%s238 + $0x688] sm:$0xff] %v3733
        %6506 = vst [vmem:[%s238 + $0x690] sm:$0xff] %v4550
        %6507 = vst [vmem:[%s238 + $0x698] sm:$0xff] %v4552
        %6508 = vst [vmem:[%s238 + $0x6a0] sm:$0xff] %v5369
        %6509 = vst [vmem:[%s238 + $0x6a8] sm:$0xff] %v5371
        %6510 = vst [vmem:[%s238 + $0x6b0] sm:$0xff] %v6188
        %6511 = vst [vmem:[%s238 + $0x6b8] sm:$0xff] %v6190
        %6512 = vst [vmem:[%s238 + $0x6c0] sm:$0xff] %v3735
        %6513 = vst [vmem:[%s238 + $0x6c8] sm:$0xff] %v3737
        %6514 = vst [vmem:[%s238 + $0x6d0] sm:$0xff] %v4554
        %6515 = vst [vmem:[%s238 + $0x6d8] sm:$0xff] %v4556
        %6516 = vst [vmem:[%s238 + $0x6e0] sm:$0xff] %v5373
        %6517 = vst [vmem:[%s238 + $0x6e8] sm:$0xff] %v5375
        %6518 = vst [vmem:[%s238 + $0x6f0] sm:$0xff] %v6192
        %6519 = vst [vmem:[%s238 + $0x6f8] sm:$0xff] %v6194
        %6520 = vst [vmem:[%s238 + $0x700] sm:$0xff] %v3741
        %6521 = vst [vmem:[%s238 + $0x708] sm:$0xff] %v3743
        %6522 = vst [vmem:[%s238 + $0x710] sm:$0xff] %v4560
        %6523 = vst [vmem:[%s238 + $0x718] sm:$0xff] %v4562
        %6524 = vst [vmem:[%s238 + $0x720] sm:$0xff] %v5379
        %6525 = vst [vmem:[%s238 + $0x728] sm:$0xff] %v5381
        %6526 = vst [vmem:[%s238 + $0x730] sm:$0xff] %v6198
        %6527 = vst [vmem:[%s238 + $0x738] sm:$0xff] %v6200
        %6528 = vst [vmem:[%s238 + $0x740] sm:$0xff] %v3745
        %6529 = vst [vmem:[%s238 + $0x748] sm:$0xff] %v3747
        %6530 = vst [vmem:[%s238 + $0x750] sm:$0xff] %v4564
        %6531 = vst [vmem:[%s238 + $0x758] sm:$0xff] %v4566
        %6532 = vst [vmem:[%s238 + $0x760] sm:$0xff] %v5383
        %6533 = vst [vmem:[%s238 + $0x768] sm:$0xff] %v5385
        %6534 = vst [vmem:[%s238 + $0x770] sm:$0xff] %v6202
        %6535 = vst [vmem:[%s238 + $0x778] sm:$0xff] %v6204
        %6536 = vst [vmem:[%s238 + $0x780] sm:$0xff] %v3751
        %6537 = vst [vmem:[%s238 + $0x788] sm:$0xff] %v3753
        %6538 = vst [vmem:[%s238 + $0x790] sm:$0xff] %v4570
        %6539 = vst [vmem:[%s238 + $0x798] sm:$0xff] %v4572
        %6540 = vst [vmem:[%s238 + $0x7a0] sm:$0xff] %v5389
        %6541 = vst [vmem:[%s238 + $0x7a8] sm:$0xff] %v5391
        %6542 = vst [vmem:[%s238 + $0x7b0] sm:$0xff] %v6208
        %6543 = vst [vmem:[%s238 + $0x7b8] sm:$0xff] %v6210
        %6544 = vst [vmem:[%s238 + $0x7c0] sm:$0xff] %v3755
        %6545 = vst [vmem:[%s238 + $0x7c8] sm:$0xff] %v3757
        %6546 = vst [vmem:[%s238 + $0x7d0] sm:$0xff] %v4574
        %6547 = vst [vmem:[%s238 + $0x7d8] sm:$0xff] %v4576
        %6548 = vst [vmem:[%s238 + $0x7e0] sm:$0xff] %v5393
        %6549 = vst [vmem:[%s238 + $0x7e8] sm:$0xff] %v5395
        %6550 = vst [vmem:[%s238 + $0x7f0] sm:$0xff] %v6212
        %6551 = vst [vmem:[%s238 + $0x7f8] sm:$0xff] %v6214
        %6552 = vst [vmem:[%s238 + $0x800] sm:$0xff] %v3761
        %6553 = vst [vmem:[%s238 + $0x808] sm:$0xff] %v3763
        %6554 = vst [vmem:[%s238 + $0x810] sm:$0xff] %v4580
        %6555 = vst [vmem:[%s238 + $0x818] sm:$0xff] %v4582
        %6556 = vst [vmem:[%s238 + $0x820] sm:$0xff] %v5399
        %6557 = vst [vmem:[%s238 + $0x828] sm:$0xff] %v5401
        %6558 = vst [vmem:[%s238 + $0x830] sm:$0xff] %v6218
        %6559 = vst [vmem:[%s238 + $0x838] sm:$0xff] %v6220
        %6560 = vst [vmem:[%s238 + $0x840] sm:$0xff] %v3765
        %6561 = vst [vmem:[%s238 + $0x848] sm:$0xff] %v3767
        %6562 = vst [vmem:[%s238 + $0x850] sm:$0xff] %v4584
        %6563 = vst [vmem:[%s238 + $0x858] sm:$0xff] %v4586
        %6564 = vst [vmem:[%s238 + $0x860] sm:$0xff] %v5403
        %6565 = vst [vmem:[%s238 + $0x868] sm:$0xff] %v5405
        %6566 = vst [vmem:[%s238 + $0x870] sm:$0xff] %v6222
        %6567 = vst [vmem:[%s238 + $0x878] sm:$0xff] %v6224
        %6568 = vst [vmem:[%s238 + $0x880] sm:$0xff] %v3771
        %6569 = vst [vmem:[%s238 + $0x888] sm:$0xff] %v3773
        %6570 = vst [vmem:[%s238 + $0x890] sm:$0xff] %v4590
        %6571 = vst [vmem:[%s238 + $0x898] sm:$0xff] %v4592
        %6572 = vst [vmem:[%s238 + $0x8a0] sm:$0xff] %v5409
        %6573 = vst [vmem:[%s238 + $0x8a8] sm:$0xff] %v5411
        %6574 = vst [vmem:[%s238 + $0x8b0] sm:$0xff] %v6228
        %6575 = vst [vmem:[%s238 + $0x8b8] sm:$0xff] %v6230
        %6576 = vst [vmem:[%s238 + $0x8c0] sm:$0xff] %v3775
        %6577 = vst [vmem:[%s238 + $0x8c8] sm:$0xff] %v3777
        %6578 = vst [vmem:[%s238 + $0x8d0] sm:$0xff] %v4594
        %6579 = vst [vmem:[%s238 + $0x8d8] sm:$0xff] %v4596
        %6580 = vst [vmem:[%s238 + $0x8e0] sm:$0xff] %v5413
        %6581 = vst [vmem:[%s238 + $0x8e8] sm:$0xff] %v5415
        %6582 = vst [vmem:[%s238 + $0x8f0] sm:$0xff] %v6232
        %6583 = vst [vmem:[%s238 + $0x8f8] sm:$0xff] %v6234
        %6584 = vst [vmem:[%s238 + $0x900] sm:$0xff] %v3781
        %6585 = vst [vmem:[%s238 + $0x908] sm:$0xff] %v3783
        %6586 = vst [vmem:[%s238 + $0x910] sm:$0xff] %v4600
        %6587 = vst [vmem:[%s238 + $0x918] sm:$0xff] %v4602
        %6588 = vst [vmem:[%s238 + $0x920] sm:$0xff] %v5419
        %6589 = vst [vmem:[%s238 + $0x928] sm:$0xff] %v5421
        %6590 = vst [vmem:[%s238 + $0x930] sm:$0xff] %v6238
        %6591 = vst [vmem:[%s238 + $0x938] sm:$0xff] %v6240
        %6592 = vst [vmem:[%s238 + $0x940] sm:$0xff] %v3785
        %6593 = vst [vmem:[%s238 + $0x948] sm:$0xff] %v3787
        %6594 = vst [vmem:[%s238 + $0x950] sm:$0xff] %v4604
        %6595 = vst [vmem:[%s238 + $0x958] sm:$0xff] %v4606
        %6596 = vst [vmem:[%s238 + $0x960] sm:$0xff] %v5423
        %6597 = vst [vmem:[%s238 + $0x968] sm:$0xff] %v5425
        %6598 = vst [vmem:[%s238 + $0x970] sm:$0xff] %v6242
        %6599 = vst [vmem:[%s238 + $0x978] sm:$0xff] %v6244
        %6600 = vst [vmem:[%s238 + $0x980] sm:$0xff] %v3791
        %6601 = vst [vmem:[%s238 + $0x988] sm:$0xff] %v3793
        %6602 = vst [vmem:[%s238 + $0x990] sm:$0xff] %v4610
        %6603 = vst [vmem:[%s238 + $0x998] sm:$0xff] %v4612
        %6604 = vst [vmem:[%s238 + $0x9a0] sm:$0xff] %v5429
        %6605 = vst [vmem:[%s238 + $0x9a8] sm:$0xff] %v5431
        %6606 = vst [vmem:[%s238 + $0x9b0] sm:$0xff] %v6248
        %6607 = vst [vmem:[%s238 + $0x9b8] sm:$0xff] %v6250
        %6608 = vst [vmem:[%s238 + $0x9c0] sm:$0xff] %v3795
        %6609 = vst [vmem:[%s238 + $0x9c8] sm:$0xff] %v3797
        %6610 = vst [vmem:[%s238 + $0x9d0] sm:$0xff] %v4614
        %6611 = vst [vmem:[%s238 + $0x9d8] sm:$0xff] %v4616
        %6612 = vst [vmem:[%s238 + $0x9e0] sm:$0xff] %v5433
        %6613 = vst [vmem:[%s238 + $0x9e8] sm:$0xff] %v5435
        %6614 = vst [vmem:[%s238 + $0x9f0] sm:$0xff] %v6252
        %6615 = vst [vmem:[%s238 + $0x9f8] sm:$0xff] %v6254
        %6616 = vst [vmem:[%s238 + $0xa00] sm:$0xff] %v3801
        %6617 = vst [vmem:[%s238 + $0xa08] sm:$0xff] %v3803
        %6618 = vst [vmem:[%s238 + $0xa10] sm:$0xff] %v4620
        %6619 = vst [vmem:[%s238 + $0xa18] sm:$0xff] %v4622
        %6620 = vst [vmem:[%s238 + $0xa20] sm:$0xff] %v5439
        %6621 = vst [vmem:[%s238 + $0xa28] sm:$0xff] %v5441
        %6622 = vst [vmem:[%s238 + $0xa30] sm:$0xff] %v6258
        %6623 = vst [vmem:[%s238 + $0xa38] sm:$0xff] %v6260
        %6624 = vst [vmem:[%s238 + $0xa40] sm:$0xff] %v3805
        %6625 = vst [vmem:[%s238 + $0xa48] sm:$0xff] %v3807
        %6626 = vst [vmem:[%s238 + $0xa50] sm:$0xff] %v4624
        %6627 = vst [vmem:[%s238 + $0xa58] sm:$0xff] %v4626
        %6628 = vst [vmem:[%s238 + $0xa60] sm:$0xff] %v5443
        %6629 = vst [vmem:[%s238 + $0xa68] sm:$0xff] %v5445
        %6630 = vst [vmem:[%s238 + $0xa70] sm:$0xff] %v6262
        %6631 = vst [vmem:[%s238 + $0xa78] sm:$0xff] %v6264
        %6632 = vst [vmem:[%s238 + $0xa80] sm:$0xff] %v3811
        %6633 = vst [vmem:[%s238 + $0xa88] sm:$0xff] %v3813
        %6634 = vst [vmem:[%s238 + $0xa90] sm:$0xff] %v4630
        %6635 = vst [vmem:[%s238 + $0xa98] sm:$0xff] %v4632
        %6636 = vst [vmem:[%s238 + $0xaa0] sm:$0xff] %v5449
        %6637 = vst [vmem:[%s238 + $0xaa8] sm:$0xff] %v5451
        %6638 = vst [vmem:[%s238 + $0xab0] sm:$0xff] %v6268
        %6639 = vst [vmem:[%s238 + $0xab8] sm:$0xff] %v6270
        %6640 = vst [vmem:[%s238 + $0xac0] sm:$0xff] %v3815
        %6641 = vst [vmem:[%s238 + $0xac8] sm:$0xff] %v3817
        %6642 = vst [vmem:[%s238 + $0xad0] sm:$0xff] %v4634
        %6643 = vst [vmem:[%s238 + $0xad8] sm:$0xff] %v4636
        %6644 = vst [vmem:[%s238 + $0xae0] sm:$0xff] %v5453
        %6645 = vst [vmem:[%s238 + $0xae8] sm:$0xff] %v5455
        %6646 = vst [vmem:[%s238 + $0xaf0] sm:$0xff] %v6272
        %6647 = vst [vmem:[%s238 + $0xaf8] sm:$0xff] %v6274
        %6648 = vst [vmem:[%s238 + $0xb00] sm:$0xff] %v3821
        %6649 = vst [vmem:[%s238 + $0xb08] sm:$0xff] %v3823
        %6650 = vst [vmem:[%s238 + $0xb10] sm:$0xff] %v4640
        %6651 = vst [vmem:[%s238 + $0xb18] sm:$0xff] %v4642
        %6652 = vst [vmem:[%s238 + $0xb20] sm:$0xff] %v5459
        %6653 = vst [vmem:[%s238 + $0xb28] sm:$0xff] %v5461
        %6654 = vst [vmem:[%s238 + $0xb30] sm:$0xff] %v6278
        %6655 = vst [vmem:[%s238 + $0xb38] sm:$0xff] %v6280
        %6656 = vst [vmem:[%s238 + $0xb40] sm:$0xff] %v3825
        %6657 = vst [vmem:[%s238 + $0xb48] sm:$0xff] %v3827
        %6658 = vst [vmem:[%s238 + $0xb50] sm:$0xff] %v4644
        %6659 = vst [vmem:[%s238 + $0xb58] sm:$0xff] %v4646
        %6660 = vst [vmem:[%s238 + $0xb60] sm:$0xff] %v5463
        %6661 = vst [vmem:[%s238 + $0xb68] sm:$0xff] %v5465
        %6662 = vst [vmem:[%s238 + $0xb70] sm:$0xff] %v6282
        %6663 = vst [vmem:[%s238 + $0xb78] sm:$0xff] %v6284
        %6664 = vst [vmem:[%s238 + $0xb80] sm:$0xff] %v3831
        %6665 = vst [vmem:[%s238 + $0xb88] sm:$0xff] %v3833
        %6666 = vst [vmem:[%s238 + $0xb90] sm:$0xff] %v4650
        %6667 = vst [vmem:[%s238 + $0xb98] sm:$0xff] %v4652
        %6668 = vst [vmem:[%s238 + $0xba0] sm:$0xff] %v5469
        %6669 = vst [vmem:[%s238 + $0xba8] sm:$0xff] %v5471
        %6670 = vst [vmem:[%s238 + $0xbb0] sm:$0xff] %v6288
        %6671 = vst [vmem:[%s238 + $0xbb8] sm:$0xff] %v6290
        %6672 = vst [vmem:[%s238 + $0xbc0] sm:$0xff] %v3835
        %6673 = vst [vmem:[%s238 + $0xbc8] sm:$0xff] %v3837
        %6674 = vst [vmem:[%s238 + $0xbd0] sm:$0xff] %v4654
        %6675 = vst [vmem:[%s238 + $0xbd8] sm:$0xff] %v4656
        %6676 = vst [vmem:[%s238 + $0xbe0] sm:$0xff] %v5473
        %6677 = vst [vmem:[%s238 + $0xbe8] sm:$0xff] %v5475
        %6678 = vst [vmem:[%s238 + $0xbf0] sm:$0xff] %v6292
        %6679 = vst [vmem:[%s238 + $0xbf8] sm:$0xff] %v6294
        %s6680 = sand.u32 %s102, 1
        %s6681 = scalar_lea.sflag [#allocation4], %s6680
        %s6682 = sand.u32 %s102, 1
        %s6683 = smul.addr %s6682, 3072
        %s6684 = scalar_lea.vmem [#allocation8], %s6683
        // Predicated region
        $region45: #{linear_pallas.1} parent=31 // pred_check
          %p6685 = pneg %p112
        $region46: #{linear_pallas.1} parent=31 // pred_check_branch
          %6687 = sbr.rel (%p6685) target = $region48
        $region47: #{linear_pallas.1} parent=31 // pred_region
          %s6688 = smul.u32 8, %s21
          %s6690 = ssub.s32 49152, 49152
          %6691 = vsyncadd %s6681, %s6690
          %s6692 = smul.addr %s6688, 128
          %s6693 = scalar_lea.hbm %s3, %s6692
          %s6694 = sshll.u32 %s6684, 4
          %s6695 = int_to_ptr.vmem [resolvable:$true] %s6694
          %6700 = dma.vmem_to_hbm [thread:$0]  %s6695, 49152, %s6693, %s6681, 1024, 3072, 64
        $region48: #{linear_pallas.1} parent=31 // pred_fallthru
          _
      $region32: #{linear_pallas.1} parent=5 // pred_fallthru
        _
      %p6701 = scmp.le.s32.totalorder 2, %s16
      // Predicated region
      $region49: #{linear_pallas.1} parent=5 // pred_check
        %p6702 = pneg %p6701
      $region50: #{linear_pallas.1} parent=5 // pred_check_branch
        %6704 = sbr.rel (%p6702) target = $region52
      $region51: #{linear_pallas.1} parent=5 // pred_region
        %s6705 = ssub.s32 %s16, 2
        // Predicated region
        $region53: #{linear_pallas.1} parent=51 // pred_check
          %p6706 = pneg %p118
        $region54: #{linear_pallas.1} parent=51 // pred_check_branch
          %6708 = sbr.rel (%p6706) target = $region56
        $region55: #{linear_pallas.1} parent=51 // pred_region
          %s6709 = sand.u32 %s103, 1
          %s6710 = scalar_lea.sflag [#allocation4], %s6709
          %s6711 = sand.u32 %s103, 1
          %s6712 = smul.addr %s6711, 3072
          %s6713 = scalar_lea.vmem [#allocation8], %s6712
          %6714 = dma.done %s6710, 49152
        $region56: #{linear_pallas.1} parent=51 // pred_fallthru
          _
      $region52: #{linear_pallas.1} parent=5 // pred_fallthru
        _
    $region6: #{linear_pallas.1} parent=1 // loop_footer
      %s20 = sadd.s32 1, %s16
    $region7: #{linear_pallas.1} parent=1 // loop_footer_branch
      %15 = sbr.rel target = $region3
    $region8: #{linear_pallas.1} parent=1 // loop_exit
      _
    %6715 = vsyncpa [#allocation3], 1
    %s6716 = scalar_lea.sflag [#allocation3], 1
    %6717 = vsyncpa %s6716, 1
    %6718 = vsyncpa [#allocation6], 1
    %s6719 = scalar_lea.sflag [#allocation6], 1
    %6720 = vsyncpa %s6719, 1
    %6721 = vsyncpa [#allocation4], 1
    %s6722 = scalar_lea.sflag [#allocation4], 1
    %6723 = vsyncpa %s6722, 1

</llo_original>
